<compile_context>
chip_gen: v6e
topology: v6e:2x2x1
jax: 0.10.0
libtpu: 0.0.40
codegen_flags: <defaults>
</compile_context>

<pallas_src>
import functools
from functools import partial

import jax
import jax.numpy as jnp
from jax.experimental import pallas as pl
from jax.experimental.pallas import tpu as pltpu

KS = 3        # kernel_size
PAD = 1       # padding = (KS - 1) // 2
STRIDE = 1    # implied by the PyTorch module's reshapes

_HALO_F = 8   # leading scratch rows  (keeps fallback slice starts >= 0, aligned)
_HALO_T = 8   # trailing scratch rows (keeps fallback slice ends in bounds)


def _vmem_limit_bytes() -> int:
    """Raise the default scoped-VMEM limit, leaving double-buffer headroom."""
    cap = 64 * 1024 * 1024            # conservative fallback (v7x physical VMEM)
    try:
        cap = pltpu.get_tpu_info().vmem_capacity_bytes
    except Exception:
        pass
    # ~48 MiB on v7x (64 MiB physical), ~96 MiB on v5e/v6e (128 MiB physical).
    return int(min(96 * 1024 * 1024, (cap * 3) // 4))


@functools.cache
def _roll_sign() -> int:
    """Probe pltpu.roll once on-device and pin down its shift convention.

    Returns +1 if it follows np.roll (out[i] = in[i - shift]), -1 if the
    inverse, 0 if the op is unavailable (then the kernel falls back to
    offset slices of the halo scratch).
    """
    rows, cols = 256, 8

    def probe(o_ref):
        o_ref[...] = pltpu.roll(
            jax.lax.broadcasted_iota(jnp.float32, (rows, cols), 0),
            shift=1, axis=0)

    try:
        out = pl.pallas_call(
            probe, out_shape=jax.ShapeDtypeStruct((rows, cols), jnp.float32))()
        v = float(out[1, 0])
        if v == 0.0:
            return 1
        if v == 2.0:
            return -1
        return 0
    except Exception:
        return 0


def _rel_table(rel_h, rel_w, c_out):
    """(KS*KS, C) table: rel_h varies with kh on the first C/2 channels,
    rel_w varies with kw on the last C/2 (== torch.cat((k_h+rel_h, k_w+rel_w), dim=1))."""
    rel_h2 = jnp.broadcast_to(rel_h[:, :, None], (c_out // 2, KS, KS))
    rel_w2 = jnp.broadcast_to(rel_w[:, None, :], (c_out // 2, KS, KS))
    table = jnp.concatenate([rel_h2, rel_w2], axis=0)             # (C, KS, KS)
    return table.reshape(c_out, KS * KS).T.astype(jnp.float32)    # (KS*KS, C)


# ----------------------------------------------------------------------------
# Fused kernel: one grid step per batch image.
#   x_ref   : (1, H*W, Cin)  bf16 (channels-last, spatial flattened)
#   w*_ref  : (Cin, C)       bf16
#   rel_ref : (KS*KS, C)     f32
#   o_ref   : (1, H*W, C)    f32
#   k/v scratch: (F + (H+2)*W + T, C) f32 -- k/v with one zero image-row of
#   halo above/below (the zero padding of the reference along H).
# ----------------------------------------------------------------------------
def _attention_conv_kernel(x_ref, wq_ref, wk_ref, wv_ref, rel_ref, o_ref,
                           kpad_ref, vpad_ref, *, H, W, C, roll_sign):
    HW = H * W
    F, T = _HALO_F, _HALO_T
    N = F + (H + 2) * W + T

    # ---- fused q/k/v 1x1-conv projection (MXU, bf16 in, f32 accumulate) ----
    x2d = x_ref[0]                                        # (H*W, Cin) bf16
    q = jnp.dot(x2d, wq_ref[...], preferred_element_type=jnp.float32)
    k = jnp.dot(x2d, wk_ref[...], preferred_element_type=jnp.float32)
    v = jnp.dot(x2d, wv_ref[...], preferred_element_type=jnp.float32)

    # ---- stage k/v in the halo scratch (zero rows around the image) ----
    kpad_ref[0:F + W, :] = jnp.zeros((F + W, C), jnp.float32)
    vpad_ref[0:F + W, :] = jnp.zeros((F + W, C), jnp.float32)
    kpad_ref[F + W + HW:N, :] = jnp.zeros((W + T, C), jnp.float32)
    vpad_ref[F + W + HW:N, :] = jnp.zeros((W + T, C), jnp.float32)
    kpad_ref[F + W:F + W + HW, :] = k
    vpad_ref[F + W:F + W + HW, :] = v

    rel = rel_ref[...]                                    # (KS*KS, C)

    # Masks for the two horizontal window offsets (kw - PAD = -1 / +1): the
    # first/last column of every image row must read as the reference's zero
    # padding (they hold wrapped/neighbor-row data after the shift).
    w_idx = jax.lax.broadcasted_iota(jnp.int32, (HW, 1), 0) % W
    mask_l = w_idx >= 1              # valid positions when dw == -1
    mask_r = w_idx <= (W - 2)        # valid positions when dw == +1

    def window(ref, kidx):
        # (kh, kw) window of the zero-padded k/v, flattened to (H*W, C):
        #   kh shift -> aligned row slice of the halo scratch (free addressing)
        #   kw shift -> sublane roll on the XLU + edge mask (no shifted copies)
        kh, kw = kidx // KS, kidx % KS
        dw = kw - PAD
        if dw == 0:
            return ref[F + kh * W:F + kh * W + HW, :]
        if roll_sign == 0:
            # Fallback (pltpu.roll unavailable): offset slice of the scratch.
            start = F + kh * W + dw
            slab = ref[start:start + HW, :]
        else:
            slab = ref[F + kh * W:F + kh * W + HW, :]
            slab = pltpu.roll(slab, shift=(roll_sign * -dw) % HW, axis=0)
        return jnp.where(mask_r if dw > 0 else mask_l, slab, 0.0)

    def logit(kidx):
        return q * (window(kpad_ref, kidx) + rel[kidx:kidx + 1, :])

    # ---- streaming two-pass softmax over the KS*KS window ----
    # pass 1: running max only (logits recomputed, never stored)
    m = logit(0)
    for kidx in range(1, KS * KS):
        m = jnp.maximum(m, logit(kidx))

    # pass 2: recompute each logit, accumulate exp-sum and value-weighted sum
    den = jnp.zeros((HW, C), jnp.float32)
    num = jnp.zeros((HW, C), jnp.float32)
    for kidx in range(KS * KS):
        e = jnp.exp(logit(kidx) - m)
        den = den + e
        num = num + e * window(vpad_ref, kidx)

    # divide on the EUP (approximate reciprocal) instead of the VALU
    o_ref[0] = (num * pl.reciprocal(den, approx=True)).astype(o_ref.dtype)


def attention_conv_nhwc(x_nhwc, w_q, w_k, w_v, rel_h, rel_w,
                        matmul_dtype=jnp.bfloat16):
    """Channels-last core entry point (no NCHW<->NHWC transposes)."""
    B, H, W, Cin = x_nhwc.shape
    Cout = w_q.shape[1]
    assert Cout % 2 == 0, "out_channels must be even (rel_h/rel_w split)"

    # bf16 MXU operands (f32 accumulation); also halves the x DMA bytes.
    # (On v5e keep matmul_dtype=jnp.float32.)
    x2 = x_nhwc.astype(matmul_dtype).reshape(B, H * W, Cin)
    wq = w_q.astype(matmul_dtype)
    wk = w_k.astype(matmul_dtype)
    wv = w_v.astype(matmul_dtype)
    rel = _rel_table(rel_h, rel_w, Cout)

    itm = jnp.dtype(matmul_dtype).itemsize
    flops = int(B * (2 * H * W * Cin * 3 * Cout + 11 * H * W * Cout * KS * KS))
    transcendentals = int(B * H * W * Cout * (KS * KS + 1))
    bytes_accessed = int(B * H * W * Cin * itm + 3 * Cin * Cout * itm
                         + KS * KS * Cout * 4 + B * H * W * Cout * 4)

    out = pl.pallas_call(
        partial(_attention_conv_kernel, H=H, W=W, C=Cout,
                roll_sign=_roll_sign()),
        out_shape=jax.ShapeDtypeStruct((B, H * W, Cout), jnp.float32),
        grid_spec=pltpu.PrefetchScalarGridSpec(
            num_scalar_prefetch=0,
            grid=(B,),
            in_specs=[
                pl.BlockSpec((1, H * W, Cin), lambda b: (b, 0, 0)),
                pl.BlockSpec((Cin, Cout), lambda b: (0, 0)),
                pl.BlockSpec((Cin, Cout), lambda b: (0, 0)),
                pl.BlockSpec((Cin, Cout), lambda b: (0, 0)),
                pl.BlockSpec((KS * KS, Cout), lambda b: (0, 0)),
            ],
            out_specs=pl.BlockSpec((1, H * W, Cout), lambda b: (b, 0, 0)),
            scratch_shapes=[
                pltpu.VMEM(((H + 2) * W + _HALO_F + _HALO_T, Cout), jnp.float32),
                pltpu.VMEM(((H + 2) * W + _HALO_F + _HALO_T, Cout), jnp.float32),
            ],
        ),
        compiler_params=pltpu.CompilerParams(
            dimension_semantics=("parallel",),
            vmem_limit_bytes=_vmem_limit_bytes(),
        ),
        cost_estimate=pl.CostEstimate(
            flops=flops, transcendentals=transcendentals,
            bytes_accessed=bytes_accessed),
    )(x2, wq, wk, wv, rel)

    # Note: with small Cout the lane dim (channels) is sparse; for realistic
    # Cout (>=128) this layout is lane-dense.
    return out.reshape(B, H, W, Cout)


def attention_conv(x_nchw, w_q, w_k, w_v, rel_h, rel_w,
                   matmul_dtype=jnp.bfloat16):
    """NCHW wrapper matching the PyTorch module's interface.

    The two transposes exist only for PyTorch-layout parity; callers holding
    NHWC activations should use attention_conv_nhwc directly and skip them.
    """
    x = jnp.transpose(x_nchw, (0, 2, 3, 1))
    out = attention_conv_nhwc(x, w_q, w_k, w_v, rel_h, rel_w, matmul_dtype)
    return jnp.transpose(out, (0, 3, 1, 2))


# ----------------------------------------------------------------------------
# Pure-JAX/XLA reference (same math, no Pallas).  The q/k/v projections use
# the same bf16 MXU operands as the kernel (standard TPU practice per the perf
# review); everything else is f32, so the comparison below is tight.
# ----------------------------------------------------------------------------
def reference(x_nchw, w_q, w_k, w_v, rel_h, rel_w, matmul_dtype=jnp.bfloat16):
    B, Cin, H, W = x_nchw.shape
    Cout = w_q.shape[1]
    x = jnp.transpose(x_nchw, (0, 2, 3, 1)).astype(matmul_dtype)
    q = jnp.einsum('bhwc,cd->bhwd', x, w_q.astype(matmul_dtype),
                   preferred_element_type=jnp.float32)
    k = jnp.einsum('bhwc,cd->bhwd', x, w_k.astype(matmul_dtype),
                   preferred_element_type=jnp.float32)
    v = jnp.einsum('bhwc,cd->bhwd', x, w_v.astype(matmul_dtype),
                   preferred_element_type=jnp.float32)
    kp = jnp.pad(k, ((0, 0), (PAD, PAD), (PAD, PAD), (0, 0)))
    vp = jnp.pad(v, ((0, 0), (PAD, PAD), (PAD, PAD), (0, 0)))
    rel = _rel_table(rel_h, rel_w, Cout)
    logits, vals = [], []
    for kh in range(KS):
        for kw in range(KS):
            kwin = kp[:, kh:kh + H, kw:kw + W, :]
            vwin = vp[:, kh:kh + H, kw:kw + W, :]
            logits.append(q * (kwin + rel[kh * KS + kw][None, None, None, :]))
            vals.append(vwin)
    logits = jnp.stack(logits, -1)
    vals = jnp.stack(vals, -1)
    attn = jax.nn.softmax(logits, axis=-1)
    out = jnp.sum(attn * vals, -1)
    return jnp.transpose(out, (0, 3, 1, 2))


if __name__ == "__main__":
    B, C_IN, C_OUT, H, W = 2, 4, 8, 16, 16
    # groups only reshapes in the PyTorch module; it does not change the math.

    key = jax.random.PRNGKey(0)
    kx, kq, kk, kv, krh, krw = jax.random.split(key, 6)

    x = jax.random.normal(kx, (B, C_IN, H, W), jnp.float32)

    # kaiming_normal_(mode='fan_out', relu) for a 1x1 conv: std = sqrt(2/C_OUT)
    std = (2.0 / C_OUT) ** 0.5
    w_q = std * jax.random.normal(kq, (C_IN, C_OUT), jnp.float32)
    w_k = std * jax.random.normal(kk, (C_IN, C_OUT), jnp.float32)
    w_v = std * jax.random.normal(kv, (C_IN, C_OUT), jnp.float32)
    # rel_h: (C_OUT//2, 1, 1, KS, 1) stored as (C_OUT//2, KS); rel_w likewise.
    rel_h = jax.random.normal(krh, (C_OUT // 2, KS), jnp.float32)
    rel_w = jax.random.normal(krw, (C_OUT // 2, KS), jnp.float32)

    out = jax.block_until_ready(attention_conv(x, w_q, w_k, w_v, rel_h, rel_w))
    ref = jax.block_until_ready(reference(x, w_q, w_k, w_v, rel_h, rel_w))

    assert out.shape == (B, C_OUT, H, W)
    # Tolerance budget: kernel and reference use identical bf16 MXU operands;
    # the slack covers the in-kernel approximate reciprocal (EUP path) and
    # minor exp / accumulation rounding differences.
    max_err = float(jnp.max(jnp.abs(out - ref)))
    assert jnp.allclose(out, ref, rtol=1e-2, atol=1e-2), max_err

    print("KERNEL_OK")
</pallas_src>

<mosaic_0001>
module attributes {stable_mosaic.version = 11 : i64} {
  func.func @_attention_conv_kernel(%arg0: i32, %arg1: memref<1x256x4xbf16, #tpu.memory_space<vmem>>, %arg2: memref<4x8xbf16, #tpu.memory_space<vmem>>, %arg3: memref<4x8xbf16, #tpu.memory_space<vmem>>, %arg4: memref<4x8xbf16, #tpu.memory_space<vmem>>, %arg5: memref<9x8xf32, #tpu.memory_space<vmem>>, %arg6: memref<1x256x8xf32, #tpu.memory_space<vmem>>, %arg7: memref<304x8xf32, #tpu.memory_space<vmem>>, %arg8: memref<304x8xf32, #tpu.memory_space<vmem>>) attributes {dimension_semantics = [#tpu.dimension_semantics<parallel>], iteration_bounds = array<i64: 2>, scalar_prefetch = 0 : i64, scratch_operands = 2 : i64, tpu.core_type = #tpu.core_type<tc>, window_params = [{transform_indices = @transform_0, window_bounds = array<i64: 1, 256, 4>}, {pipeline_mode = #tpu.pipeline_mode<synchronous>, transform_indices = @transform_1, window_bounds = array<i64: 4, 8>}, {pipeline_mode = #tpu.pipeline_mode<synchronous>, transform_indices = @transform_2, window_bounds = array<i64: 4, 8>}, {pipeline_mode = #tpu.pipeline_mode<synchronous>, transform_indices = @transform_3, window_bounds = array<i64: 4, 8>}, {pipeline_mode = #tpu.pipeline_mode<synchronous>, transform_indices = @transform_4, window_bounds = array<i64: 9, 8>}, {transform_indices = @transform_5, window_bounds = array<i64: 1, 256, 8>}]} {
    %c0 = arith.constant 0 : index
    %c0_0 = arith.constant 0 : index
    %c0_1 = arith.constant 0 : index
    %0 = vector.load %arg1[%c0, %c0_0, %c0_1] : memref<1x256x4xbf16, #tpu.memory_space<vmem>>, vector<1x256x4xbf16>
    %1 = vector.shape_cast %0 : vector<1x256x4xbf16> to vector<256x4xbf16>
    %c0_2 = arith.constant 0 : index
    %c0_3 = arith.constant 0 : index
    %2 = vector.load %arg2[%c0_2, %c0_3] : memref<4x8xbf16, #tpu.memory_space<vmem>>, vector<4x8xbf16>
    %cst = arith.constant dense<0.000000e+00> : vector<256x8xf32>
    %3 = tpu.matmul %1, %2, %cst {dimension_numbers = #tpu.dot_dimension_numbers<[1], [0], [0], [1], [0, 0, 1, 1], [], []>} : vector<256x4xbf16>, vector<4x8xbf16>, vector<256x8xf32> -> vector<256x8xf32>
    %c0_4 = arith.constant 0 : index
    %c0_5 = arith.constant 0 : index
    %4 = vector.load %arg3[%c0_4, %c0_5] : memref<4x8xbf16, #tpu.memory_space<vmem>>, vector<4x8xbf16>
    %cst_6 = arith.constant dense<0.000000e+00> : vector<256x8xf32>
    %5 = tpu.matmul %1, %4, %cst_6 {dimension_numbers = #tpu.dot_dimension_numbers<[1], [0], [0], [1], [0, 0, 1, 1], [], []>} : vector<256x4xbf16>, vector<4x8xbf16>, vector<256x8xf32> -> vector<256x8xf32>
    %c0_7 = arith.constant 0 : index
    %c0_8 = arith.constant 0 : index
    %6 = vector.load %arg4[%c0_7, %c0_8] : memref<4x8xbf16, #tpu.memory_space<vmem>>, vector<4x8xbf16>
    %cst_9 = arith.constant dense<0.000000e+00> : vector<256x8xf32>
    %7 = tpu.matmul %1, %6, %cst_9 {dimension_numbers = #tpu.dot_dimension_numbers<[1], [0], [0], [1], [0, 0, 1, 1], [], []>} : vector<256x4xbf16>, vector<4x8xbf16>, vector<256x8xf32> -> vector<256x8xf32>
    %cst_10 = arith.constant 0.000000e+00 : f32
    %8 = vector.broadcast %cst_10 : f32 to vector<24x8xf32>
    %c0_11 = arith.constant 0 : index
    %c0_12 = arith.constant 0 : index
    %9 = vector.load %arg7[%c0_11, %c0_12] : memref<304x8xf32, #tpu.memory_space<vmem>>, vector<24x8xf32>
    tpu.vector_store %arg7[%c0_11, %c0_12], %8 {strides = array<i32>} : memref<304x8xf32, #tpu.memory_space<vmem>>, vector<24x8xf32>,
    %cst_13 = arith.constant 0.000000e+00 : f32
    %10 = vector.broadcast %cst_13 : f32 to vector<24x8xf32>
    %c0_14 = arith.constant 0 : index
    %c0_15 = arith.constant 0 : index
    %11 = vector.load %arg8[%c0_14, %c0_15] : memref<304x8xf32, #tpu.memory_space<vmem>>, vector<24x8xf32>
    tpu.vector_store %arg8[%c0_14, %c0_15], %10 {strides = array<i32>} : memref<304x8xf32, #tpu.memory_space<vmem>>, vector<24x8xf32>,
    %cst_16 = arith.constant 0.000000e+00 : f32
    %12 = vector.broadcast %cst_16 : f32 to vector<24x8xf32>
    %c280 = arith.constant 280 : index
    %c0_17 = arith.constant 0 : index
    %13 = vector.load %arg7[%c280, %c0_17] : memref<304x8xf32, #tpu.memory_space<vmem>>, vector<24x8xf32>
    tpu.vector_store %arg7[%c280, %c0_17], %12 {strides = array<i32>} : memref<304x8xf32, #tpu.memory_space<vmem>>, vector<24x8xf32>,
    %cst_18 = arith.constant 0.000000e+00 : f32
    %14 = vector.broadcast %cst_18 : f32 to vector<24x8xf32>
    %c280_19 = arith.constant 280 : index
    %c0_20 = arith.constant 0 : index
    %15 = vector.load %arg8[%c280_19, %c0_20] : memref<304x8xf32, #tpu.memory_space<vmem>>, vector<24x8xf32>
    tpu.vector_store %arg8[%c280_19, %c0_20], %14 {strides = array<i32>} : memref<304x8xf32, #tpu.memory_space<vmem>>, vector<24x8xf32>,
    %c24 = arith.constant 24 : index
    %c0_21 = arith.constant 0 : index
    %16 = vector.load %arg7[%c24, %c0_21] : memref<304x8xf32, #tpu.memory_space<vmem>>, vector<256x8xf32>
    tpu.vector_store %arg7[%c24, %c0_21], %5 {strides = array<i32>} : memref<304x8xf32, #tpu.memory_space<vmem>>, vector<256x8xf32>,
    %c24_22 = arith.constant 24 : index
    %c0_23 = arith.constant 0 : index
    %17 = vector.load %arg8[%c24_22, %c0_23] : memref<304x8xf32, #tpu.memory_space<vmem>>, vector<256x8xf32>
    tpu.vector_store %arg8[%c24_22, %c0_23], %7 {strides = array<i32>} : memref<304x8xf32, #tpu.memory_space<vmem>>, vector<256x8xf32>,
    %c0_24 = arith.constant 0 : index
    %c0_25 = arith.constant 0 : index
    %18 = vector.load %arg5[%c0_24, %c0_25] : memref<9x8xf32, #tpu.memory_space<vmem>>, vector<9x8xf32>
    %19 = tpu.iota {dimensions = array<i32: 0>} : vector<256x1xi32>
    %c16_i32 = arith.constant 16 : i32
    %c0_i32 = arith.constant 0 : i32
    %20 = arith.cmpi eq, %c16_i32, %c0_i32 : i32
    %c1_i32 = arith.constant 1 : i32
    %21 = arith.select %20, %c1_i32, %c16_i32 : i32
    %22 = vector.broadcast %21 : i32 to vector<256x1xi32>
    %23 = arith.remsi %19, %22 : vector<256x1xi32>
    %c0_i32_26 = arith.constant 0 : i32
    %24 = vector.broadcast %c0_i32_26 : i32 to vector<256x1xi32>
    %25 = arith.cmpi ne, %23, %24 : vector<256x1xi32>
    %c0_i32_27 = arith.constant 0 : i32
    %26 = vector.broadcast %c0_i32_27 : i32 to vector<256x1xi32>
    %27 = arith.cmpi slt, %23, %26 : vector<256x1xi32>
    %c0_i32_28 = arith.constant 0 : i32
    %28 = arith.cmpi slt, %21, %c0_i32_28 : i32
    %29 = vector.broadcast %28 : i1 to vector<256x1xi1>
    %30 = vector.broadcast %29 : vector<256x1xi1> to vector<256x1xi1>
    %31 = arith.xori %27, %30 : vector<256x1xi1>
    %32 = arith.andi %31, %25 : vector<256x1xi1>
    %33 = vector.broadcast %21 : i32 to vector<256x1xi32>
    %34 = arith.addi %23, %33 : vector<256x1xi32>
    %35 = arith.select %32, %34, %23 : vector<256x1xi1>, vector<256x1xi32>
    %c1_i32_29 = arith.constant 1 : i32
    %36 = vector.broadcast %c1_i32_29 : i32 to vector<256x1xi32>
    %37 = arith.cmpi sge, %35, %36 : vector<256x1xi32>
    %c14_i32 = arith.constant 14 : i32
    %38 = vector.broadcast %c14_i32 : i32 to vector<256x1xi32>
    %39 = arith.cmpi sle, %35, %38 : vector<256x1xi32>
    %c7 = arith.constant 7 : index
    %c0_30 = arith.constant 0 : index
    %40 = vector.load %arg7[%c7, %c0_30] : memref<304x8xf32, #tpu.memory_space<vmem>>, vector<256x8xf32>
    %cst_31 = arith.constant 0.000000e+00 : f32
    %41 = vector.shape_cast %37 : vector<256x1xi1> to vector<256x1xi1>
    %42 = vector.broadcast %41 : vector<256x1xi1> to vector<256x8xi1>
    %43 = vector.broadcast %cst_31 : f32 to vector<256x8xf32>
    %44 = arith.select %42, %40, %43 : vector<256x8xi1>, vector<256x8xf32>
    %45 = vector.extract_strided_slice %18 {offsets = [0, 0], sizes = [1, 8], strides = [1, 1]} : vector<9x8xf32> to vector<1x8xf32>
    %46 = vector.broadcast %45 : vector<1x8xf32> to vector<256x8xf32>
    %47 = arith.addf %44, %46 : vector<256x8xf32>
    %48 = arith.mulf %3, %47 : vector<256x8xf32>
    %c8 = arith.constant 8 : index
    %c0_32 = arith.constant 0 : index
    %49 = vector.load %arg7[%c8, %c0_32] : memref<304x8xf32, #tpu.memory_space<vmem>>, vector<256x8xf32>
    %50 = vector.extract_strided_slice %18 {offsets = [1, 0], sizes = [1, 8], strides = [1, 1]} : vector<9x8xf32> to vector<1x8xf32>
    %51 = vector.broadcast %50 : vector<1x8xf32> to vector<256x8xf32>
    %52 = arith.addf %49, %51 : vector<256x8xf32>
    %53 = arith.mulf %3, %52 : vector<256x8xf32>
    %54 = arith.maximumf %48, %53 : vector<256x8xf32>
    %c9 = arith.constant 9 : index
    %c0_33 = arith.constant 0 : index
    %55 = vector.load %arg7[%c9, %c0_33] : memref<304x8xf32, #tpu.memory_space<vmem>>, vector<256x8xf32>
    %cst_34 = arith.constant 0.000000e+00 : f32
    %56 = vector.shape_cast %39 : vector<256x1xi1> to vector<256x1xi1>
    %57 = vector.broadcast %56 : vector<256x1xi1> to vector<256x8xi1>
    %58 = vector.broadcast %cst_34 : f32 to vector<256x8xf32>
    %59 = arith.select %57, %55, %58 : vector<256x8xi1>, vector<256x8xf32>
    %60 = vector.extract_strided_slice %18 {offsets = [2, 0], sizes = [1, 8], strides = [1, 1]} : vector<9x8xf32> to vector<1x8xf32>
    %61 = vector.broadcast %60 : vector<1x8xf32> to vector<256x8xf32>
    %62 = arith.addf %59, %61 : vector<256x8xf32>
    %63 = arith.mulf %3, %62 : vector<256x8xf32>
    %64 = arith.maximumf %54, %63 : vector<256x8xf32>
    %c23 = arith.constant 23 : index
    %c0_35 = arith.constant 0 : index
    %65 = vector.load %arg7[%c23, %c0_35] : memref<304x8xf32, #tpu.memory_space<vmem>>, vector<256x8xf32>
    %cst_36 = arith.constant 0.000000e+00 : f32
    %66 = vector.shape_cast %37 : vector<256x1xi1> to vector<256x1xi1>
    %67 = vector.broadcast %66 : vector<256x1xi1> to vector<256x8xi1>
    %68 = vector.broadcast %cst_36 : f32 to vector<256x8xf32>
    %69 = arith.select %67, %65, %68 : vector<256x8xi1>, vector<256x8xf32>
    %70 = vector.extract_strided_slice %18 {offsets = [3, 0], sizes = [1, 8], strides = [1, 1]} : vector<9x8xf32> to vector<1x8xf32>
    %71 = vector.broadcast %70 : vector<1x8xf32> to vector<256x8xf32>
    %72 = arith.addf %69, %71 : vector<256x8xf32>
    %73 = arith.mulf %3, %72 : vector<256x8xf32>
    %74 = arith.maximumf %64, %73 : vector<256x8xf32>
    %c24_37 = arith.constant 24 : index
    %c0_38 = arith.constant 0 : index
    %75 = vector.load %arg7[%c24_37, %c0_38] : memref<304x8xf32, #tpu.memory_space<vmem>>, vector<256x8xf32>
    %76 = vector.extract_strided_slice %18 {offsets = [4, 0], sizes = [1, 8], strides = [1, 1]} : vector<9x8xf32> to vector<1x8xf32>
    %77 = vector.broadcast %76 : vector<1x8xf32> to vector<256x8xf32>
    %78 = arith.addf %75, %77 : vector<256x8xf32>
    %79 = arith.mulf %3, %78 : vector<256x8xf32>
    %80 = arith.maximumf %74, %79 : vector<256x8xf32>
    %c25 = arith.constant 25 : index
    %c0_39 = arith.constant 0 : index
    %81 = vector.load %arg7[%c25, %c0_39] : memref<304x8xf32, #tpu.memory_space<vmem>>, vector<256x8xf32>
    %cst_40 = arith.constant 0.000000e+00 : f32
    %82 = vector.shape_cast %39 : vector<256x1xi1> to vector<256x1xi1>
    %83 = vector.broadcast %82 : vector<256x1xi1> to vector<256x8xi1>
    %84 = vector.broadcast %cst_40 : f32 to vector<256x8xf32>
    %85 = arith.select %83, %81, %84 : vector<256x8xi1>, vector<256x8xf32>
    %86 = vector.extract_strided_slice %18 {offsets = [5, 0], sizes = [1, 8], strides = [1, 1]} : vector<9x8xf32> to vector<1x8xf32>
    %87 = vector.broadcast %86 : vector<1x8xf32> to vector<256x8xf32>
    %88 = arith.addf %85, %87 : vector<256x8xf32>
    %89 = arith.mulf %3, %88 : vector<256x8xf32>
    %90 = arith.maximumf %80, %89 : vector<256x8xf32>
    %c39 = arith.constant 39 : index
    %c0_41 = arith.constant 0 : index
    %91 = vector.load %arg7[%c39, %c0_41] : memref<304x8xf32, #tpu.memory_space<vmem>>, vector<256x8xf32>
    %cst_42 = arith.constant 0.000000e+00 : f32
    %92 = vector.shape_cast %37 : vector<256x1xi1> to vector<256x1xi1>
    %93 = vector.broadcast %92 : vector<256x1xi1> to vector<256x8xi1>
    %94 = vector.broadcast %cst_42 : f32 to vector<256x8xf32>
    %95 = arith.select %93, %91, %94 : vector<256x8xi1>, vector<256x8xf32>
    %96 = vector.extract_strided_slice %18 {offsets = [6, 0], sizes = [1, 8], strides = [1, 1]} : vector<9x8xf32> to vector<1x8xf32>
    %97 = vector.broadcast %96 : vector<1x8xf32> to vector<256x8xf32>
    %98 = arith.addf %95, %97 : vector<256x8xf32>
    %99 = arith.mulf %3, %98 : vector<256x8xf32>
    %100 = arith.maximumf %90, %99 : vector<256x8xf32>
    %c40 = arith.constant 40 : index
    %c0_43 = arith.constant 0 : index
    %101 = vector.load %arg7[%c40, %c0_43] : memref<304x8xf32, #tpu.memory_space<vmem>>, vector<256x8xf32>
    %102 = vector.extract_strided_slice %18 {offsets = [7, 0], sizes = [1, 8], strides = [1, 1]} : vector<9x8xf32> to vector<1x8xf32>
    %103 = vector.broadcast %102 : vector<1x8xf32> to vector<256x8xf32>
    %104 = arith.addf %101, %103 : vector<256x8xf32>
    %105 = arith.mulf %3, %104 : vector<256x8xf32>
    %106 = arith.maximumf %100, %105 : vector<256x8xf32>
    %c41 = arith.constant 41 : index
    %c0_44 = arith.constant 0 : index
    %107 = vector.load %arg7[%c41, %c0_44] : memref<304x8xf32, #tpu.memory_space<vmem>>, vector<256x8xf32>
    %cst_45 = arith.constant 0.000000e+00 : f32
    %108 = vector.shape_cast %39 : vector<256x1xi1> to vector<256x1xi1>
    %109 = vector.broadcast %108 : vector<256x1xi1> to vector<256x8xi1>
    %110 = vector.broadcast %cst_45 : f32 to vector<256x8xf32>
    %111 = arith.select %109, %107, %110 : vector<256x8xi1>, vector<256x8xf32>
    %112 = vector.extract_strided_slice %18 {offsets = [8, 0], sizes = [1, 8], strides = [1, 1]} : vector<9x8xf32> to vector<1x8xf32>
    %113 = vector.broadcast %112 : vector<1x8xf32> to vector<256x8xf32>
    %114 = arith.addf %111, %113 : vector<256x8xf32>
    %115 = arith.mulf %3, %114 : vector<256x8xf32>
    %116 = arith.maximumf %106, %115 : vector<256x8xf32>
    %cst_46 = arith.constant 0.000000e+00 : f32
    %117 = vector.broadcast %cst_46 : f32 to vector<256x8xf32>
    %cst_47 = arith.constant 0.000000e+00 : f32
    %118 = vector.broadcast %cst_47 : f32 to vector<256x8xf32>
    %c7_48 = arith.constant 7 : index
    %c0_49 = arith.constant 0 : index
    %119 = vector.load %arg7[%c7_48, %c0_49] : memref<304x8xf32, #tpu.memory_space<vmem>>, vector<256x8xf32>
    %cst_50 = arith.constant 0.000000e+00 : f32
    %120 = vector.shape_cast %37 : vector<256x1xi1> to vector<256x1xi1>
    %121 = vector.broadcast %120 : vector<256x1xi1> to vector<256x8xi1>
    %122 = vector.broadcast %cst_50 : f32 to vector<256x8xf32>
    %123 = arith.select %121, %119, %122 : vector<256x8xi1>, vector<256x8xf32>
    %124 = vector.extract_strided_slice %18 {offsets = [0, 0], sizes = [1, 8], strides = [1, 1]} : vector<9x8xf32> to vector<1x8xf32>
    %125 = vector.broadcast %124 : vector<1x8xf32> to vector<256x8xf32>
    %126 = arith.addf %123, %125 : vector<256x8xf32>
    %127 = arith.mulf %3, %126 : vector<256x8xf32>
    %128 = arith.subf %127, %116 : vector<256x8xf32>
    %129 = math.exp %128 : vector<256x8xf32>
    %130 = arith.addf %117, %129 : vector<256x8xf32>
    %c7_51 = arith.constant 7 : index
    %c0_52 = arith.constant 0 : index
    %131 = vector.load %arg8[%c7_51, %c0_52] : memref<304x8xf32, #tpu.memory_space<vmem>>, vector<256x8xf32>
    %cst_53 = arith.constant 0.000000e+00 : f32
    %132 = vector.shape_cast %37 : vector<256x1xi1> to vector<256x1xi1>
    %133 = vector.broadcast %132 : vector<256x1xi1> to vector<256x8xi1>
    %134 = vector.broadcast %cst_53 : f32 to vector<256x8xf32>
    %135 = arith.select %133, %131, %134 : vector<256x8xi1>, vector<256x8xf32>
    %136 = arith.mulf %129, %135 : vector<256x8xf32>
    %137 = arith.addf %118, %136 : vector<256x8xf32>
    %c8_54 = arith.constant 8 : index
    %c0_55 = arith.constant 0 : index
    %138 = vector.load %arg7[%c8_54, %c0_55] : memref<304x8xf32, #tpu.memory_space<vmem>>, vector<256x8xf32>
    %139 = vector.extract_strided_slice %18 {offsets = [1, 0], sizes = [1, 8], strides = [1, 1]} : vector<9x8xf32> to vector<1x8xf32>
    %140 = vector.broadcast %139 : vector<1x8xf32> to vector<256x8xf32>
    %141 = arith.addf %138, %140 : vector<256x8xf32>
    %142 = arith.mulf %3, %141 : vector<256x8xf32>
    %143 = arith.subf %142, %116 : vector<256x8xf32>
    %144 = math.exp %143 : vector<256x8xf32>
    %145 = arith.addf %130, %144 : vector<256x8xf32>
    %c8_56 = arith.constant 8 : index
    %c0_57 = arith.constant 0 : index
    %146 = vector.load %arg8[%c8_56, %c0_57] : memref<304x8xf32, #tpu.memory_space<vmem>>, vector<256x8xf32>
    %147 = arith.mulf %144, %146 : vector<256x8xf32>
    %148 = arith.addf %137, %147 : vector<256x8xf32>
    %c9_58 = arith.constant 9 : index
    %c0_59 = arith.constant 0 : index
    %149 = vector.load %arg7[%c9_58, %c0_59] : memref<304x8xf32, #tpu.memory_space<vmem>>, vector<256x8xf32>
    %cst_60 = arith.constant 0.000000e+00 : f32
    %150 = vector.shape_cast %39 : vector<256x1xi1> to vector<256x1xi1>
    %151 = vector.broadcast %150 : vector<256x1xi1> to vector<256x8xi1>
    %152 = vector.broadcast %cst_60 : f32 to vector<256x8xf32>
    %153 = arith.select %151, %149, %152 : vector<256x8xi1>, vector<256x8xf32>
    %154 = vector.extract_strided_slice %18 {offsets = [2, 0], sizes = [1, 8], strides = [1, 1]} : vector<9x8xf32> to vector<1x8xf32>
    %155 = vector.broadcast %154 : vector<1x8xf32> to vector<256x8xf32>
    %156 = arith.addf %153, %155 : vector<256x8xf32>
    %157 = arith.mulf %3, %156 : vector<256x8xf32>
    %158 = arith.subf %157, %116 : vector<256x8xf32>
    %159 = math.exp %158 : vector<256x8xf32>
    %160 = arith.addf %145, %159 : vector<256x8xf32>
    %c9_61 = arith.constant 9 : index
    %c0_62 = arith.constant 0 : index
    %161 = vector.load %arg8[%c9_61, %c0_62] : memref<304x8xf32, #tpu.memory_space<vmem>>, vector<256x8xf32>
    %cst_63 = arith.constant 0.000000e+00 : f32
    %162 = vector.shape_cast %39 : vector<256x1xi1> to vector<256x1xi1>
    %163 = vector.broadcast %162 : vector<256x1xi1> to vector<256x8xi1>
    %164 = vector.broadcast %cst_63 : f32 to vector<256x8xf32>
    %165 = arith.select %163, %161, %164 : vector<256x8xi1>, vector<256x8xf32>
    %166 = arith.mulf %159, %165 : vector<256x8xf32>
    %167 = arith.addf %148, %166 : vector<256x8xf32>
    %c23_64 = arith.constant 23 : index
    %c0_65 = arith.constant 0 : index
    %168 = vector.load %arg7[%c23_64, %c0_65] : memref<304x8xf32, #tpu.memory_space<vmem>>, vector<256x8xf32>
    %cst_66 = arith.constant 0.000000e+00 : f32
    %169 = vector.shape_cast %37 : vector<256x1xi1> to vector<256x1xi1>
    %170 = vector.broadcast %169 : vector<256x1xi1> to vector<256x8xi1>
    %171 = vector.broadcast %cst_66 : f32 to vector<256x8xf32>
    %172 = arith.select %170, %168, %171 : vector<256x8xi1>, vector<256x8xf32>
    %173 = vector.extract_strided_slice %18 {offsets = [3, 0], sizes = [1, 8], strides = [1, 1]} : vector<9x8xf32> to vector<1x8xf32>
    %174 = vector.broadcast %173 : vector<1x8xf32> to vector<256x8xf32>
    %175 = arith.addf %172, %174 : vector<256x8xf32>
    %176 = arith.mulf %3, %175 : vector<256x8xf32>
    %177 = arith.subf %176, %116 : vector<256x8xf32>
    %178 = math.exp %177 : vector<256x8xf32>
    %179 = arith.addf %160, %178 : vector<256x8xf32>
    %c23_67 = arith.constant 23 : index
    %c0_68 = arith.constant 0 : index
    %180 = vector.load %arg8[%c23_67, %c0_68] : memref<304x8xf32, #tpu.memory_space<vmem>>, vector<256x8xf32>
    %cst_69 = arith.constant 0.000000e+00 : f32
    %181 = vector.shape_cast %37 : vector<256x1xi1> to vector<256x1xi1>
    %182 = vector.broadcast %181 : vector<256x1xi1> to vector<256x8xi1>
    %183 = vector.broadcast %cst_69 : f32 to vector<256x8xf32>
    %184 = arith.select %182, %180, %183 : vector<256x8xi1>, vector<256x8xf32>
    %185 = arith.mulf %178, %184 : vector<256x8xf32>
    %186 = arith.addf %167, %185 : vector<256x8xf32>
    %c24_70 = arith.constant 24 : index
    %c0_71 = arith.constant 0 : index
    %187 = vector.load %arg7[%c24_70, %c0_71] : memref<304x8xf32, #tpu.memory_space<vmem>>, vector<256x8xf32>
    %188 = vector.extract_strided_slice %18 {offsets = [4, 0], sizes = [1, 8], strides = [1, 1]} : vector<9x8xf32> to vector<1x8xf32>
    %189 = vector.broadcast %188 : vector<1x8xf32> to vector<256x8xf32>
    %190 = arith.addf %187, %189 : vector<256x8xf32>
    %191 = arith.mulf %3, %190 : vector<256x8xf32>
    %192 = arith.subf %191, %116 : vector<256x8xf32>
    %193 = math.exp %192 : vector<256x8xf32>
    %194 = arith.addf %179, %193 : vector<256x8xf32>
    %c24_72 = arith.constant 24 : index
    %c0_73 = arith.constant 0 : index
    %195 = vector.load %arg8[%c24_72, %c0_73] : memref<304x8xf32, #tpu.memory_space<vmem>>, vector<256x8xf32>
    %196 = arith.mulf %193, %195 : vector<256x8xf32>
    %197 = arith.addf %186, %196 : vector<256x8xf32>
    %c25_74 = arith.constant 25 : index
    %c0_75 = arith.constant 0 : index
    %198 = vector.load %arg7[%c25_74, %c0_75] : memref<304x8xf32, #tpu.memory_space<vmem>>, vector<256x8xf32>
    %cst_76 = arith.constant 0.000000e+00 : f32
    %199 = vector.shape_cast %39 : vector<256x1xi1> to vector<256x1xi1>
    %200 = vector.broadcast %199 : vector<256x1xi1> to vector<256x8xi1>
    %201 = vector.broadcast %cst_76 : f32 to vector<256x8xf32>
    %202 = arith.select %200, %198, %201 : vector<256x8xi1>, vector<256x8xf32>
    %203 = vector.extract_strided_slice %18 {offsets = [5, 0], sizes = [1, 8], strides = [1, 1]} : vector<9x8xf32> to vector<1x8xf32>
    %204 = vector.broadcast %203 : vector<1x8xf32> to vector<256x8xf32>
    %205 = arith.addf %202, %204 : vector<256x8xf32>
    %206 = arith.mulf %3, %205 : vector<256x8xf32>
    %207 = arith.subf %206, %116 : vector<256x8xf32>
    %208 = math.exp %207 : vector<256x8xf32>
    %209 = arith.addf %194, %208 : vector<256x8xf32>
    %c25_77 = arith.constant 25 : index
    %c0_78 = arith.constant 0 : index
    %210 = vector.load %arg8[%c25_77, %c0_78] : memref<304x8xf32, #tpu.memory_space<vmem>>, vector<256x8xf32>
    %cst_79 = arith.constant 0.000000e+00 : f32
    %211 = vector.shape_cast %39 : vector<256x1xi1> to vector<256x1xi1>
    %212 = vector.broadcast %211 : vector<256x1xi1> to vector<256x8xi1>
    %213 = vector.broadcast %cst_79 : f32 to vector<256x8xf32>
    %214 = arith.select %212, %210, %213 : vector<256x8xi1>, vector<256x8xf32>
    %215 = arith.mulf %208, %214 : vector<256x8xf32>
    %216 = arith.addf %197, %215 : vector<256x8xf32>
    %c39_80 = arith.constant 39 : index
    %c0_81 = arith.constant 0 : index
    %217 = vector.load %arg7[%c39_80, %c0_81] : memref<304x8xf32, #tpu.memory_space<vmem>>, vector<256x8xf32>
    %cst_82 = arith.constant 0.000000e+00 : f32
    %218 = vector.shape_cast %37 : vector<256x1xi1> to vector<256x1xi1>
    %219 = vector.broadcast %218 : vector<256x1xi1> to vector<256x8xi1>
    %220 = vector.broadcast %cst_82 : f32 to vector<256x8xf32>
    %221 = arith.select %219, %217, %220 : vector<256x8xi1>, vector<256x8xf32>
    %222 = vector.extract_strided_slice %18 {offsets = [6, 0], sizes = [1, 8], strides = [1, 1]} : vector<9x8xf32> to vector<1x8xf32>
    %223 = vector.broadcast %222 : vector<1x8xf32> to vector<256x8xf32>
    %224 = arith.addf %221, %223 : vector<256x8xf32>
    %225 = arith.mulf %3, %224 : vector<256x8xf32>
    %226 = arith.subf %225, %116 : vector<256x8xf32>
    %227 = math.exp %226 : vector<256x8xf32>
    %228 = arith.addf %209, %227 : vector<256x8xf32>
    %c39_83 = arith.constant 39 : index
    %c0_84 = arith.constant 0 : index
    %229 = vector.load %arg8[%c39_83, %c0_84] : memref<304x8xf32, #tpu.memory_space<vmem>>, vector<256x8xf32>
    %cst_85 = arith.constant 0.000000e+00 : f32
    %230 = vector.shape_cast %37 : vector<256x1xi1> to vector<256x1xi1>
    %231 = vector.broadcast %230 : vector<256x1xi1> to vector<256x8xi1>
    %232 = vector.broadcast %cst_85 : f32 to vector<256x8xf32>
    %233 = arith.select %231, %229, %232 : vector<256x8xi1>, vector<256x8xf32>
    %234 = arith.mulf %227, %233 : vector<256x8xf32>
    %235 = arith.addf %216, %234 : vector<256x8xf32>
    %c40_86 = arith.constant 40 : index
    %c0_87 = arith.constant 0 : index
    %236 = vector.load %arg7[%c40_86, %c0_87] : memref<304x8xf32, #tpu.memory_space<vmem>>, vector<256x8xf32>
    %237 = vector.extract_strided_slice %18 {offsets = [7, 0], sizes = [1, 8], strides = [1, 1]} : vector<9x8xf32> to vector<1x8xf32>
    %238 = vector.broadcast %237 : vector<1x8xf32> to vector<256x8xf32>
    %239 = arith.addf %236, %238 : vector<256x8xf32>
    %240 = arith.mulf %3, %239 : vector<256x8xf32>
    %241 = arith.subf %240, %116 : vector<256x8xf32>
    %242 = math.exp %241 : vector<256x8xf32>
    %243 = arith.addf %228, %242 : vector<256x8xf32>
    %c40_88 = arith.constant 40 : index
    %c0_89 = arith.constant 0 : index
    %244 = vector.load %arg8[%c40_88, %c0_89] : memref<304x8xf32, #tpu.memory_space<vmem>>, vector<256x8xf32>
    %245 = arith.mulf %242, %244 : vector<256x8xf32>
    %246 = arith.addf %235, %245 : vector<256x8xf32>
    %c41_90 = arith.constant 41 : index
    %c0_91 = arith.constant 0 : index
    %247 = vector.load %arg7[%c41_90, %c0_91] : memref<304x8xf32, #tpu.memory_space<vmem>>, vector<256x8xf32>
    %cst_92 = arith.constant 0.000000e+00 : f32
    %248 = vector.shape_cast %39 : vector<256x1xi1> to vector<256x1xi1>
    %249 = vector.broadcast %248 : vector<256x1xi1> to vector<256x8xi1>
    %250 = vector.broadcast %cst_92 : f32 to vector<256x8xf32>
    %251 = arith.select %249, %247, %250 : vector<256x8xi1>, vector<256x8xf32>
    %252 = vector.extract_strided_slice %18 {offsets = [8, 0], sizes = [1, 8], strides = [1, 1]} : vector<9x8xf32> to vector<1x8xf32>
    %253 = vector.broadcast %252 : vector<1x8xf32> to vector<256x8xf32>
    %254 = arith.addf %251, %253 : vector<256x8xf32>
    %255 = arith.mulf %3, %254 : vector<256x8xf32>
    %256 = arith.subf %255, %116 : vector<256x8xf32>
    %257 = math.exp %256 : vector<256x8xf32>
    %258 = arith.addf %243, %257 : vector<256x8xf32>
    %c41_93 = arith.constant 41 : index
    %c0_94 = arith.constant 0 : index
    %259 = vector.load %arg8[%c41_93, %c0_94] : memref<304x8xf32, #tpu.memory_space<vmem>>, vector<256x8xf32>
    %cst_95 = arith.constant 0.000000e+00 : f32
    %260 = vector.shape_cast %39 : vector<256x1xi1> to vector<256x1xi1>
    %261 = vector.broadcast %260 : vector<256x1xi1> to vector<256x8xi1>
    %262 = vector.broadcast %cst_95 : f32 to vector<256x8xf32>
    %263 = arith.select %261, %259, %262 : vector<256x8xi1>, vector<256x8xf32>
    %264 = arith.mulf %257, %263 : vector<256x8xf32>
    %265 = arith.addf %246, %264 : vector<256x8xf32>
    %266 = tpu.reciprocal %258 {approx = true} : vector<256x8xf32> -> vector<256x8xf32>
    %267 = arith.mulf %265, %266 : vector<256x8xf32>
    %c0_96 = arith.constant 0 : index
    %c0_97 = arith.constant 0 : index
    %c0_98 = arith.constant 0 : index
    %268 = vector.load %arg6[%c0_96, %c0_97, %c0_98] : memref<1x256x8xf32, #tpu.memory_space<vmem>>, vector<1x256x8xf32>
    %269 = vector.shape_cast %268 : vector<1x256x8xf32> to vector<256x8xf32>
    %270 = vector.shape_cast %267 : vector<256x8xf32> to vector<1x256x8xf32>
    tpu.vector_store %arg6[%c0_96, %c0_97, %c0_98], %270 {strides = array<i32>} : memref<1x256x8xf32, #tpu.memory_space<vmem>>, vector<1x256x8xf32>,
    return
  }
  func.func @transform_0(%arg0: i32) -> (i32, i32, i32) {
    %c0_i32 = arith.constant 0 : i32
    %c0_i32_0 = arith.constant 0 : i32
    %c0_i32_1 = arith.constant 0 : i32
    return %arg0, %c0_i32, %c0_i32_0 : i32, i32, i32
  }
  func.func @transform_1(%arg0: i32) -> (i32, i32) {
    %c0_i32 = arith.constant 0 : i32
    %c0_i32_0 = arith.constant 0 : i32
    %c0_i32_1 = arith.constant 0 : i32
    return %c0_i32, %c0_i32_0 : i32, i32
  }
  func.func @transform_2(%arg0: i32) -> (i32, i32) {
    %c0_i32 = arith.constant 0 : i32
    %c0_i32_0 = arith.constant 0 : i32
    %c0_i32_1 = arith.constant 0 : i32
    return %c0_i32, %c0_i32_0 : i32, i32
  }
  func.func @transform_3(%arg0: i32) -> (i32, i32) {
    %c0_i32 = arith.constant 0 : i32
    %c0_i32_0 = arith.constant 0 : i32
    %c0_i32_1 = arith.constant 0 : i32
    return %c0_i32, %c0_i32_0 : i32, i32
  }
  func.func @transform_4(%arg0: i32) -> (i32, i32) {
    %c0_i32 = arith.constant 0 : i32
    %c0_i32_0 = arith.constant 0 : i32
    %c0_i32_1 = arith.constant 0 : i32
    return %c0_i32, %c0_i32_0 : i32, i32
  }
  func.func @transform_5(%arg0: i32) -> (i32, i32, i32) {
    %c0_i32 = arith.constant 0 : i32
    %c0_i32_0 = arith.constant 0 : i32
    %c0_i32_1 = arith.constant 0 : i32
    return %arg0, %c0_i32, %c0_i32_0 : i32, i32, i32
  }
}

</mosaic_0001>

<llo_original>
// kernel: tpu_custom_call.1
$region0: #{tpu_custom_call.1}
  #allocation0 [shape = 'u32[]', space=smem, size = 0x4, offset = 0x4, fixed_abs, tag = 'smem constant byte address 0x4 - core index']
  #allocation1 [shape = 'u32[144,128]{1,0:T(1,128)}', space=vmem, size = 0x12000, scoped, tag = 'internal scratch']
  #allocation2 [shape = 'f32[304,8]{1,0:T(8,128)}', space=vmem, size = 0x26000, scoped, tag = 'scratch operand']
  #allocation3 [shape = 'f32[304,8]{1,0:T(8,128)}', space=vmem, size = 0x26000, scoped, tag = 'scratch operand']
  %s0 = inlined_call_operand.vmem [shape: bf16[2,256,4], index: 0, kind: input, shape index: {}]
  %s1 = inlined_call_operand.vmem [shape: bf16[4,8], index: 1, kind: input, shape index: {}]
  %s2 = inlined_call_operand.vmem [shape: bf16[4,8], index: 2, kind: input, shape index: {}]
  %s3 = inlined_call_operand.vmem [shape: bf16[4,8], index: 3, kind: input, shape index: {}]
  %s4 = inlined_call_operand.vmem [shape: f32[9,8], index: 4, kind: input, shape index: {}]
  %s5 = inlined_call_operand.vmem [shape: f32[2,256,8], index: 5, kind: output, shape index: {}]
  %s6 = sld [smem:[#allocation0]]
  $region53: #{tpu_custom_call.1} parent=0
    _
  %s8 = ssub.s32 1, %s6
  %s9 = scalar_select 0, %s8, %s6
  loop: start=0, step=1, limit=4
  $region2: #{tpu_custom_call.1} parent=0 // loop_pre_header
    _
  $region3: #{tpu_custom_call.1} parent=0 // loop_header
    %s11 = sphi 0, %s15
    %p12 = scmp.ge.s32.totalorder %s11, 4
    %s21 = sphi 0, %s23
    %s24 = sphi 0, %s21
    %s25 = sphi 0, %s24
    %s41 = sphi 0, %s25
    %s45 = sphi 0, %s45
    %s47 = sphi 0, %s45
    %s48 = sphi 0, %s47
    %s62 = sphi 0, %s48
    %s66 = sphi 0, %s66
    %s68 = sphi 0, %s66
    %s69 = sphi 0, %s68
    %s83 = sphi 0, %s69
    %s87 = sphi 0, %s87
    %s89 = sphi 0, %s87
    %s90 = sphi 0, %s89
    %s104 = sphi 0, %s90
    %s108 = sphi 0, %s108
    %s110 = sphi 0, %s108
    %s111 = sphi 0, %s110
    %s125 = sphi 0, %s111
    %s131 = sphi 0, %s133
    %s134 = sphi 0, %s131
    %s135 = sphi 0, %s134
    %s151 = sphi 0, %s135
  $region4: #{tpu_custom_call.1} parent=0 // loop_header_branch
    %14 = sbr.rel (%p12) target = $region8
  $region5: #{tpu_custom_call.1} parent=0 // loop_body
    %s16 = ssub.s32 %s11, 1
    %s17 = ssub.s32 %s11, 2
    %s18 = sadd.s32 %s11, 1
    %s19 = ssub.s32 %s11, %s18
    %p20 = scmp.eq.s32.totalorder %s19, 0
    %s22 = sadd.s32 %s21, 1
    %s23 = scalar_select %p20, %s21, %s22
    %p26 = pneg %p20
    %p27 = scmp.eq.s32.totalorder %s11, 1
    %p28 = por %p26, %p27
    %p29 = scmp.ne.s32.totalorder %s21, %s24
    %p30 = scmp.eq.s32.totalorder %s11, 0
    %p31 = por %p29, %p30
    %p32 = scmp.ne.s32.totalorder %s21, %s24
    %p33 = scmp.eq.s32.totalorder %s16, 1
    %p34 = por %p32, %p33
    %p35 = scmp.ne.s32.totalorder %s24, %s25
    %p36 = scmp.eq.s32.totalorder %s16, 0
    %p37 = por %p35, %p36
    %p38 = scmp.ne.s32.totalorder %s24, %s25
    %p39 = scmp.eq.s32.totalorder %s17, 1
    %p40 = por %p38, %p39
    %p42 = scmp.ne.s32.totalorder %s25, %s41
    %p43 = scmp.eq.s32.totalorder %s17, 0
    %p44 = por %p42, %p43
    %s46 = sadd.s32 %s45, 1
    %p49 = scmp.eq.s32.totalorder %s11, 1
    %p50 = scmp.ne.s32.totalorder %s45, %s47
    %p51 = scmp.eq.s32.totalorder %s11, 0
    %p52 = por %p50, %p51
    %p53 = scmp.ne.s32.totalorder %s45, %s47
    %p54 = scmp.eq.s32.totalorder %s16, 1
    %p55 = por %p53, %p54
    %p56 = scmp.ne.s32.totalorder %s47, %s48
    %p57 = scmp.eq.s32.totalorder %s16, 0
    %p58 = por %p56, %p57
    %p59 = scmp.ne.s32.totalorder %s47, %s48
    %p60 = scmp.eq.s32.totalorder %s17, 1
    %p61 = por %p59, %p60
    %p63 = scmp.ne.s32.totalorder %s48, %s62
    %p64 = scmp.eq.s32.totalorder %s17, 0
    %p65 = por %p63, %p64
    %s67 = sadd.s32 %s66, 1
    %p70 = scmp.eq.s32.totalorder %s11, 1
    %p71 = scmp.ne.s32.totalorder %s66, %s68
    %p72 = scmp.eq.s32.totalorder %s11, 0
    %p73 = por %p71, %p72
    %p74 = scmp.ne.s32.totalorder %s66, %s68
    %p75 = scmp.eq.s32.totalorder %s16, 1
    %p76 = por %p74, %p75
    %p77 = scmp.ne.s32.totalorder %s68, %s69
    %p78 = scmp.eq.s32.totalorder %s16, 0
    %p79 = por %p77, %p78
    %p80 = scmp.ne.s32.totalorder %s68, %s69
    %p81 = scmp.eq.s32.totalorder %s17, 1
    %p82 = por %p80, %p81
    %p84 = scmp.ne.s32.totalorder %s69, %s83
    %p85 = scmp.eq.s32.totalorder %s17, 0
    %p86 = por %p84, %p85
    %s88 = sadd.s32 %s87, 1
    %p91 = scmp.eq.s32.totalorder %s11, 1
    %p92 = scmp.ne.s32.totalorder %s87, %s89
    %p93 = scmp.eq.s32.totalorder %s11, 0
    %p94 = por %p92, %p93
    %p95 = scmp.ne.s32.totalorder %s87, %s89
    %p96 = scmp.eq.s32.totalorder %s16, 1
    %p97 = por %p95, %p96
    %p98 = scmp.ne.s32.totalorder %s89, %s90
    %p99 = scmp.eq.s32.totalorder %s16, 0
    %p100 = por %p98, %p99
    %p101 = scmp.ne.s32.totalorder %s89, %s90
    %p102 = scmp.eq.s32.totalorder %s17, 1
    %p103 = por %p101, %p102
    %p105 = scmp.ne.s32.totalorder %s90, %s104
    %p106 = scmp.eq.s32.totalorder %s17, 0
    %p107 = por %p105, %p106
    %s109 = sadd.s32 %s108, 1
    %p112 = scmp.eq.s32.totalorder %s11, 1
    %p113 = scmp.ne.s32.totalorder %s108, %s110
    %p114 = scmp.eq.s32.totalorder %s11, 0
    %p115 = por %p113, %p114
    %p116 = scmp.ne.s32.totalorder %s108, %s110
    %p117 = scmp.eq.s32.totalorder %s16, 1
    %p118 = por %p116, %p117
    %p119 = scmp.ne.s32.totalorder %s110, %s111
    %p120 = scmp.eq.s32.totalorder %s16, 0
    %p121 = por %p119, %p120
    %p122 = scmp.ne.s32.totalorder %s110, %s111
    %p123 = scmp.eq.s32.totalorder %s17, 1
    %p124 = por %p122, %p123
    %p126 = scmp.ne.s32.totalorder %s111, %s125
    %p127 = scmp.eq.s32.totalorder %s17, 0
    %p128 = por %p126, %p127
    %s129 = ssub.s32 %s11, %s18
    %p130 = scmp.eq.s32.totalorder %s129, 0
    %s132 = sadd.s32 %s131, 1
    %s133 = scalar_select %p130, %s131, %s132
    %p136 = pneg %p130
    %p137 = scmp.eq.s32.totalorder %s11, 1
    %p138 = por %p136, %p137
    %p139 = scmp.ne.s32.totalorder %s131, %s134
    %p140 = scmp.eq.s32.totalorder %s11, 0
    %p141 = por %p139, %p140
    %p142 = scmp.ne.s32.totalorder %s131, %s134
    %p143 = scmp.eq.s32.totalorder %s16, 1
    %p144 = por %p142, %p143
    %p145 = scmp.ne.s32.totalorder %s134, %s135
    %p146 = scmp.eq.s32.totalorder %s16, 0
    %p147 = por %p145, %p146
    %p148 = scmp.ne.s32.totalorder %s134, %s135
    %p149 = scmp.eq.s32.totalorder %s17, 1
    %p150 = por %p148, %p149
    %p152 = scmp.ne.s32.totalorder %s135, %s151
    %p153 = scmp.eq.s32.totalorder %s17, 0
    %p154 = por %p152, %p153
    %p155 = scmp.le.s32.totalorder 1, %s11
    %p156 = scmp.lt.s32.totalorder %s11, 3
    %p157 = pnand %p155, %p156
    %p158 = pneg %p157
    // Predicated region
    $region9: #{tpu_custom_call.1} parent=5 // pred_check
      _
    $region10: #{tpu_custom_call.1} parent=5 // pred_check_branch
      %160 = sbr.rel (%p157) target = $region12
    $region11: #{tpu_custom_call.1} parent=5 // pred_region
      %s161 = ssub.s32 %s11, 1
      // Predicated region
      $region13: #{tpu_custom_call.1} parent=11 // pred_check
        %p162 = pneg %p58
      $region14: #{tpu_custom_call.1} parent=11 // pred_check_branch
        %164 = sbr.rel (%p162) target = $region16
      $region15: #{tpu_custom_call.1} parent=11 // pred_region
        _
      $region16: #{tpu_custom_call.1} parent=11 // pred_fallthru
        _
      // Predicated region
      $region17: #{tpu_custom_call.1} parent=11 // pred_check
        %p165 = pneg %p79
      $region18: #{tpu_custom_call.1} parent=11 // pred_check_branch
        %167 = sbr.rel (%p165) target = $region20
      $region19: #{tpu_custom_call.1} parent=11 // pred_region
        _
      $region20: #{tpu_custom_call.1} parent=11 // pred_fallthru
        _
      // Predicated region
      $region21: #{tpu_custom_call.1} parent=11 // pred_check
        %p168 = pneg %p100
      $region22: #{tpu_custom_call.1} parent=11 // pred_check_branch
        %170 = sbr.rel (%p168) target = $region24
      $region23: #{tpu_custom_call.1} parent=11 // pred_region
        _
      $region24: #{tpu_custom_call.1} parent=11 // pred_fallthru
        _
      // Predicated region
      $region25: #{tpu_custom_call.1} parent=11 // pred_check
        %p171 = pneg %p121
      $region26: #{tpu_custom_call.1} parent=11 // pred_check_branch
        %173 = sbr.rel (%p171) target = $region28
      $region27: #{tpu_custom_call.1} parent=11 // pred_region
        _
      $region28: #{tpu_custom_call.1} parent=11 // pred_fallthru
        _
    $region12: #{tpu_custom_call.1} parent=5 // pred_fallthru
      _
    %p174 = scmp.lt.s32.totalorder %s11, 2
    // Predicated region
    $region29: #{tpu_custom_call.1} parent=5 // pred_check
      %p175 = pneg %p174
    $region30: #{tpu_custom_call.1} parent=5 // pred_check_branch
      %177 = sbr.rel (%p175) target = $region32
    $region31: #{tpu_custom_call.1} parent=5 // pred_region
      // Predicated region
      $region33: #{tpu_custom_call.1} parent=31 // pred_check
        %p178 = pneg %p31
      $region34: #{tpu_custom_call.1} parent=31 // pred_check_branch
        %180 = sbr.rel (%p178) target = $region36
      $region35: #{tpu_custom_call.1} parent=31 // pred_region
        %p181 = scmp.lt.s32.totalorder %s11, 1
        %s182 = scalar_select %p181, %s11, 1
        %s183 = smul.addr %s182, 32
        %s184 = smul.addr %s183, 4
        %s185 = scalar_lea.vmem %s0, %s184
      $region36: #{tpu_custom_call.1} parent=31 // pred_fallthru
        _
    $region32: #{tpu_custom_call.1} parent=5 // pred_fallthru
      _
    %p186 = scmp.le.s32.totalorder 1, %s11
    %p187 = scmp.lt.s32.totalorder %s11, 3
    %p188 = pnand %p186, %p187
    %p189 = pneg %p188
    // Predicated region
    $region37: #{tpu_custom_call.1} parent=5 // pred_check
      _
    $region38: #{tpu_custom_call.1} parent=5 // pred_check_branch
      %191 = sbr.rel (%p188) target = $region40
    $region39: #{tpu_custom_call.1} parent=5 // pred_region
      %s192 = ssub.s32 %s11, 1
      %p193 = scmp.lt.s32.totalorder %s16, 1
      %s194 = scalar_select %p193, %s16, 1
      %s195 = smul.addr %s194, 32
      %s196 = smul.addr %s195, 4
      %s197 = scalar_lea.vmem %s0, %s196
      %p198 = pneg %p37
      %p199 = pneg %p34
      %p200 = pneg %p58
      %p201 = pneg %p55
      %p202 = pneg %p79
      %p203 = pneg %p76
      %p204 = pneg %p100
      %p205 = pneg %p97
      %p206 = pneg %p121
      %p207 = pneg %p118
      %p208 = pneg %p147
      %p209 = pneg %p144
      %p210 = scmp.lt.s32.totalorder %s16, 1
      %s211 = scalar_select %p210, %s16, 1
      %s212 = smul.addr %s211, 32
      %s213 = smul.addr %s212, 8
      %s214 = scalar_lea.vmem %s5, %s213
      %p215 = scmp.lt.s32.totalorder %s16, 1
      %s216 = scalar_select %p215, %s16, 1
      %s217 = smul.addr %s216, 32
      %s218 = smul.addr %s217, 4
      %s219 = scalar_lea.vmem %s0, %s218
      %p220 = scmp.lt.s32.totalorder %s16, 1
      %s221 = scalar_select %p220, %s16, 1
      %s222 = smul.addr %s221, 32
      %s223 = smul.addr %s222, 8
      %s224 = scalar_lea.vmem %s5, %s223
      %v226 = vld [vmem:[%s219] sm:$0xf]
      %v227 = vld [vmem:[%s219 + $0x4] sm:$0xf]
      %v228 = vld [vmem:[%s219 + $0x8] sm:$0xf]
      %v229 = vld [vmem:[%s219 + $0xc] sm:$0xf]
      %v230 = vld [vmem:[%s219 + $0x10] sm:$0xf]
      %v231 = vld [vmem:[%s219 + $0x14] sm:$0xf]
      %v232 = vld [vmem:[%s219 + $0x18] sm:$0xf]
      %v233 = vld [vmem:[%s219 + $0x1c] sm:$0xf]
      %v234 = vld [vmem:[%s219 + $0x20] sm:$0xf]
      %v235 = vld [vmem:[%s219 + $0x24] sm:$0xf]
      %v236 = vld [vmem:[%s219 + $0x28] sm:$0xf]
      %v237 = vld [vmem:[%s219 + $0x2c] sm:$0xf]
      %v238 = vld [vmem:[%s219 + $0x30] sm:$0xf]
      %v239 = vld [vmem:[%s219 + $0x34] sm:$0xf]
      %v240 = vld [vmem:[%s219 + $0x38] sm:$0xf]
      %v241 = vld [vmem:[%s219 + $0x3c] sm:$0xf]
      %v242 = vld [vmem:[%s219 + $0x40] sm:$0xf]
      %v243 = vld [vmem:[%s219 + $0x44] sm:$0xf]
      %v244 = vld [vmem:[%s219 + $0x48] sm:$0xf]
      %v245 = vld [vmem:[%s219 + $0x4c] sm:$0xf]
      %v246 = vld [vmem:[%s219 + $0x50] sm:$0xf]
      %v247 = vld [vmem:[%s219 + $0x54] sm:$0xf]
      %v248 = vld [vmem:[%s219 + $0x58] sm:$0xf]
      %v249 = vld [vmem:[%s219 + $0x5c] sm:$0xf]
      %v250 = vld [vmem:[%s219 + $0x60] sm:$0xf]
      %v251 = vld [vmem:[%s219 + $0x64] sm:$0xf]
      %v252 = vld [vmem:[%s219 + $0x68] sm:$0xf]
      %v253 = vld [vmem:[%s219 + $0x6c] sm:$0xf]
      %v254 = vld [vmem:[%s219 + $0x70] sm:$0xf]
      %v255 = vld [vmem:[%s219 + $0x74] sm:$0xf]
      %v256 = vld [vmem:[%s219 + $0x78] sm:$0xf]
      %v257 = vld [vmem:[%s219 + $0x7c] sm:$0xf]
      %v258 = vld [vmem:[%s1] sm:$0x3]
      %v291 = vunpack.c.l.b16 %v226
      %v292 = vunpack.c.l.b16 %v227
      %v293 = vunpack.c.l.b16 %v228
      %v294 = vunpack.c.l.b16 %v229
      %v295 = vunpack.c.l.b16 %v230
      %v296 = vunpack.c.l.b16 %v231
      %v297 = vunpack.c.l.b16 %v232
      %v298 = vunpack.c.l.b16 %v233
      %v299 = vunpack.c.l.b16 %v234
      %v300 = vunpack.c.l.b16 %v235
      %v301 = vunpack.c.l.b16 %v236
      %v302 = vunpack.c.l.b16 %v237
      %v303 = vunpack.c.l.b16 %v238
      %v304 = vunpack.c.l.b16 %v239
      %v305 = vunpack.c.l.b16 %v240
      %v306 = vunpack.c.l.b16 %v241
      %v307 = vunpack.c.l.b16 %v242
      %v308 = vunpack.c.l.b16 %v243
      %v309 = vunpack.c.l.b16 %v244
      %v310 = vunpack.c.l.b16 %v245
      %v311 = vunpack.c.l.b16 %v246
      %v312 = vunpack.c.l.b16 %v247
      %v313 = vunpack.c.l.b16 %v248
      %v314 = vunpack.c.l.b16 %v249
      %v315 = vunpack.c.l.b16 %v250
      %v316 = vunpack.c.l.b16 %v251
      %v317 = vunpack.c.l.b16 %v252
      %v318 = vunpack.c.l.b16 %v253
      %v319 = vunpack.c.l.b16 %v254
      %v320 = vunpack.c.l.b16 %v255
      %v321 = vunpack.c.l.b16 %v256
      %v322 = vunpack.c.l.b16 %v257
      %v323 = vpack.c.b16 %v292, %v291
      %v324 = vpack.c.b16 %v294, %v293
      %v325 = vpack.c.b16 %v296, %v295
      %v326 = vpack.c.b16 %v298, %v297
      %v327 = vpack.c.b16 %v300, %v299
      %v328 = vpack.c.b16 %v302, %v301
      %v329 = vpack.c.b16 %v304, %v303
      %v330 = vpack.c.b16 %v306, %v305
      %v331 = vpack.c.b16 %v308, %v307
      %v332 = vpack.c.b16 %v310, %v309
      %v333 = vpack.c.b16 %v312, %v311
      %v334 = vpack.c.b16 %v314, %v313
      %v335 = vpack.c.b16 %v316, %v315
      %v336 = vpack.c.b16 %v318, %v317
      %v337 = vpack.c.b16 %v320, %v319
      %v338 = vpack.c.b16 %v322, %v321
      %vm339 = vcmask 31744
      %v341 = vsel %vm339, %v323, 0
      %v344 = vsel %vm339, %v324, 0
      %v347 = vsel %vm339, %v325, 0
      %v350 = vsel %vm339, %v326, 0
      %v353 = vsel %vm339, %v327, 0
      %v356 = vsel %vm339, %v328, 0
      %v359 = vsel %vm339, %v329, 0
      %v362 = vsel %vm339, %v330, 0
      %v365 = vsel %vm339, %v331, 0
      %v368 = vsel %vm339, %v332, 0
      %v371 = vsel %vm339, %v333, 0
      %v374 = vsel %vm339, %v334, 0
      %v377 = vsel %vm339, %v335, 0
      %v380 = vsel %vm339, %v336, 0
      %v383 = vsel %vm339, %v337, 0
      %v386 = vsel %vm339, %v338, 0
      %vm388 = vcmask 1041408
      %v390 = vsel %vm388, %v258, 0
      %392 = vmatprep.subr.bf16.mxu0 0
      %393 = vmatpush1.bf16.msra.mxu0 0
      %394 = vmatprep.subr.bf16.mxu0 0
      %395 = vmatpush1.bf16.msra.mxu0 0
      %396 = vmatprep.subr.bf16.mxu0 0
      %397 = vmatpush1.bf16.msra.mxu0 0
      %398 = vmatprep.subr.bf16.mxu0 0
      %399 = vmatpush1.bf16.msra.mxu0 0
      %400 = vmatprep.subr.bf16.mxu0 0
      %401 = vmatpush1.bf16.msra.mxu0 0
      %402 = vmatprep.subr.bf16.mxu0 0
      %403 = vmatpush1.bf16.msra.mxu0 0
      %404 = vmatprep.subr.bf16.mxu0 0
      %405 = vmatpush1.bf16.msra.mxu0 0
      %406 = vmatprep.subr.bf16.mxu0 0
      %407 = vmatpush1.bf16.msra.mxu0 %v390
      %408 = vmatprep.subr.bf16.mxu0 0
      %409 = vmatpush2.bf16.msra.mxu0 0
      %410 = vmatprep.subr.bf16.mxu0 0
      %411 = vmatpush2.bf16.msra.mxu0 0
      %412 = vmatprep.subr.bf16.mxu0 0
      %413 = vmatpush2.bf16.msra.mxu0 0
      %414 = vmatprep.subr.bf16.mxu0 0
      %415 = vmatpush2.bf16.msra.mxu0 0
      %416 = vmatprep.subr.bf16.mxu0 0
      %417 = vmatpush2.bf16.msra.mxu0 0
      %418 = vmatprep.subr.bf16.mxu0 0
      %419 = vmatpush2.bf16.msra.mxu0 0
      %420 = vmatprep.subr.bf16.mxu0 0
      %421 = vmatpush2.bf16.msra.mxu0 0
      %422 = vmatprep.subr.bf16.mxu0 0
      %423 = vmatpush2.bf16.msra.mxu0 0
      %424 = vmatprep.mubr.bf16.mxu0 0
      %425 = vmatmul.mubr.bf16.gmra.mxu0 %v341
      %v426 = vpop.f32.mrf.mxu0
      %v427 = vadd.f32 0.0, %v426
      %v428 = vpop.f32.mrf.mxu0
      %v429 = vpop.f32.mrf.mxu0
      %v430 = vadd.f32 0.0, %v429
      %v431 = vpop.f32.mrf.mxu0
      %432 = vmatprep.mubr.bf16.mxu0 0
      %433 = vmatmul.mubr.bf16.gmra.mxu0 %v344
      %v434 = vpop.f32.mrf.mxu0
      %v435 = vadd.f32 0.0, %v434
      %v436 = vpop.f32.mrf.mxu0
      %v437 = vpop.f32.mrf.mxu0
      %v438 = vadd.f32 0.0, %v437
      %v439 = vpop.f32.mrf.mxu0
      %440 = vmatprep.mubr.bf16.mxu0 0
      %441 = vmatmul.mubr.bf16.gmra.mxu0 %v347
      %v442 = vpop.f32.mrf.mxu0
      %v443 = vadd.f32 0.0, %v442
      %v444 = vpop.f32.mrf.mxu0
      %v445 = vpop.f32.mrf.mxu0
      %v446 = vadd.f32 0.0, %v445
      %v447 = vpop.f32.mrf.mxu0
      %448 = vmatprep.mubr.bf16.mxu0 0
      %449 = vmatmul.mubr.bf16.gmra.mxu0 %v350
      %v450 = vpop.f32.mrf.mxu0
      %v451 = vadd.f32 0.0, %v450
      %v452 = vpop.f32.mrf.mxu0
      %v453 = vpop.f32.mrf.mxu0
      %v454 = vadd.f32 0.0, %v453
      %v455 = vpop.f32.mrf.mxu0
      %456 = vmatprep.mubr.bf16.mxu0 0
      %457 = vmatmul.mubr.bf16.gmra.mxu0 %v353
      %v458 = vpop.f32.mrf.mxu0
      %v459 = vadd.f32 0.0, %v458
      %v460 = vpop.f32.mrf.mxu0
      %v461 = vpop.f32.mrf.mxu0
      %v462 = vadd.f32 0.0, %v461
      %v463 = vpop.f32.mrf.mxu0
      %464 = vmatprep.mubr.bf16.mxu0 0
      %465 = vmatmul.mubr.bf16.gmra.mxu0 %v356
      %v466 = vpop.f32.mrf.mxu0
      %v467 = vadd.f32 0.0, %v466
      %v468 = vpop.f32.mrf.mxu0
      %v469 = vpop.f32.mrf.mxu0
      %v470 = vadd.f32 0.0, %v469
      %v471 = vpop.f32.mrf.mxu0
      %472 = vmatprep.mubr.bf16.mxu0 0
      %473 = vmatmul.mubr.bf16.gmra.mxu0 %v359
      %v474 = vpop.f32.mrf.mxu0
      %v475 = vadd.f32 0.0, %v474
      %v476 = vpop.f32.mrf.mxu0
      %v477 = vpop.f32.mrf.mxu0
      %v478 = vadd.f32 0.0, %v477
      %v479 = vpop.f32.mrf.mxu0
      %480 = vmatprep.mubr.bf16.mxu0 0
      %481 = vmatmul.mubr.bf16.gmra.mxu0 %v362
      %v482 = vpop.f32.mrf.mxu0
      %v483 = vadd.f32 0.0, %v482
      %v484 = vpop.f32.mrf.mxu0
      %v485 = vpop.f32.mrf.mxu0
      %v486 = vadd.f32 0.0, %v485
      %v487 = vpop.f32.mrf.mxu0
      %488 = vmatprep.mubr.bf16.mxu0 0
      %489 = vmatmul.mubr.bf16.gmra.mxu0 %v365
      %v490 = vpop.f32.mrf.mxu0
      %v491 = vadd.f32 0.0, %v490
      %v492 = vpop.f32.mrf.mxu0
      %v493 = vpop.f32.mrf.mxu0
      %v494 = vadd.f32 0.0, %v493
      %v495 = vpop.f32.mrf.mxu0
      %496 = vmatprep.mubr.bf16.mxu0 0
      %497 = vmatmul.mubr.bf16.gmra.mxu0 %v368
      %v498 = vpop.f32.mrf.mxu0
      %v499 = vadd.f32 0.0, %v498
      %v500 = vpop.f32.mrf.mxu0
      %v501 = vpop.f32.mrf.mxu0
      %v502 = vadd.f32 0.0, %v501
      %v503 = vpop.f32.mrf.mxu0
      %504 = vmatprep.mubr.bf16.mxu0 0
      %505 = vmatmul.mubr.bf16.gmra.mxu0 %v371
      %v506 = vpop.f32.mrf.mxu0
      %v507 = vadd.f32 0.0, %v506
      %v508 = vpop.f32.mrf.mxu0
      %v509 = vpop.f32.mrf.mxu0
      %v510 = vadd.f32 0.0, %v509
      %v511 = vpop.f32.mrf.mxu0
      %512 = vmatprep.mubr.bf16.mxu0 0
      %513 = vmatmul.mubr.bf16.gmra.mxu0 %v374
      %v514 = vpop.f32.mrf.mxu0
      %v515 = vadd.f32 0.0, %v514
      %v516 = vpop.f32.mrf.mxu0
      %v517 = vpop.f32.mrf.mxu0
      %v518 = vadd.f32 0.0, %v517
      %v519 = vpop.f32.mrf.mxu0
      %520 = vmatprep.mubr.bf16.mxu0 0
      %521 = vmatmul.mubr.bf16.gmra.mxu0 %v377
      %v522 = vpop.f32.mrf.mxu0
      %v523 = vadd.f32 0.0, %v522
      %v524 = vpop.f32.mrf.mxu0
      %v525 = vpop.f32.mrf.mxu0
      %v526 = vadd.f32 0.0, %v525
      %v527 = vpop.f32.mrf.mxu0
      %528 = vmatprep.mubr.bf16.mxu0 0
      %529 = vmatmul.mubr.bf16.gmra.mxu0 %v380
      %v530 = vpop.f32.mrf.mxu0
      %v531 = vadd.f32 0.0, %v530
      %v532 = vpop.f32.mrf.mxu0
      %v533 = vpop.f32.mrf.mxu0
      %v534 = vadd.f32 0.0, %v533
      %v535 = vpop.f32.mrf.mxu0
      %536 = vmatprep.mubr.bf16.mxu0 0
      %537 = vmatmul.mubr.bf16.gmra.mxu0 %v383
      %v538 = vpop.f32.mrf.mxu0
      %v539 = vadd.f32 0.0, %v538
      %v540 = vpop.f32.mrf.mxu0
      %v541 = vpop.f32.mrf.mxu0
      %v542 = vadd.f32 0.0, %v541
      %v543 = vpop.f32.mrf.mxu0
      %544 = vmatprep.mubr.bf16.mxu0 0
      %545 = vmatmul.mubr.bf16.gmra.mxu0 %v386
      %v546 = vpop.f32.mrf.mxu0
      %v547 = vadd.f32 0.0, %v546
      %v548 = vpop.f32.mrf.mxu0
      %v549 = vpop.f32.mrf.mxu0
      %v550 = vadd.f32 0.0, %v549
      %v551 = vpop.f32.mrf.mxu0
      %552 = vdwg.mxu0
      %v553 = vld [vmem:[%s2] sm:$0x3]
      %v555 = vsel %vm388, %v553, 0
      %557 = vmatprep.subr.bf16.mxu0 0
      %558 = vmatpush1.bf16.msra.mxu0 0
      %559 = vmatprep.subr.bf16.mxu0 0
      %560 = vmatpush1.bf16.msra.mxu0 0
      %561 = vmatprep.subr.bf16.mxu0 0
      %562 = vmatpush1.bf16.msra.mxu0 0
      %563 = vmatprep.subr.bf16.mxu0 0
      %564 = vmatpush1.bf16.msra.mxu0 0
      %565 = vmatprep.subr.bf16.mxu0 0
      %566 = vmatpush1.bf16.msra.mxu0 0
      %567 = vmatprep.subr.bf16.mxu0 0
      %568 = vmatpush1.bf16.msra.mxu0 0
      %569 = vmatprep.subr.bf16.mxu0 0
      %570 = vmatpush1.bf16.msra.mxu0 0
      %571 = vmatprep.subr.bf16.mxu0 0
      %572 = vmatpush1.bf16.msra.mxu0 %v555
      %573 = vmatprep.subr.bf16.mxu0 0
      %574 = vmatpush2.bf16.msra.mxu0 0
      %575 = vmatprep.subr.bf16.mxu0 0
      %576 = vmatpush2.bf16.msra.mxu0 0
      %577 = vmatprep.subr.bf16.mxu0 0
      %578 = vmatpush2.bf16.msra.mxu0 0
      %579 = vmatprep.subr.bf16.mxu0 0
      %580 = vmatpush2.bf16.msra.mxu0 0
      %581 = vmatprep.subr.bf16.mxu0 0
      %582 = vmatpush2.bf16.msra.mxu0 0
      %583 = vmatprep.subr.bf16.mxu0 0
      %584 = vmatpush2.bf16.msra.mxu0 0
      %585 = vmatprep.subr.bf16.mxu0 0
      %586 = vmatpush2.bf16.msra.mxu0 0
      %587 = vmatprep.subr.bf16.mxu0 0
      %588 = vmatpush2.bf16.msra.mxu0 0
      %589 = vmatprep.mubr.bf16.mxu0 0
      %590 = vmatmul.mubr.bf16.gmra.mxu0 %v341
      %v591 = vpop.f32.mrf.mxu0
      %v592 = vadd.f32 0.0, %v591
      %v593 = vpop.f32.mrf.mxu0
      %v594 = vpop.f32.mrf.mxu0
      %v595 = vadd.f32 0.0, %v594
      %v596 = vpop.f32.mrf.mxu0
      %597 = vmatprep.mubr.bf16.mxu0 0
      %598 = vmatmul.mubr.bf16.gmra.mxu0 %v344
      %v599 = vpop.f32.mrf.mxu0
      %v600 = vadd.f32 0.0, %v599
      %v601 = vpop.f32.mrf.mxu0
      %v602 = vpop.f32.mrf.mxu0
      %v603 = vadd.f32 0.0, %v602
      %v604 = vpop.f32.mrf.mxu0
      %605 = vmatprep.mubr.bf16.mxu0 0
      %606 = vmatmul.mubr.bf16.gmra.mxu0 %v347
      %v607 = vpop.f32.mrf.mxu0
      %v608 = vadd.f32 0.0, %v607
      %v609 = vpop.f32.mrf.mxu0
      %v610 = vpop.f32.mrf.mxu0
      %v611 = vadd.f32 0.0, %v610
      %v612 = vpop.f32.mrf.mxu0
      %613 = vmatprep.mubr.bf16.mxu0 0
      %614 = vmatmul.mubr.bf16.gmra.mxu0 %v350
      %v615 = vpop.f32.mrf.mxu0
      %v616 = vadd.f32 0.0, %v615
      %v617 = vpop.f32.mrf.mxu0
      %v618 = vpop.f32.mrf.mxu0
      %v619 = vadd.f32 0.0, %v618
      %v620 = vpop.f32.mrf.mxu0
      %621 = vmatprep.mubr.bf16.mxu0 0
      %622 = vmatmul.mubr.bf16.gmra.mxu0 %v353
      %v623 = vpop.f32.mrf.mxu0
      %v624 = vadd.f32 0.0, %v623
      %v625 = vpop.f32.mrf.mxu0
      %v626 = vpop.f32.mrf.mxu0
      %v627 = vadd.f32 0.0, %v626
      %v628 = vpop.f32.mrf.mxu0
      %629 = vmatprep.mubr.bf16.mxu0 0
      %630 = vmatmul.mubr.bf16.gmra.mxu0 %v356
      %v631 = vpop.f32.mrf.mxu0
      %v632 = vadd.f32 0.0, %v631
      %v633 = vpop.f32.mrf.mxu0
      %v634 = vpop.f32.mrf.mxu0
      %v635 = vadd.f32 0.0, %v634
      %v636 = vpop.f32.mrf.mxu0
      %637 = vmatprep.mubr.bf16.mxu0 0
      %638 = vmatmul.mubr.bf16.gmra.mxu0 %v359
      %v639 = vpop.f32.mrf.mxu0
      %v640 = vadd.f32 0.0, %v639
      %v641 = vpop.f32.mrf.mxu0
      %v642 = vpop.f32.mrf.mxu0
      %v643 = vadd.f32 0.0, %v642
      %v644 = vpop.f32.mrf.mxu0
      %645 = vmatprep.mubr.bf16.mxu0 0
      %646 = vmatmul.mubr.bf16.gmra.mxu0 %v362
      %v647 = vpop.f32.mrf.mxu0
      %v648 = vadd.f32 0.0, %v647
      %v649 = vpop.f32.mrf.mxu0
      %v650 = vpop.f32.mrf.mxu0
      %v651 = vadd.f32 0.0, %v650
      %v652 = vpop.f32.mrf.mxu0
      %653 = vmatprep.mubr.bf16.mxu0 0
      %654 = vmatmul.mubr.bf16.gmra.mxu0 %v365
      %v655 = vpop.f32.mrf.mxu0
      %v656 = vadd.f32 0.0, %v655
      %v657 = vpop.f32.mrf.mxu0
      %v658 = vpop.f32.mrf.mxu0
      %v659 = vadd.f32 0.0, %v658
      %v660 = vpop.f32.mrf.mxu0
      %661 = vmatprep.mubr.bf16.mxu0 0
      %662 = vmatmul.mubr.bf16.gmra.mxu0 %v368
      %v663 = vpop.f32.mrf.mxu0
      %v664 = vadd.f32 0.0, %v663
      %v665 = vpop.f32.mrf.mxu0
      %v666 = vpop.f32.mrf.mxu0
      %v667 = vadd.f32 0.0, %v666
      %v668 = vpop.f32.mrf.mxu0
      %669 = vmatprep.mubr.bf16.mxu0 0
      %670 = vmatmul.mubr.bf16.gmra.mxu0 %v371
      %v671 = vpop.f32.mrf.mxu0
      %v672 = vadd.f32 0.0, %v671
      %v673 = vpop.f32.mrf.mxu0
      %v674 = vpop.f32.mrf.mxu0
      %v675 = vadd.f32 0.0, %v674
      %v676 = vpop.f32.mrf.mxu0
      %677 = vmatprep.mubr.bf16.mxu0 0
      %678 = vmatmul.mubr.bf16.gmra.mxu0 %v374
      %v679 = vpop.f32.mrf.mxu0
      %v680 = vadd.f32 0.0, %v679
      %v681 = vpop.f32.mrf.mxu0
      %v682 = vpop.f32.mrf.mxu0
      %v683 = vadd.f32 0.0, %v682
      %v684 = vpop.f32.mrf.mxu0
      %685 = vmatprep.mubr.bf16.mxu0 0
      %686 = vmatmul.mubr.bf16.gmra.mxu0 %v377
      %v687 = vpop.f32.mrf.mxu0
      %v688 = vadd.f32 0.0, %v687
      %v689 = vpop.f32.mrf.mxu0
      %v690 = vpop.f32.mrf.mxu0
      %v691 = vadd.f32 0.0, %v690
      %v692 = vpop.f32.mrf.mxu0
      %693 = vmatprep.mubr.bf16.mxu0 0
      %694 = vmatmul.mubr.bf16.gmra.mxu0 %v380
      %v695 = vpop.f32.mrf.mxu0
      %v696 = vadd.f32 0.0, %v695
      %v697 = vpop.f32.mrf.mxu0
      %v698 = vpop.f32.mrf.mxu0
      %v699 = vadd.f32 0.0, %v698
      %v700 = vpop.f32.mrf.mxu0
      %701 = vmatprep.mubr.bf16.mxu0 0
      %702 = vmatmul.mubr.bf16.gmra.mxu0 %v383
      %v703 = vpop.f32.mrf.mxu0
      %v704 = vadd.f32 0.0, %v703
      %v705 = vpop.f32.mrf.mxu0
      %v706 = vpop.f32.mrf.mxu0
      %v707 = vadd.f32 0.0, %v706
      %v708 = vpop.f32.mrf.mxu0
      %709 = vmatprep.mubr.bf16.mxu0 0
      %710 = vmatmul.mubr.bf16.gmra.mxu0 %v386
      %v711 = vpop.f32.mrf.mxu0
      %v712 = vadd.f32 0.0, %v711
      %v713 = vpop.f32.mrf.mxu0
      %v714 = vpop.f32.mrf.mxu0
      %v715 = vadd.f32 0.0, %v714
      %v716 = vpop.f32.mrf.mxu0
      %717 = vdwg.mxu0
      %v718 = vld [vmem:[%s3] sm:$0x3]
      %v720 = vsel %vm388, %v718, 0
      %722 = vmatprep.subr.bf16.mxu0 0
      %723 = vmatpush1.bf16.msra.mxu0 0
      %724 = vmatprep.subr.bf16.mxu0 0
      %725 = vmatpush1.bf16.msra.mxu0 0
      %726 = vmatprep.subr.bf16.mxu0 0
      %727 = vmatpush1.bf16.msra.mxu0 0
      %728 = vmatprep.subr.bf16.mxu0 0
      %729 = vmatpush1.bf16.msra.mxu0 0
      %730 = vmatprep.subr.bf16.mxu0 0
      %731 = vmatpush1.bf16.msra.mxu0 0
      %732 = vmatprep.subr.bf16.mxu0 0
      %733 = vmatpush1.bf16.msra.mxu0 0
      %734 = vmatprep.subr.bf16.mxu0 0
      %735 = vmatpush1.bf16.msra.mxu0 0
      %736 = vmatprep.subr.bf16.mxu0 0
      %737 = vmatpush1.bf16.msra.mxu0 %v720
      %738 = vmatprep.subr.bf16.mxu0 0
      %739 = vmatpush2.bf16.msra.mxu0 0
      %740 = vmatprep.subr.bf16.mxu0 0
      %741 = vmatpush2.bf16.msra.mxu0 0
      %742 = vmatprep.subr.bf16.mxu0 0
      %743 = vmatpush2.bf16.msra.mxu0 0
      %744 = vmatprep.subr.bf16.mxu0 0
      %745 = vmatpush2.bf16.msra.mxu0 0
      %746 = vmatprep.subr.bf16.mxu0 0
      %747 = vmatpush2.bf16.msra.mxu0 0
      %748 = vmatprep.subr.bf16.mxu0 0
      %749 = vmatpush2.bf16.msra.mxu0 0
      %750 = vmatprep.subr.bf16.mxu0 0
      %751 = vmatpush2.bf16.msra.mxu0 0
      %752 = vmatprep.subr.bf16.mxu0 0
      %753 = vmatpush2.bf16.msra.mxu0 0
      %754 = vmatprep.mubr.bf16.mxu0 0
      %755 = vmatmul.mubr.bf16.gmra.mxu0 %v341
      %v756 = vpop.f32.mrf.mxu0
      %v757 = vadd.f32 0.0, %v756
      %v758 = vpop.f32.mrf.mxu0
      %v759 = vpop.f32.mrf.mxu0
      %v760 = vadd.f32 0.0, %v759
      %v761 = vpop.f32.mrf.mxu0
      %762 = vmatprep.mubr.bf16.mxu0 0
      %763 = vmatmul.mubr.bf16.gmra.mxu0 %v344
      %v764 = vpop.f32.mrf.mxu0
      %v765 = vadd.f32 0.0, %v764
      %v766 = vpop.f32.mrf.mxu0
      %v767 = vpop.f32.mrf.mxu0
      %v768 = vadd.f32 0.0, %v767
      %v769 = vpop.f32.mrf.mxu0
      %770 = vmatprep.mubr.bf16.mxu0 0
      %771 = vmatmul.mubr.bf16.gmra.mxu0 %v347
      %v772 = vpop.f32.mrf.mxu0
      %v773 = vadd.f32 0.0, %v772
      %v774 = vpop.f32.mrf.mxu0
      %v775 = vpop.f32.mrf.mxu0
      %v776 = vadd.f32 0.0, %v775
      %v777 = vpop.f32.mrf.mxu0
      %778 = vmatprep.mubr.bf16.mxu0 0
      %779 = vmatmul.mubr.bf16.gmra.mxu0 %v350
      %v780 = vpop.f32.mrf.mxu0
      %v781 = vadd.f32 0.0, %v780
      %v782 = vpop.f32.mrf.mxu0
      %v783 = vpop.f32.mrf.mxu0
      %v784 = vadd.f32 0.0, %v783
      %v785 = vpop.f32.mrf.mxu0
      %786 = vmatprep.mubr.bf16.mxu0 0
      %787 = vmatmul.mubr.bf16.gmra.mxu0 %v353
      %v788 = vpop.f32.mrf.mxu0
      %v789 = vadd.f32 0.0, %v788
      %v790 = vpop.f32.mrf.mxu0
      %v791 = vpop.f32.mrf.mxu0
      %v792 = vadd.f32 0.0, %v791
      %v793 = vpop.f32.mrf.mxu0
      %794 = vmatprep.mubr.bf16.mxu0 0
      %795 = vmatmul.mubr.bf16.gmra.mxu0 %v356
      %v796 = vpop.f32.mrf.mxu0
      %v797 = vadd.f32 0.0, %v796
      %v798 = vpop.f32.mrf.mxu0
      %v799 = vpop.f32.mrf.mxu0
      %v800 = vadd.f32 0.0, %v799
      %v801 = vpop.f32.mrf.mxu0
      %802 = vmatprep.mubr.bf16.mxu0 0
      %803 = vmatmul.mubr.bf16.gmra.mxu0 %v359
      %v804 = vpop.f32.mrf.mxu0
      %v805 = vadd.f32 0.0, %v804
      %v806 = vpop.f32.mrf.mxu0
      %v807 = vpop.f32.mrf.mxu0
      %v808 = vadd.f32 0.0, %v807
      %v809 = vpop.f32.mrf.mxu0
      %810 = vmatprep.mubr.bf16.mxu0 0
      %811 = vmatmul.mubr.bf16.gmra.mxu0 %v362
      %v812 = vpop.f32.mrf.mxu0
      %v813 = vadd.f32 0.0, %v812
      %v814 = vpop.f32.mrf.mxu0
      %v815 = vpop.f32.mrf.mxu0
      %v816 = vadd.f32 0.0, %v815
      %v817 = vpop.f32.mrf.mxu0
      %818 = vmatprep.mubr.bf16.mxu0 0
      %819 = vmatmul.mubr.bf16.gmra.mxu0 %v365
      %v820 = vpop.f32.mrf.mxu0
      %v821 = vadd.f32 0.0, %v820
      %v822 = vpop.f32.mrf.mxu0
      %v823 = vpop.f32.mrf.mxu0
      %v824 = vadd.f32 0.0, %v823
      %v825 = vpop.f32.mrf.mxu0
      %826 = vmatprep.mubr.bf16.mxu0 0
      %827 = vmatmul.mubr.bf16.gmra.mxu0 %v368
      %v828 = vpop.f32.mrf.mxu0
      %v829 = vadd.f32 0.0, %v828
      %v830 = vpop.f32.mrf.mxu0
      %v831 = vpop.f32.mrf.mxu0
      %v832 = vadd.f32 0.0, %v831
      %v833 = vpop.f32.mrf.mxu0
      %834 = vmatprep.mubr.bf16.mxu0 0
      %835 = vmatmul.mubr.bf16.gmra.mxu0 %v371
      %v836 = vpop.f32.mrf.mxu0
      %v837 = vadd.f32 0.0, %v836
      %v838 = vpop.f32.mrf.mxu0
      %v839 = vpop.f32.mrf.mxu0
      %v840 = vadd.f32 0.0, %v839
      %v841 = vpop.f32.mrf.mxu0
      %842 = vmatprep.mubr.bf16.mxu0 0
      %843 = vmatmul.mubr.bf16.gmra.mxu0 %v374
      %v844 = vpop.f32.mrf.mxu0
      %v845 = vadd.f32 0.0, %v844
      %v846 = vpop.f32.mrf.mxu0
      %v847 = vpop.f32.mrf.mxu0
      %v848 = vadd.f32 0.0, %v847
      %v849 = vpop.f32.mrf.mxu0
      %850 = vmatprep.mubr.bf16.mxu0 0
      %851 = vmatmul.mubr.bf16.gmra.mxu0 %v377
      %v852 = vpop.f32.mrf.mxu0
      %v853 = vadd.f32 0.0, %v852
      %v854 = vpop.f32.mrf.mxu0
      %v855 = vpop.f32.mrf.mxu0
      %v856 = vadd.f32 0.0, %v855
      %v857 = vpop.f32.mrf.mxu0
      %858 = vmatprep.mubr.bf16.mxu0 0
      %859 = vmatmul.mubr.bf16.gmra.mxu0 %v380
      %v860 = vpop.f32.mrf.mxu0
      %v861 = vadd.f32 0.0, %v860
      %v862 = vpop.f32.mrf.mxu0
      %v863 = vpop.f32.mrf.mxu0
      %v864 = vadd.f32 0.0, %v863
      %v865 = vpop.f32.mrf.mxu0
      %866 = vmatprep.mubr.bf16.mxu0 0
      %867 = vmatmul.mubr.bf16.gmra.mxu0 %v383
      %v868 = vpop.f32.mrf.mxu0
      %v869 = vadd.f32 0.0, %v868
      %v870 = vpop.f32.mrf.mxu0
      %v871 = vpop.f32.mrf.mxu0
      %v872 = vadd.f32 0.0, %v871
      %v873 = vpop.f32.mrf.mxu0
      %874 = vmatprep.mubr.bf16.mxu0 0
      %875 = vmatmul.mubr.bf16.gmra.mxu0 %v386
      %v876 = vpop.f32.mrf.mxu0
      %v877 = vadd.f32 0.0, %v876
      %v878 = vpop.f32.mrf.mxu0
      %v879 = vpop.f32.mrf.mxu0
      %v880 = vadd.f32 0.0, %v879
      %v881 = vpop.f32.mrf.mxu0
      %882 = vdwg.mxu0
      %vm883 = vcmask 64512
      %884 = vst.msk [vmem:[#allocation2] sm:$0xff] %vm883, 0.0
      %885 = vst.msk [vmem:[#allocation2 + $0x8] sm:$0xff] %vm883, 0.0
      %886 = vst.msk [vmem:[#allocation2 + $0x10] sm:$0xff] %vm883, 0.0
      %887 = vst.msk [vmem:[#allocation3] sm:$0xff] %vm883, 0.0
      %888 = vst.msk [vmem:[#allocation3 + $0x8] sm:$0xff] %vm883, 0.0
      %889 = vst.msk [vmem:[#allocation3 + $0x10] sm:$0xff] %vm883, 0.0
      %890 = vst.msk [vmem:[#allocation2 + $0x118] sm:$0xff] %vm883, 0.0
      %891 = vst.msk [vmem:[#allocation2 + $0x120] sm:$0xff] %vm883, 0.0
      %892 = vst.msk [vmem:[#allocation2 + $0x128] sm:$0xff] %vm883, 0.0
      %893 = vst.msk [vmem:[#allocation3 + $0x118] sm:$0xff] %vm883, 0.0
      %894 = vst.msk [vmem:[#allocation3 + $0x120] sm:$0xff] %vm883, 0.0
      %895 = vst.msk [vmem:[#allocation3 + $0x128] sm:$0xff] %vm883, 0.0
      %896 = vst.msk [vmem:[#allocation2 + $0x18] sm:$0xff] %vm883, %v592
      %897 = vst.msk [vmem:[#allocation2 + $0x20] sm:$0xff] %vm883, %v595
      %898 = vst.msk [vmem:[#allocation2 + $0x28] sm:$0xff] %vm883, %v600
      %899 = vst.msk [vmem:[#allocation2 + $0x30] sm:$0xff] %vm883, %v603
      %900 = vst.msk [vmem:[#allocation2 + $0x38] sm:$0xff] %vm883, %v608
      %901 = vst.msk [vmem:[#allocation2 + $0x40] sm:$0xff] %vm883, %v611
      %902 = vst.msk [vmem:[#allocation2 + $0x48] sm:$0xff] %vm883, %v616
      %903 = vst.msk [vmem:[#allocation2 + $0x50] sm:$0xff] %vm883, %v619
      %904 = vst.msk [vmem:[#allocation2 + $0x58] sm:$0xff] %vm883, %v624
      %905 = vst.msk [vmem:[#allocation2 + $0x60] sm:$0xff] %vm883, %v627
      %906 = vst.msk [vmem:[#allocation2 + $0x68] sm:$0xff] %vm883, %v632
      %907 = vst.msk [vmem:[#allocation2 + $0x70] sm:$0xff] %vm883, %v635
      %908 = vst.msk [vmem:[#allocation2 + $0x78] sm:$0xff] %vm883, %v640
      %909 = vst.msk [vmem:[#allocation2 + $0x80] sm:$0xff] %vm883, %v643
      %910 = vst.msk [vmem:[#allocation2 + $0x88] sm:$0xff] %vm883, %v648
      %911 = vst.msk [vmem:[#allocation2 + $0x90] sm:$0xff] %vm883, %v651
      %912 = vst.msk [vmem:[#allocation2 + $0x98] sm:$0xff] %vm883, %v656
      %913 = vst.msk [vmem:[#allocation2 + $0xa0] sm:$0xff] %vm883, %v659
      %914 = vst.msk [vmem:[#allocation2 + $0xa8] sm:$0xff] %vm883, %v664
      %915 = vst.msk [vmem:[#allocation2 + $0xb0] sm:$0xff] %vm883, %v667
      %916 = vst.msk [vmem:[#allocation2 + $0xb8] sm:$0xff] %vm883, %v672
      %917 = vst.msk [vmem:[#allocation2 + $0xc0] sm:$0xff] %vm883, %v675
      %918 = vst.msk [vmem:[#allocation2 + $0xc8] sm:$0xff] %vm883, %v680
      %919 = vst.msk [vmem:[#allocation2 + $0xd0] sm:$0xff] %vm883, %v683
      %920 = vst.msk [vmem:[#allocation2 + $0xd8] sm:$0xff] %vm883, %v688
      %921 = vst.msk [vmem:[#allocation2 + $0xe0] sm:$0xff] %vm883, %v691
      %922 = vst.msk [vmem:[#allocation2 + $0xe8] sm:$0xff] %vm883, %v696
      %923 = vst.msk [vmem:[#allocation2 + $0xf0] sm:$0xff] %vm883, %v699
      %924 = vst.msk [vmem:[#allocation2 + $0xf8] sm:$0xff] %vm883, %v704
      %925 = vst.msk [vmem:[#allocation2 + $0x100] sm:$0xff] %vm883, %v707
      %926 = vst.msk [vmem:[#allocation2 + $0x108] sm:$0xff] %vm883, %v712
      %927 = vst.msk [vmem:[#allocation2 + $0x110] sm:$0xff] %vm883, %v715
      %928 = vst.msk [vmem:[#allocation3 + $0x18] sm:$0xff] %vm883, %v757
      %929 = vst.msk [vmem:[#allocation3 + $0x20] sm:$0xff] %vm883, %v760
      %930 = vst.msk [vmem:[#allocation3 + $0x28] sm:$0xff] %vm883, %v765
      %931 = vst.msk [vmem:[#allocation3 + $0x30] sm:$0xff] %vm883, %v768
      %932 = vst.msk [vmem:[#allocation3 + $0x38] sm:$0xff] %vm883, %v773
      %933 = vst.msk [vmem:[#allocation3 + $0x40] sm:$0xff] %vm883, %v776
      %934 = vst.msk [vmem:[#allocation3 + $0x48] sm:$0xff] %vm883, %v781
      %935 = vst.msk [vmem:[#allocation3 + $0x50] sm:$0xff] %vm883, %v784
      %936 = vst.msk [vmem:[#allocation3 + $0x58] sm:$0xff] %vm883, %v789
      %937 = vst.msk [vmem:[#allocation3 + $0x60] sm:$0xff] %vm883, %v792
      %938 = vst.msk [vmem:[#allocation3 + $0x68] sm:$0xff] %vm883, %v797
      %939 = vst.msk [vmem:[#allocation3 + $0x70] sm:$0xff] %vm883, %v800
      %940 = vst.msk [vmem:[#allocation3 + $0x78] sm:$0xff] %vm883, %v805
      %941 = vst.msk [vmem:[#allocation3 + $0x80] sm:$0xff] %vm883, %v808
      %942 = vst.msk [vmem:[#allocation3 + $0x88] sm:$0xff] %vm883, %v813
      %943 = vst.msk [vmem:[#allocation3 + $0x90] sm:$0xff] %vm883, %v816
      %944 = vst.msk [vmem:[#allocation3 + $0x98] sm:$0xff] %vm883, %v821
      %945 = vst.msk [vmem:[#allocation3 + $0xa0] sm:$0xff] %vm883, %v824
      %946 = vst.msk [vmem:[#allocation3 + $0xa8] sm:$0xff] %vm883, %v829
      %947 = vst.msk [vmem:[#allocation3 + $0xb0] sm:$0xff] %vm883, %v832
      %948 = vst.msk [vmem:[#allocation3 + $0xb8] sm:$0xff] %vm883, %v837
      %949 = vst.msk [vmem:[#allocation3 + $0xc0] sm:$0xff] %vm883, %v840
      %950 = vst.msk [vmem:[#allocation3 + $0xc8] sm:$0xff] %vm883, %v845
      %951 = vst.msk [vmem:[#allocation3 + $0xd0] sm:$0xff] %vm883, %v848
      %952 = vst.msk [vmem:[#allocation3 + $0xd8] sm:$0xff] %vm883, %v853
      %953 = vst.msk [vmem:[#allocation3 + $0xe0] sm:$0xff] %vm883, %v856
      %954 = vst.msk [vmem:[#allocation3 + $0xe8] sm:$0xff] %vm883, %v861
      %955 = vst.msk [vmem:[#allocation3 + $0xf0] sm:$0xff] %vm883, %v864
      %956 = vst.msk [vmem:[#allocation3 + $0xf8] sm:$0xff] %vm883, %v869
      %957 = vst.msk [vmem:[#allocation3 + $0x100] sm:$0xff] %vm883, %v872
      %958 = vst.msk [vmem:[#allocation3 + $0x108] sm:$0xff] %vm883, %v877
      %959 = vst.msk [vmem:[#allocation3 + $0x110] sm:$0xff] %vm883, %v880
      %v960 = vld [vmem:[%s4] sm:$0xff]
      %v961 = vld [vmem:[%s4 + $0x8] sm:$0x1]
      %v962 = vlaneseq
      %v963 = vshrl.u32 %v962, 7
      %v964 = vadd.s32 %v963, 8
      %v965 = vadd.s32 %v963, 16
      %v966 = vadd.s32 %v963, 24
      %v967 = vadd.s32 %v963, 32
      %v968 = vadd.s32 %v963, 40
      %v969 = vadd.s32 %v963, 48
      %v970 = vadd.s32 %v963, 56
      %v971 = vadd.s32 %v963, 64
      %v972 = vadd.s32 %v963, 72
      %v973 = vadd.s32 %v963, 80
      %v974 = vadd.s32 %v963, 88
      %v975 = vadd.s32 %v963, 96
      %v976 = vadd.s32 %v963, 104
      %v977 = vadd.s32 %v963, 112
      %v978 = vadd.s32 %v963, 120
      %v979 = vadd.s32 %v963, 128
      %v980 = vadd.s32 %v963, 136
      %v981 = vadd.s32 %v963, 144
      %v982 = vadd.s32 %v963, 152
      %v983 = vadd.s32 %v963, 160
      %v984 = vadd.s32 %v963, 168
      %v985 = vadd.s32 %v963, 176
      %v986 = vadd.s32 %v963, 184
      %v987 = vadd.s32 %v963, 192
      %v988 = vadd.s32 %v963, 200
      %v989 = vadd.s32 %v963, 208
      %v990 = vadd.s32 %v963, 216
      %v991 = vadd.s32 %v963, 224
      %v992 = vadd.s32 %v963, 232
      %v993 = vadd.s32 %v963, 240
      %v994 = vadd.s32 %v963, 248
      %vm995 = vcmp.lt.s32.totalorder %v963, 0
      %v996 = vsub.s32 0, %v963
      %v997 = vsel %vm995, %v996, %v963
      %v998 = vshrl.u32 %v997, 4
      %v999 = vand.u32 %v997, 15
      %v1000 = vsub.s32 0, %v999
      %v1001 = vsel %vm995, %v1000, %v999
      %vm1002 = vcmp.lt.s32.totalorder %v964, 0
      %v1003 = vsub.s32 0, %v964
      %v1004 = vsel %vm1002, %v1003, %v964
      %v1005 = vshrl.u32 %v1004, 4
      %v1006 = vand.u32 %v1004, 15
      %v1007 = vsub.s32 0, %v1006
      %v1008 = vsel %vm1002, %v1007, %v1006
      %vm1009 = vcmp.lt.s32.totalorder %v965, 0
      %v1010 = vsub.s32 0, %v965
      %v1011 = vsel %vm1009, %v1010, %v965
      %v1012 = vshrl.u32 %v1011, 4
      %v1013 = vand.u32 %v1011, 15
      %v1014 = vsub.s32 0, %v1013
      %v1015 = vsel %vm1009, %v1014, %v1013
      %vm1016 = vcmp.lt.s32.totalorder %v966, 0
      %v1017 = vsub.s32 0, %v966
      %v1018 = vsel %vm1016, %v1017, %v966
      %v1019 = vshrl.u32 %v1018, 4
      %v1020 = vand.u32 %v1018, 15
      %v1021 = vsub.s32 0, %v1020
      %v1022 = vsel %vm1016, %v1021, %v1020
      %vm1023 = vcmp.lt.s32.totalorder %v967, 0
      %v1024 = vsub.s32 0, %v967
      %v1025 = vsel %vm1023, %v1024, %v967
      %v1026 = vshrl.u32 %v1025, 4
      %v1027 = vand.u32 %v1025, 15
      %v1028 = vsub.s32 0, %v1027
      %v1029 = vsel %vm1023, %v1028, %v1027
      %vm1030 = vcmp.lt.s32.totalorder %v968, 0
      %v1031 = vsub.s32 0, %v968
      %v1032 = vsel %vm1030, %v1031, %v968
      %v1033 = vshrl.u32 %v1032, 4
      %v1034 = vand.u32 %v1032, 15
      %v1035 = vsub.s32 0, %v1034
      %v1036 = vsel %vm1030, %v1035, %v1034
      %vm1037 = vcmp.lt.s32.totalorder %v969, 0
      %v1038 = vsub.s32 0, %v969
      %v1039 = vsel %vm1037, %v1038, %v969
      %v1040 = vshrl.u32 %v1039, 4
      %v1041 = vand.u32 %v1039, 15
      %v1042 = vsub.s32 0, %v1041
      %v1043 = vsel %vm1037, %v1042, %v1041
      %vm1044 = vcmp.lt.s32.totalorder %v970, 0
      %v1045 = vsub.s32 0, %v970
      %v1046 = vsel %vm1044, %v1045, %v970
      %v1047 = vshrl.u32 %v1046, 4
      %v1048 = vand.u32 %v1046, 15
      %v1049 = vsub.s32 0, %v1048
      %v1050 = vsel %vm1044, %v1049, %v1048
      %vm1051 = vcmp.lt.s32.totalorder %v971, 0
      %v1052 = vsub.s32 0, %v971
      %v1053 = vsel %vm1051, %v1052, %v971
      %v1054 = vshrl.u32 %v1053, 4
      %v1055 = vand.u32 %v1053, 15
      %v1056 = vsub.s32 0, %v1055
      %v1057 = vsel %vm1051, %v1056, %v1055
      %vm1058 = vcmp.lt.s32.totalorder %v972, 0
      %v1059 = vsub.s32 0, %v972
      %v1060 = vsel %vm1058, %v1059, %v972
      %v1061 = vshrl.u32 %v1060, 4
      %v1062 = vand.u32 %v1060, 15
      %v1063 = vsub.s32 0, %v1062
      %v1064 = vsel %vm1058, %v1063, %v1062
      %vm1065 = vcmp.lt.s32.totalorder %v973, 0
      %v1066 = vsub.s32 0, %v973
      %v1067 = vsel %vm1065, %v1066, %v973
      %v1068 = vshrl.u32 %v1067, 4
      %v1069 = vand.u32 %v1067, 15
      %v1070 = vsub.s32 0, %v1069
      %v1071 = vsel %vm1065, %v1070, %v1069
      %vm1072 = vcmp.lt.s32.totalorder %v974, 0
      %v1073 = vsub.s32 0, %v974
      %v1074 = vsel %vm1072, %v1073, %v974
      %v1075 = vshrl.u32 %v1074, 4
      %v1076 = vand.u32 %v1074, 15
      %v1077 = vsub.s32 0, %v1076
      %v1078 = vsel %vm1072, %v1077, %v1076
      %vm1079 = vcmp.lt.s32.totalorder %v975, 0
      %v1080 = vsub.s32 0, %v975
      %v1081 = vsel %vm1079, %v1080, %v975
      %v1082 = vshrl.u32 %v1081, 4
      %v1083 = vand.u32 %v1081, 15
      %v1084 = vsub.s32 0, %v1083
      %v1085 = vsel %vm1079, %v1084, %v1083
      %vm1086 = vcmp.lt.s32.totalorder %v976, 0
      %v1087 = vsub.s32 0, %v976
      %v1088 = vsel %vm1086, %v1087, %v976
      %v1089 = vshrl.u32 %v1088, 4
      %v1090 = vand.u32 %v1088, 15
      %v1091 = vsub.s32 0, %v1090
      %v1092 = vsel %vm1086, %v1091, %v1090
      %vm1093 = vcmp.lt.s32.totalorder %v977, 0
      %v1094 = vsub.s32 0, %v977
      %v1095 = vsel %vm1093, %v1094, %v977
      %v1096 = vshrl.u32 %v1095, 4
      %v1097 = vand.u32 %v1095, 15
      %v1098 = vsub.s32 0, %v1097
      %v1099 = vsel %vm1093, %v1098, %v1097
      %vm1100 = vcmp.lt.s32.totalorder %v978, 0
      %v1101 = vsub.s32 0, %v978
      %v1102 = vsel %vm1100, %v1101, %v978
      %v1103 = vshrl.u32 %v1102, 4
      %v1104 = vand.u32 %v1102, 15
      %v1105 = vsub.s32 0, %v1104
      %v1106 = vsel %vm1100, %v1105, %v1104
      %vm1107 = vcmp.lt.s32.totalorder %v979, 0
      %v1108 = vsub.s32 0, %v979
      %v1109 = vsel %vm1107, %v1108, %v979
      %v1110 = vshrl.u32 %v1109, 4
      %v1111 = vand.u32 %v1109, 15
      %v1112 = vsub.s32 0, %v1111
      %v1113 = vsel %vm1107, %v1112, %v1111
      %vm1114 = vcmp.lt.s32.totalorder %v980, 0
      %v1115 = vsub.s32 0, %v980
      %v1116 = vsel %vm1114, %v1115, %v980
      %v1117 = vshrl.u32 %v1116, 4
      %v1118 = vand.u32 %v1116, 15
      %v1119 = vsub.s32 0, %v1118
      %v1120 = vsel %vm1114, %v1119, %v1118
      %vm1121 = vcmp.lt.s32.totalorder %v981, 0
      %v1122 = vsub.s32 0, %v981
      %v1123 = vsel %vm1121, %v1122, %v981
      %v1124 = vshrl.u32 %v1123, 4
      %v1125 = vand.u32 %v1123, 15
      %v1126 = vsub.s32 0, %v1125
      %v1127 = vsel %vm1121, %v1126, %v1125
      %vm1128 = vcmp.lt.s32.totalorder %v982, 0
      %v1129 = vsub.s32 0, %v982
      %v1130 = vsel %vm1128, %v1129, %v982
      %v1131 = vshrl.u32 %v1130, 4
      %v1132 = vand.u32 %v1130, 15
      %v1133 = vsub.s32 0, %v1132
      %v1134 = vsel %vm1128, %v1133, %v1132
      %vm1135 = vcmp.lt.s32.totalorder %v983, 0
      %v1136 = vsub.s32 0, %v983
      %v1137 = vsel %vm1135, %v1136, %v983
      %v1138 = vshrl.u32 %v1137, 4
      %v1139 = vand.u32 %v1137, 15
      %v1140 = vsub.s32 0, %v1139
      %v1141 = vsel %vm1135, %v1140, %v1139
      %vm1142 = vcmp.lt.s32.totalorder %v984, 0
      %v1143 = vsub.s32 0, %v984
      %v1144 = vsel %vm1142, %v1143, %v984
      %v1145 = vshrl.u32 %v1144, 4
      %v1146 = vand.u32 %v1144, 15
      %v1147 = vsub.s32 0, %v1146
      %v1148 = vsel %vm1142, %v1147, %v1146
      %vm1149 = vcmp.lt.s32.totalorder %v985, 0
      %v1150 = vsub.s32 0, %v985
      %v1151 = vsel %vm1149, %v1150, %v985
      %v1152 = vshrl.u32 %v1151, 4
      %v1153 = vand.u32 %v1151, 15
      %v1154 = vsub.s32 0, %v1153
      %v1155 = vsel %vm1149, %v1154, %v1153
      %vm1156 = vcmp.lt.s32.totalorder %v986, 0
      %v1157 = vsub.s32 0, %v986
      %v1158 = vsel %vm1156, %v1157, %v986
      %v1159 = vshrl.u32 %v1158, 4
      %v1160 = vand.u32 %v1158, 15
      %v1161 = vsub.s32 0, %v1160
      %v1162 = vsel %vm1156, %v1161, %v1160
      %vm1163 = vcmp.lt.s32.totalorder %v987, 0
      %v1164 = vsub.s32 0, %v987
      %v1165 = vsel %vm1163, %v1164, %v987
      %v1166 = vshrl.u32 %v1165, 4
      %v1167 = vand.u32 %v1165, 15
      %v1168 = vsub.s32 0, %v1167
      %v1169 = vsel %vm1163, %v1168, %v1167
      %vm1170 = vcmp.lt.s32.totalorder %v988, 0
      %v1171 = vsub.s32 0, %v988
      %v1172 = vsel %vm1170, %v1171, %v988
      %v1173 = vshrl.u32 %v1172, 4
      %v1174 = vand.u32 %v1172, 15
      %v1175 = vsub.s32 0, %v1174
      %v1176 = vsel %vm1170, %v1175, %v1174
      %vm1177 = vcmp.lt.s32.totalorder %v989, 0
      %v1178 = vsub.s32 0, %v989
      %v1179 = vsel %vm1177, %v1178, %v989
      %v1180 = vshrl.u32 %v1179, 4
      %v1181 = vand.u32 %v1179, 15
      %v1182 = vsub.s32 0, %v1181
      %v1183 = vsel %vm1177, %v1182, %v1181
      %vm1184 = vcmp.lt.s32.totalorder %v990, 0
      %v1185 = vsub.s32 0, %v990
      %v1186 = vsel %vm1184, %v1185, %v990
      %v1187 = vshrl.u32 %v1186, 4
      %v1188 = vand.u32 %v1186, 15
      %v1189 = vsub.s32 0, %v1188
      %v1190 = vsel %vm1184, %v1189, %v1188
      %vm1191 = vcmp.lt.s32.totalorder %v991, 0
      %v1192 = vsub.s32 0, %v991
      %v1193 = vsel %vm1191, %v1192, %v991
      %v1194 = vshrl.u32 %v1193, 4
      %v1195 = vand.u32 %v1193, 15
      %v1196 = vsub.s32 0, %v1195
      %v1197 = vsel %vm1191, %v1196, %v1195
      %vm1198 = vcmp.lt.s32.totalorder %v992, 0
      %v1199 = vsub.s32 0, %v992
      %v1200 = vsel %vm1198, %v1199, %v992
      %v1201 = vshrl.u32 %v1200, 4
      %v1202 = vand.u32 %v1200, 15
      %v1203 = vsub.s32 0, %v1202
      %v1204 = vsel %vm1198, %v1203, %v1202
      %vm1205 = vcmp.lt.s32.totalorder %v993, 0
      %v1206 = vsub.s32 0, %v993
      %v1207 = vsel %vm1205, %v1206, %v993
      %v1208 = vshrl.u32 %v1207, 4
      %v1209 = vand.u32 %v1207, 15
      %v1210 = vsub.s32 0, %v1209
      %v1211 = vsel %vm1205, %v1210, %v1209
      %vm1212 = vcmp.lt.s32.totalorder %v994, 0
      %v1213 = vsub.s32 0, %v994
      %v1214 = vsel %vm1212, %v1213, %v994
      %v1215 = vshrl.u32 %v1214, 4
      %v1216 = vand.u32 %v1214, 15
      %v1217 = vsub.s32 0, %v1216
      %v1218 = vsel %vm1212, %v1217, %v1216
      %vm1219 = vcmp.ne.s32.totalorder %v1001, 0
      %vm1220 = vcmp.ne.s32.totalorder %v1008, 0
      %vm1221 = vcmp.ne.s32.totalorder %v1015, 0
      %vm1222 = vcmp.ne.s32.totalorder %v1022, 0
      %vm1223 = vcmp.ne.s32.totalorder %v1029, 0
      %vm1224 = vcmp.ne.s32.totalorder %v1036, 0
      %vm1225 = vcmp.ne.s32.totalorder %v1043, 0
      %vm1226 = vcmp.ne.s32.totalorder %v1050, 0
      %vm1227 = vcmp.ne.s32.totalorder %v1057, 0
      %vm1228 = vcmp.ne.s32.totalorder %v1064, 0
      %vm1229 = vcmp.ne.s32.totalorder %v1071, 0
      %vm1230 = vcmp.ne.s32.totalorder %v1078, 0
      %vm1231 = vcmp.ne.s32.totalorder %v1085, 0
      %vm1232 = vcmp.ne.s32.totalorder %v1092, 0
      %vm1233 = vcmp.ne.s32.totalorder %v1099, 0
      %vm1234 = vcmp.ne.s32.totalorder %v1106, 0
      %vm1235 = vcmp.ne.s32.totalorder %v1113, 0
      %vm1236 = vcmp.ne.s32.totalorder %v1120, 0
      %vm1237 = vcmp.ne.s32.totalorder %v1127, 0
      %vm1238 = vcmp.ne.s32.totalorder %v1134, 0
      %vm1239 = vcmp.ne.s32.totalorder %v1141, 0
      %vm1240 = vcmp.ne.s32.totalorder %v1148, 0
      %vm1241 = vcmp.ne.s32.totalorder %v1155, 0
      %vm1242 = vcmp.ne.s32.totalorder %v1162, 0
      %vm1243 = vcmp.ne.s32.totalorder %v1169, 0
      %vm1244 = vcmp.ne.s32.totalorder %v1176, 0
      %vm1245 = vcmp.ne.s32.totalorder %v1183, 0
      %vm1246 = vcmp.ne.s32.totalorder %v1190, 0
      %vm1247 = vcmp.ne.s32.totalorder %v1197, 0
      %vm1248 = vcmp.ne.s32.totalorder %v1204, 0
      %vm1249 = vcmp.ne.s32.totalorder %v1211, 0
      %vm1250 = vcmp.ne.s32.totalorder %v1218, 0
      %vm1251 = vcmp.lt.s32.totalorder %v1001, 0
      %vm1252 = vcmp.lt.s32.totalorder %v1008, 0
      %vm1253 = vcmp.lt.s32.totalorder %v1015, 0
      %vm1254 = vcmp.lt.s32.totalorder %v1022, 0
      %vm1255 = vcmp.lt.s32.totalorder %v1029, 0
      %vm1256 = vcmp.lt.s32.totalorder %v1036, 0
      %vm1257 = vcmp.lt.s32.totalorder %v1043, 0
      %vm1258 = vcmp.lt.s32.totalorder %v1050, 0
      %vm1259 = vcmp.lt.s32.totalorder %v1057, 0
      %vm1260 = vcmp.lt.s32.totalorder %v1064, 0
      %vm1261 = vcmp.lt.s32.totalorder %v1071, 0
      %vm1262 = vcmp.lt.s32.totalorder %v1078, 0
      %vm1263 = vcmp.lt.s32.totalorder %v1085, 0
      %vm1264 = vcmp.lt.s32.totalorder %v1092, 0
      %vm1265 = vcmp.lt.s32.totalorder %v1099, 0
      %vm1266 = vcmp.lt.s32.totalorder %v1106, 0
      %vm1267 = vcmp.lt.s32.totalorder %v1113, 0
      %vm1268 = vcmp.lt.s32.totalorder %v1120, 0
      %vm1269 = vcmp.lt.s32.totalorder %v1127, 0
      %vm1270 = vcmp.lt.s32.totalorder %v1134, 0
      %vm1271 = vcmp.lt.s32.totalorder %v1141, 0
      %vm1272 = vcmp.lt.s32.totalorder %v1148, 0
      %vm1273 = vcmp.lt.s32.totalorder %v1155, 0
      %vm1274 = vcmp.lt.s32.totalorder %v1162, 0
      %vm1275 = vcmp.lt.s32.totalorder %v1169, 0
      %vm1276 = vcmp.lt.s32.totalorder %v1176, 0
      %vm1277 = vcmp.lt.s32.totalorder %v1183, 0
      %vm1278 = vcmp.lt.s32.totalorder %v1190, 0
      %vm1279 = vcmp.lt.s32.totalorder %v1197, 0
      %vm1280 = vcmp.lt.s32.totalorder %v1204, 0
      %vm1281 = vcmp.lt.s32.totalorder %v1211, 0
      %vm1282 = vcmp.lt.s32.totalorder %v1218, 0
      %vm1283 = vmand %vm1251, %vm1219
      %vm1284 = vmand %vm1252, %vm1220
      %vm1285 = vmand %vm1253, %vm1221
      %vm1286 = vmand %vm1254, %vm1222
      %vm1287 = vmand %vm1255, %vm1223
      %vm1288 = vmand %vm1256, %vm1224
      %vm1289 = vmand %vm1257, %vm1225
      %vm1290 = vmand %vm1258, %vm1226
      %vm1291 = vmand %vm1259, %vm1227
      %vm1292 = vmand %vm1260, %vm1228
      %vm1293 = vmand %vm1261, %vm1229
      %vm1294 = vmand %vm1262, %vm1230
      %vm1295 = vmand %vm1263, %vm1231
      %vm1296 = vmand %vm1264, %vm1232
      %vm1297 = vmand %vm1265, %vm1233
      %vm1298 = vmand %vm1266, %vm1234
      %vm1299 = vmand %vm1267, %vm1235
      %vm1300 = vmand %vm1268, %vm1236
      %vm1301 = vmand %vm1269, %vm1237
      %vm1302 = vmand %vm1270, %vm1238
      %vm1303 = vmand %vm1271, %vm1239
      %vm1304 = vmand %vm1272, %vm1240
      %vm1305 = vmand %vm1273, %vm1241
      %vm1306 = vmand %vm1274, %vm1242
      %vm1307 = vmand %vm1275, %vm1243
      %vm1308 = vmand %vm1276, %vm1244
      %vm1309 = vmand %vm1277, %vm1245
      %vm1310 = vmand %vm1278, %vm1246
      %vm1311 = vmand %vm1279, %vm1247
      %vm1312 = vmand %vm1280, %vm1248
      %vm1313 = vmand %vm1281, %vm1249
      %vm1314 = vmand %vm1282, %vm1250
      %v1315 = vadd.s32 %v1001, 16
      %v1316 = vadd.s32 %v1008, 16
      %v1317 = vadd.s32 %v1015, 16
      %v1318 = vadd.s32 %v1022, 16
      %v1319 = vadd.s32 %v1029, 16
      %v1320 = vadd.s32 %v1036, 16
      %v1321 = vadd.s32 %v1043, 16
      %v1322 = vadd.s32 %v1050, 16
      %v1323 = vadd.s32 %v1057, 16
      %v1324 = vadd.s32 %v1064, 16
      %v1325 = vadd.s32 %v1071, 16
      %v1326 = vadd.s32 %v1078, 16
      %v1327 = vadd.s32 %v1085, 16
      %v1328 = vadd.s32 %v1092, 16
      %v1329 = vadd.s32 %v1099, 16
      %v1330 = vadd.s32 %v1106, 16
      %v1331 = vadd.s32 %v1113, 16
      %v1332 = vadd.s32 %v1120, 16
      %v1333 = vadd.s32 %v1127, 16
      %v1334 = vadd.s32 %v1134, 16
      %v1335 = vadd.s32 %v1141, 16
      %v1336 = vadd.s32 %v1148, 16
      %v1337 = vadd.s32 %v1155, 16
      %v1338 = vadd.s32 %v1162, 16
      %v1339 = vadd.s32 %v1169, 16
      %v1340 = vadd.s32 %v1176, 16
      %v1341 = vadd.s32 %v1183, 16
      %v1342 = vadd.s32 %v1190, 16
      %v1343 = vadd.s32 %v1197, 16
      %v1344 = vadd.s32 %v1204, 16
      %v1345 = vadd.s32 %v1211, 16
      %v1346 = vadd.s32 %v1218, 16
      %v1347 = vsel %vm1283, %v1315, %v1001
      %v1348 = vsel %vm1284, %v1316, %v1008
      %v1349 = vsel %vm1285, %v1317, %v1015
      %v1350 = vsel %vm1286, %v1318, %v1022
      %v1351 = vsel %vm1287, %v1319, %v1029
      %v1352 = vsel %vm1288, %v1320, %v1036
      %v1353 = vsel %vm1289, %v1321, %v1043
      %v1354 = vsel %vm1290, %v1322, %v1050
      %v1355 = vsel %vm1291, %v1323, %v1057
      %v1356 = vsel %vm1292, %v1324, %v1064
      %v1357 = vsel %vm1293, %v1325, %v1071
      %v1358 = vsel %vm1294, %v1326, %v1078
      %v1359 = vsel %vm1295, %v1327, %v1085
      %v1360 = vsel %vm1296, %v1328, %v1092
      %v1361 = vsel %vm1297, %v1329, %v1099
      %v1362 = vsel %vm1298, %v1330, %v1106
      %v1363 = vsel %vm1299, %v1331, %v1113
      %v1364 = vsel %vm1300, %v1332, %v1120
      %v1365 = vsel %vm1301, %v1333, %v1127
      %v1366 = vsel %vm1302, %v1334, %v1134
      %v1367 = vsel %vm1303, %v1335, %v1141
      %v1368 = vsel %vm1304, %v1336, %v1148
      %v1369 = vsel %vm1305, %v1337, %v1155
      %v1370 = vsel %vm1306, %v1338, %v1162
      %v1371 = vsel %vm1307, %v1339, %v1169
      %v1372 = vsel %vm1308, %v1340, %v1176
      %v1373 = vsel %vm1309, %v1341, %v1183
      %v1374 = vsel %vm1310, %v1342, %v1190
      %v1375 = vsel %vm1311, %v1343, %v1197
      %v1376 = vsel %vm1312, %v1344, %v1204
      %v1377 = vsel %vm1313, %v1345, %v1211
      %v1378 = vsel %vm1314, %v1346, %v1218
      %vm1379 = vcmp.ge.s32.totalorder %v1347, 1
      %vm1380 = vcmp.ge.s32.totalorder %v1348, 1
      %vm1381 = vcmp.ge.s32.totalorder %v1349, 1
      %vm1382 = vcmp.ge.s32.totalorder %v1350, 1
      %vm1383 = vcmp.ge.s32.totalorder %v1351, 1
      %vm1384 = vcmp.ge.s32.totalorder %v1352, 1
      %vm1385 = vcmp.ge.s32.totalorder %v1353, 1
      %vm1386 = vcmp.ge.s32.totalorder %v1354, 1
      %vm1387 = vcmp.ge.s32.totalorder %v1355, 1
      %vm1388 = vcmp.ge.s32.totalorder %v1356, 1
      %vm1389 = vcmp.ge.s32.totalorder %v1357, 1
      %vm1390 = vcmp.ge.s32.totalorder %v1358, 1
      %vm1391 = vcmp.ge.s32.totalorder %v1359, 1
      %vm1392 = vcmp.ge.s32.totalorder %v1360, 1
      %vm1393 = vcmp.ge.s32.totalorder %v1361, 1
      %vm1394 = vcmp.ge.s32.totalorder %v1362, 1
      %vm1395 = vcmp.ge.s32.totalorder %v1363, 1
      %vm1396 = vcmp.ge.s32.totalorder %v1364, 1
      %vm1397 = vcmp.ge.s32.totalorder %v1365, 1
      %vm1398 = vcmp.ge.s32.totalorder %v1366, 1
      %vm1399 = vcmp.ge.s32.totalorder %v1367, 1
      %vm1400 = vcmp.ge.s32.totalorder %v1368, 1
      %vm1401 = vcmp.ge.s32.totalorder %v1369, 1
      %vm1402 = vcmp.ge.s32.totalorder %v1370, 1
      %vm1403 = vcmp.ge.s32.totalorder %v1371, 1
      %vm1404 = vcmp.ge.s32.totalorder %v1372, 1
      %vm1405 = vcmp.ge.s32.totalorder %v1373, 1
      %vm1406 = vcmp.ge.s32.totalorder %v1374, 1
      %vm1407 = vcmp.ge.s32.totalorder %v1375, 1
      %vm1408 = vcmp.ge.s32.totalorder %v1376, 1
      %vm1409 = vcmp.ge.s32.totalorder %v1377, 1
      %vm1410 = vcmp.ge.s32.totalorder %v1378, 1
      %vm1411 = vcmp.le.s32.totalorder %v1347, 14
      %vm1412 = vcmp.le.s32.totalorder %v1348, 14
      %vm1413 = vcmp.le.s32.totalorder %v1349, 14
      %vm1414 = vcmp.le.s32.totalorder %v1350, 14
      %vm1415 = vcmp.le.s32.totalorder %v1351, 14
      %vm1416 = vcmp.le.s32.totalorder %v1352, 14
      %vm1417 = vcmp.le.s32.totalorder %v1353, 14
      %vm1418 = vcmp.le.s32.totalorder %v1354, 14
      %vm1419 = vcmp.le.s32.totalorder %v1355, 14
      %vm1420 = vcmp.le.s32.totalorder %v1356, 14
      %vm1421 = vcmp.le.s32.totalorder %v1357, 14
      %vm1422 = vcmp.le.s32.totalorder %v1358, 14
      %vm1423 = vcmp.le.s32.totalorder %v1359, 14
      %vm1424 = vcmp.le.s32.totalorder %v1360, 14
      %vm1425 = vcmp.le.s32.totalorder %v1361, 14
      %vm1426 = vcmp.le.s32.totalorder %v1362, 14
      %vm1427 = vcmp.le.s32.totalorder %v1363, 14
      %vm1428 = vcmp.le.s32.totalorder %v1364, 14
      %vm1429 = vcmp.le.s32.totalorder %v1365, 14
      %vm1430 = vcmp.le.s32.totalorder %v1366, 14
      %vm1431 = vcmp.le.s32.totalorder %v1367, 14
      %vm1432 = vcmp.le.s32.totalorder %v1368, 14
      %vm1433 = vcmp.le.s32.totalorder %v1369, 14
      %vm1434 = vcmp.le.s32.totalorder %v1370, 14
      %vm1435 = vcmp.le.s32.totalorder %v1371, 14
      %vm1436 = vcmp.le.s32.totalorder %v1372, 14
      %vm1437 = vcmp.le.s32.totalorder %v1373, 14
      %vm1438 = vcmp.le.s32.totalorder %v1374, 14
      %vm1439 = vcmp.le.s32.totalorder %v1375, 14
      %vm1440 = vcmp.le.s32.totalorder %v1376, 14
      %vm1441 = vcmp.le.s32.totalorder %v1377, 14
      %vm1442 = vcmp.le.s32.totalorder %v1378, 14
      %v1443 = vld [vmem:[#allocation2 + $0x7] sm:$0xff]
      %v1444 = vld [vmem:[#allocation2 + $0xf] sm:$0xff]
      %v1445 = vld [vmem:[#allocation2 + $0x17] sm:$0xff]
      %v1446 = vld [vmem:[#allocation2 + $0x1f] sm:$0xff]
      %v1447 = vld [vmem:[#allocation2 + $0x27] sm:$0xff]
      %v1448 = vld [vmem:[#allocation2 + $0x2f] sm:$0xff]
      %v1449 = vld [vmem:[#allocation2 + $0x37] sm:$0xff]
      %v1450 = vld [vmem:[#allocation2 + $0x3f] sm:$0xff]
      %v1451 = vld [vmem:[#allocation2 + $0x47] sm:$0xff]
      %v1452 = vld [vmem:[#allocation2 + $0x4f] sm:$0xff]
      %v1453 = vld [vmem:[#allocation2 + $0x57] sm:$0xff]
      %v1454 = vld [vmem:[#allocation2 + $0x5f] sm:$0xff]
      %v1455 = vld [vmem:[#allocation2 + $0x67] sm:$0xff]
      %v1456 = vld [vmem:[#allocation2 + $0x6f] sm:$0xff]
      %v1457 = vld [vmem:[#allocation2 + $0x77] sm:$0xff]
      %v1458 = vld [vmem:[#allocation2 + $0x7f] sm:$0xff]
      %v1459 = vld [vmem:[#allocation2 + $0x87] sm:$0xff]
      %v1460 = vld [vmem:[#allocation2 + $0x8f] sm:$0xff]
      %v1461 = vld [vmem:[#allocation2 + $0x97] sm:$0xff]
      %v1462 = vld [vmem:[#allocation2 + $0x9f] sm:$0xff]
      %v1463 = vld [vmem:[#allocation2 + $0xa7] sm:$0xff]
      %v1464 = vld [vmem:[#allocation2 + $0xaf] sm:$0xff]
      %v1465 = vld [vmem:[#allocation2 + $0xb7] sm:$0xff]
      %v1466 = vld [vmem:[#allocation2 + $0xbf] sm:$0xff]
      %v1467 = vld [vmem:[#allocation2 + $0xc7] sm:$0xff]
      %v1468 = vld [vmem:[#allocation2 + $0xcf] sm:$0xff]
      %v1469 = vld [vmem:[#allocation2 + $0xd7] sm:$0xff]
      %v1470 = vld [vmem:[#allocation2 + $0xdf] sm:$0xff]
      %v1471 = vld [vmem:[#allocation2 + $0xe7] sm:$0xff]
      %v1472 = vld [vmem:[#allocation2 + $0xef] sm:$0xff]
      %v1473 = vld [vmem:[#allocation2 + $0xf7] sm:$0xff]
      %v1474 = vld [vmem:[#allocation2 + $0xff] sm:$0xff]
      %v1475 = vsel %vm1379, 1, 0
      %v1476 = vsel %vm1380, 1, 0
      %v1477 = vsel %vm1381, 1, 0
      %v1478 = vsel %vm1382, 1, 0
      %v1479 = vsel %vm1383, 1, 0
      %v1480 = vsel %vm1384, 1, 0
      %v1481 = vsel %vm1385, 1, 0
      %v1482 = vsel %vm1386, 1, 0
      %v1483 = vsel %vm1387, 1, 0
      %v1484 = vsel %vm1388, 1, 0
      %v1485 = vsel %vm1389, 1, 0
      %v1486 = vsel %vm1390, 1, 0
      %v1487 = vsel %vm1391, 1, 0
      %v1488 = vsel %vm1392, 1, 0
      %v1489 = vsel %vm1393, 1, 0
      %v1490 = vsel %vm1394, 1, 0
      %v1491 = vsel %vm1395, 1, 0
      %v1492 = vsel %vm1396, 1, 0
      %v1493 = vsel %vm1397, 1, 0
      %v1494 = vsel %vm1398, 1, 0
      %v1495 = vsel %vm1399, 1, 0
      %v1496 = vsel %vm1400, 1, 0
      %v1497 = vsel %vm1401, 1, 0
      %v1498 = vsel %vm1402, 1, 0
      %v1499 = vsel %vm1403, 1, 0
      %v1500 = vsel %vm1404, 1, 0
      %v1501 = vsel %vm1405, 1, 0
      %v1502 = vsel %vm1406, 1, 0
      %v1503 = vsel %vm1407, 1, 0
      %v1504 = vsel %vm1408, 1, 0
      %v1505 = vsel %vm1409, 1, 0
      %v1506 = vsel %vm1410, 1, 0
      %vm1507 = vcmp.eq.s32.totalorder %v1475, 1
      %vm1508 = vcmp.eq.s32.totalorder %v1476, 1
      %vm1509 = vcmp.eq.s32.totalorder %v1477, 1
      %vm1510 = vcmp.eq.s32.totalorder %v1478, 1
      %vm1511 = vcmp.eq.s32.totalorder %v1479, 1
      %vm1512 = vcmp.eq.s32.totalorder %v1480, 1
      %vm1513 = vcmp.eq.s32.totalorder %v1481, 1
      %vm1514 = vcmp.eq.s32.totalorder %v1482, 1
      %vm1515 = vcmp.eq.s32.totalorder %v1483, 1
      %vm1516 = vcmp.eq.s32.totalorder %v1484, 1
      %vm1517 = vcmp.eq.s32.totalorder %v1485, 1
      %vm1518 = vcmp.eq.s32.totalorder %v1486, 1
      %vm1519 = vcmp.eq.s32.totalorder %v1487, 1
      %vm1520 = vcmp.eq.s32.totalorder %v1488, 1
      %vm1521 = vcmp.eq.s32.totalorder %v1489, 1
      %vm1522 = vcmp.eq.s32.totalorder %v1490, 1
      %vm1523 = vcmp.eq.s32.totalorder %v1491, 1
      %vm1524 = vcmp.eq.s32.totalorder %v1492, 1
      %vm1525 = vcmp.eq.s32.totalorder %v1493, 1
      %vm1526 = vcmp.eq.s32.totalorder %v1494, 1
      %vm1527 = vcmp.eq.s32.totalorder %v1495, 1
      %vm1528 = vcmp.eq.s32.totalorder %v1496, 1
      %vm1529 = vcmp.eq.s32.totalorder %v1497, 1
      %vm1530 = vcmp.eq.s32.totalorder %v1498, 1
      %vm1531 = vcmp.eq.s32.totalorder %v1499, 1
      %vm1532 = vcmp.eq.s32.totalorder %v1500, 1
      %vm1533 = vcmp.eq.s32.totalorder %v1501, 1
      %vm1534 = vcmp.eq.s32.totalorder %v1502, 1
      %vm1535 = vcmp.eq.s32.totalorder %v1503, 1
      %vm1536 = vcmp.eq.s32.totalorder %v1504, 1
      %vm1537 = vcmp.eq.s32.totalorder %v1505, 1
      %vm1538 = vcmp.eq.s32.totalorder %v1506, 1
      %v1539 = vsel %vm1507, %v1443, 0.0
      %v1540 = vsel %vm1508, %v1444, 0.0
      %v1541 = vsel %vm1509, %v1445, 0.0
      %v1542 = vsel %vm1510, %v1446, 0.0
      %v1543 = vsel %vm1511, %v1447, 0.0
      %v1544 = vsel %vm1512, %v1448, 0.0
      %v1545 = vsel %vm1513, %v1449, 0.0
      %v1546 = vsel %vm1514, %v1450, 0.0
      %v1547 = vsel %vm1515, %v1451, 0.0
      %v1548 = vsel %vm1516, %v1452, 0.0
      %v1549 = vsel %vm1517, %v1453, 0.0
      %v1550 = vsel %vm1518, %v1454, 0.0
      %v1551 = vsel %vm1519, %v1455, 0.0
      %v1552 = vsel %vm1520, %v1456, 0.0
      %v1553 = vsel %vm1521, %v1457, 0.0
      %v1554 = vsel %vm1522, %v1458, 0.0
      %v1555 = vsel %vm1523, %v1459, 0.0
      %v1556 = vsel %vm1524, %v1460, 0.0
      %v1557 = vsel %vm1525, %v1461, 0.0
      %v1558 = vsel %vm1526, %v1462, 0.0
      %v1559 = vsel %vm1527, %v1463, 0.0
      %v1560 = vsel %vm1528, %v1464, 0.0
      %v1561 = vsel %vm1529, %v1465, 0.0
      %v1562 = vsel %vm1530, %v1466, 0.0
      %v1563 = vsel %vm1531, %v1467, 0.0
      %v1564 = vsel %vm1532, %v1468, 0.0
      %v1565 = vsel %vm1533, %v1469, 0.0
      %v1566 = vsel %vm1534, %v1470, 0.0
      %v1567 = vsel %vm1535, %v1471, 0.0
      %v1568 = vsel %vm1536, %v1472, 0.0
      %v1569 = vsel %vm1537, %v1473, 0.0
      %v1570 = vsel %vm1538, %v1474, 0.0
      %v1571 = vlaneseq
      %v1572 = vshrl.u32 %v1571, 7
      %v1573 = vsub.s32 0, %v1572
      %v1574 = vrot.slane %v960, %v1573
      %v1575 = vadd.f32 %v1539, %v1574
      %v1576 = vadd.f32 %v1540, %v1574
      %v1577 = vadd.f32 %v1541, %v1574
      %v1578 = vadd.f32 %v1542, %v1574
      %v1579 = vadd.f32 %v1543, %v1574
      %v1580 = vadd.f32 %v1544, %v1574
      %v1581 = vadd.f32 %v1545, %v1574
      %v1582 = vadd.f32 %v1546, %v1574
      %v1583 = vadd.f32 %v1547, %v1574
      %v1584 = vadd.f32 %v1548, %v1574
      %v1585 = vadd.f32 %v1549, %v1574
      %v1586 = vadd.f32 %v1550, %v1574
      %v1587 = vadd.f32 %v1551, %v1574
      %v1588 = vadd.f32 %v1552, %v1574
      %v1589 = vadd.f32 %v1553, %v1574
      %v1590 = vadd.f32 %v1554, %v1574
      %v1591 = vadd.f32 %v1555, %v1574
      %v1592 = vadd.f32 %v1556, %v1574
      %v1593 = vadd.f32 %v1557, %v1574
      %v1594 = vadd.f32 %v1558, %v1574
      %v1595 = vadd.f32 %v1559, %v1574
      %v1596 = vadd.f32 %v1560, %v1574
      %v1597 = vadd.f32 %v1561, %v1574
      %v1598 = vadd.f32 %v1562, %v1574
      %v1599 = vadd.f32 %v1563, %v1574
      %v1600 = vadd.f32 %v1564, %v1574
      %v1601 = vadd.f32 %v1565, %v1574
      %v1602 = vadd.f32 %v1566, %v1574
      %v1603 = vadd.f32 %v1567, %v1574
      %v1604 = vadd.f32 %v1568, %v1574
      %v1605 = vadd.f32 %v1569, %v1574
      %v1606 = vadd.f32 %v1570, %v1574
      %v1607 = vmul.f32 %v427, %v1575
      %v1608 = vmul.f32 %v430, %v1576
      %v1609 = vmul.f32 %v435, %v1577
      %v1610 = vmul.f32 %v438, %v1578
      %v1611 = vmul.f32 %v443, %v1579
      %v1612 = vmul.f32 %v446, %v1580
      %v1613 = vmul.f32 %v451, %v1581
      %v1614 = vmul.f32 %v454, %v1582
      %v1615 = vmul.f32 %v459, %v1583
      %v1616 = vmul.f32 %v462, %v1584
      %v1617 = vmul.f32 %v467, %v1585
      %v1618 = vmul.f32 %v470, %v1586
      %v1619 = vmul.f32 %v475, %v1587
      %v1620 = vmul.f32 %v478, %v1588
      %v1621 = vmul.f32 %v483, %v1589
      %v1622 = vmul.f32 %v486, %v1590
      %v1623 = vmul.f32 %v491, %v1591
      %v1624 = vmul.f32 %v494, %v1592
      %v1625 = vmul.f32 %v499, %v1593
      %v1626 = vmul.f32 %v502, %v1594
      %v1627 = vmul.f32 %v507, %v1595
      %v1628 = vmul.f32 %v510, %v1596
      %v1629 = vmul.f32 %v515, %v1597
      %v1630 = vmul.f32 %v518, %v1598
      %v1631 = vmul.f32 %v523, %v1599
      %v1632 = vmul.f32 %v526, %v1600
      %v1633 = vmul.f32 %v531, %v1601
      %v1634 = vmul.f32 %v534, %v1602
      %v1635 = vmul.f32 %v539, %v1603
      %v1636 = vmul.f32 %v542, %v1604
      %v1637 = vmul.f32 %v547, %v1605
      %v1638 = vmul.f32 %v550, %v1606
      %v1639 = vld [vmem:[#allocation2 + $0x8] sm:$0xff]
      %v1640 = vld [vmem:[#allocation2 + $0x10] sm:$0xff]
      %v1641 = vld [vmem:[#allocation2 + $0x18] sm:$0xff]
      %v1642 = vld [vmem:[#allocation2 + $0x20] sm:$0xff]
      %v1643 = vld [vmem:[#allocation2 + $0x28] sm:$0xff]
      %v1644 = vld [vmem:[#allocation2 + $0x30] sm:$0xff]
      %v1645 = vld [vmem:[#allocation2 + $0x38] sm:$0xff]
      %v1646 = vld [vmem:[#allocation2 + $0x40] sm:$0xff]
      %v1647 = vld [vmem:[#allocation2 + $0x48] sm:$0xff]
      %v1648 = vld [vmem:[#allocation2 + $0x50] sm:$0xff]
      %v1649 = vld [vmem:[#allocation2 + $0x58] sm:$0xff]
      %v1650 = vld [vmem:[#allocation2 + $0x60] sm:$0xff]
      %v1651 = vld [vmem:[#allocation2 + $0x68] sm:$0xff]
      %v1652 = vld [vmem:[#allocation2 + $0x70] sm:$0xff]
      %v1653 = vld [vmem:[#allocation2 + $0x78] sm:$0xff]
      %v1654 = vld [vmem:[#allocation2 + $0x80] sm:$0xff]
      %v1655 = vld [vmem:[#allocation2 + $0x88] sm:$0xff]
      %v1656 = vld [vmem:[#allocation2 + $0x90] sm:$0xff]
      %v1657 = vld [vmem:[#allocation2 + $0x98] sm:$0xff]
      %v1658 = vld [vmem:[#allocation2 + $0xa0] sm:$0xff]
      %v1659 = vld [vmem:[#allocation2 + $0xa8] sm:$0xff]
      %v1660 = vld [vmem:[#allocation2 + $0xb0] sm:$0xff]
      %v1661 = vld [vmem:[#allocation2 + $0xb8] sm:$0xff]
      %v1662 = vld [vmem:[#allocation2 + $0xc0] sm:$0xff]
      %v1663 = vld [vmem:[#allocation2 + $0xc8] sm:$0xff]
      %v1664 = vld [vmem:[#allocation2 + $0xd0] sm:$0xff]
      %v1665 = vld [vmem:[#allocation2 + $0xd8] sm:$0xff]
      %v1666 = vld [vmem:[#allocation2 + $0xe0] sm:$0xff]
      %v1667 = vld [vmem:[#allocation2 + $0xe8] sm:$0xff]
      %v1668 = vld [vmem:[#allocation2 + $0xf0] sm:$0xff]
      %v1669 = vld [vmem:[#allocation2 + $0xf8] sm:$0xff]
      %v1670 = vld [vmem:[#allocation2 + $0x100] sm:$0xff]
      %v1671 = vlaneseq
      %v1672 = vshrl.u32 %v1671, 7
      %v1673 = vsub.s32 1, %v1672
      %v1674 = vrot.slane %v960, %v1673
      %v1675 = vadd.f32 %v1639, %v1674
      %v1676 = vadd.f32 %v1640, %v1674
      %v1677 = vadd.f32 %v1641, %v1674
      %v1678 = vadd.f32 %v1642, %v1674
      %v1679 = vadd.f32 %v1643, %v1674
      %v1680 = vadd.f32 %v1644, %v1674
      %v1681 = vadd.f32 %v1645, %v1674
      %v1682 = vadd.f32 %v1646, %v1674
      %v1683 = vadd.f32 %v1647, %v1674
      %v1684 = vadd.f32 %v1648, %v1674
      %v1685 = vadd.f32 %v1649, %v1674
      %v1686 = vadd.f32 %v1650, %v1674
      %v1687 = vadd.f32 %v1651, %v1674
      %v1688 = vadd.f32 %v1652, %v1674
      %v1689 = vadd.f32 %v1653, %v1674
      %v1690 = vadd.f32 %v1654, %v1674
      %v1691 = vadd.f32 %v1655, %v1674
      %v1692 = vadd.f32 %v1656, %v1674
      %v1693 = vadd.f32 %v1657, %v1674
      %v1694 = vadd.f32 %v1658, %v1674
      %v1695 = vadd.f32 %v1659, %v1674
      %v1696 = vadd.f32 %v1660, %v1674
      %v1697 = vadd.f32 %v1661, %v1674
      %v1698 = vadd.f32 %v1662, %v1674
      %v1699 = vadd.f32 %v1663, %v1674
      %v1700 = vadd.f32 %v1664, %v1674
      %v1701 = vadd.f32 %v1665, %v1674
      %v1702 = vadd.f32 %v1666, %v1674
      %v1703 = vadd.f32 %v1667, %v1674
      %v1704 = vadd.f32 %v1668, %v1674
      %v1705 = vadd.f32 %v1669, %v1674
      %v1706 = vadd.f32 %v1670, %v1674
      %v1707 = vmul.f32 %v427, %v1675
      %v1708 = vmul.f32 %v430, %v1676
      %v1709 = vmul.f32 %v435, %v1677
      %v1710 = vmul.f32 %v438, %v1678
      %v1711 = vmul.f32 %v443, %v1679
      %v1712 = vmul.f32 %v446, %v1680
      %v1713 = vmul.f32 %v451, %v1681
      %v1714 = vmul.f32 %v454, %v1682
      %v1715 = vmul.f32 %v459, %v1683
      %v1716 = vmul.f32 %v462, %v1684
      %v1717 = vmul.f32 %v467, %v1685
      %v1718 = vmul.f32 %v470, %v1686
      %v1719 = vmul.f32 %v475, %v1687
      %v1720 = vmul.f32 %v478, %v1688
      %v1721 = vmul.f32 %v483, %v1689
      %v1722 = vmul.f32 %v486, %v1690
      %v1723 = vmul.f32 %v491, %v1691
      %v1724 = vmul.f32 %v494, %v1692
      %v1725 = vmul.f32 %v499, %v1693
      %v1726 = vmul.f32 %v502, %v1694
      %v1727 = vmul.f32 %v507, %v1695
      %v1728 = vmul.f32 %v510, %v1696
      %v1729 = vmul.f32 %v515, %v1697
      %v1730 = vmul.f32 %v518, %v1698
      %v1731 = vmul.f32 %v523, %v1699
      %v1732 = vmul.f32 %v526, %v1700
      %v1733 = vmul.f32 %v531, %v1701
      %v1734 = vmul.f32 %v534, %v1702
      %v1735 = vmul.f32 %v539, %v1703
      %v1736 = vmul.f32 %v542, %v1704
      %v1737 = vmul.f32 %v547, %v1705
      %v1738 = vmul.f32 %v550, %v1706
      %v1739 = vmax.f32 %v1607, %v1707
      %v1740 = vmax.f32 %v1608, %v1708
      %v1741 = vmax.f32 %v1609, %v1709
      %v1742 = vmax.f32 %v1610, %v1710
      %v1743 = vmax.f32 %v1611, %v1711
      %v1744 = vmax.f32 %v1612, %v1712
      %v1745 = vmax.f32 %v1613, %v1713
      %v1746 = vmax.f32 %v1614, %v1714
      %v1747 = vmax.f32 %v1615, %v1715
      %v1748 = vmax.f32 %v1616, %v1716
      %v1749 = vmax.f32 %v1617, %v1717
      %v1750 = vmax.f32 %v1618, %v1718
      %v1751 = vmax.f32 %v1619, %v1719
      %v1752 = vmax.f32 %v1620, %v1720
      %v1753 = vmax.f32 %v1621, %v1721
      %v1754 = vmax.f32 %v1622, %v1722
      %v1755 = vmax.f32 %v1623, %v1723
      %v1756 = vmax.f32 %v1624, %v1724
      %v1757 = vmax.f32 %v1625, %v1725
      %v1758 = vmax.f32 %v1626, %v1726
      %v1759 = vmax.f32 %v1627, %v1727
      %v1760 = vmax.f32 %v1628, %v1728
      %v1761 = vmax.f32 %v1629, %v1729
      %v1762 = vmax.f32 %v1630, %v1730
      %v1763 = vmax.f32 %v1631, %v1731
      %v1764 = vmax.f32 %v1632, %v1732
      %v1765 = vmax.f32 %v1633, %v1733
      %v1766 = vmax.f32 %v1634, %v1734
      %v1767 = vmax.f32 %v1635, %v1735
      %v1768 = vmax.f32 %v1636, %v1736
      %v1769 = vmax.f32 %v1637, %v1737
      %v1770 = vmax.f32 %v1638, %v1738
      %v1771 = vld [vmem:[#allocation2 + $0x9] sm:$0xff]
      %v1772 = vld [vmem:[#allocation2 + $0x11] sm:$0xff]
      %v1773 = vld [vmem:[#allocation2 + $0x19] sm:$0xff]
      %v1774 = vld [vmem:[#allocation2 + $0x21] sm:$0xff]
      %v1775 = vld [vmem:[#allocation2 + $0x29] sm:$0xff]
      %v1776 = vld [vmem:[#allocation2 + $0x31] sm:$0xff]
      %v1777 = vld [vmem:[#allocation2 + $0x39] sm:$0xff]
      %v1778 = vld [vmem:[#allocation2 + $0x41] sm:$0xff]
      %v1779 = vld [vmem:[#allocation2 + $0x49] sm:$0xff]
      %v1780 = vld [vmem:[#allocation2 + $0x51] sm:$0xff]
      %v1781 = vld [vmem:[#allocation2 + $0x59] sm:$0xff]
      %v1782 = vld [vmem:[#allocation2 + $0x61] sm:$0xff]
      %v1783 = vld [vmem:[#allocation2 + $0x69] sm:$0xff]
      %v1784 = vld [vmem:[#allocation2 + $0x71] sm:$0xff]
      %v1785 = vld [vmem:[#allocation2 + $0x79] sm:$0xff]
      %v1786 = vld [vmem:[#allocation2 + $0x81] sm:$0xff]
      %v1787 = vld [vmem:[#allocation2 + $0x89] sm:$0xff]
      %v1788 = vld [vmem:[#allocation2 + $0x91] sm:$0xff]
      %v1789 = vld [vmem:[#allocation2 + $0x99] sm:$0xff]
      %v1790 = vld [vmem:[#allocation2 + $0xa1] sm:$0xff]
      %v1791 = vld [vmem:[#allocation2 + $0xa9] sm:$0xff]
      %v1792 = vld [vmem:[#allocation2 + $0xb1] sm:$0xff]
      %v1793 = vld [vmem:[#allocation2 + $0xb9] sm:$0xff]
      %v1794 = vld [vmem:[#allocation2 + $0xc1] sm:$0xff]
      %v1795 = vld [vmem:[#allocation2 + $0xc9] sm:$0xff]
      %v1796 = vld [vmem:[#allocation2 + $0xd1] sm:$0xff]
      %v1797 = vld [vmem:[#allocation2 + $0xd9] sm:$0xff]
      %v1798 = vld [vmem:[#allocation2 + $0xe1] sm:$0xff]
      %v1799 = vld [vmem:[#allocation2 + $0xe9] sm:$0xff]
      %v1800 = vld [vmem:[#allocation2 + $0xf1] sm:$0xff]
      %v1801 = vld [vmem:[#allocation2 + $0xf9] sm:$0xff]
      %v1802 = vld [vmem:[#allocation2 + $0x101] sm:$0xff]
      %v1803 = vsel %vm1411, 1, 0
      %v1804 = vsel %vm1412, 1, 0
      %v1805 = vsel %vm1413, 1, 0
      %v1806 = vsel %vm1414, 1, 0
      %v1807 = vsel %vm1415, 1, 0
      %v1808 = vsel %vm1416, 1, 0
      %v1809 = vsel %vm1417, 1, 0
      %v1810 = vsel %vm1418, 1, 0
      %v1811 = vsel %vm1419, 1, 0
      %v1812 = vsel %vm1420, 1, 0
      %v1813 = vsel %vm1421, 1, 0
      %v1814 = vsel %vm1422, 1, 0
      %v1815 = vsel %vm1423, 1, 0
      %v1816 = vsel %vm1424, 1, 0
      %v1817 = vsel %vm1425, 1, 0
      %v1818 = vsel %vm1426, 1, 0
      %v1819 = vsel %vm1427, 1, 0
      %v1820 = vsel %vm1428, 1, 0
      %v1821 = vsel %vm1429, 1, 0
      %v1822 = vsel %vm1430, 1, 0
      %v1823 = vsel %vm1431, 1, 0
      %v1824 = vsel %vm1432, 1, 0
      %v1825 = vsel %vm1433, 1, 0
      %v1826 = vsel %vm1434, 1, 0
      %v1827 = vsel %vm1435, 1, 0
      %v1828 = vsel %vm1436, 1, 0
      %v1829 = vsel %vm1437, 1, 0
      %v1830 = vsel %vm1438, 1, 0
      %v1831 = vsel %vm1439, 1, 0
      %v1832 = vsel %vm1440, 1, 0
      %v1833 = vsel %vm1441, 1, 0
      %v1834 = vsel %vm1442, 1, 0
      %vm1835 = vcmp.eq.s32.totalorder %v1803, 1
      %vm1836 = vcmp.eq.s32.totalorder %v1804, 1
      %vm1837 = vcmp.eq.s32.totalorder %v1805, 1
      %vm1838 = vcmp.eq.s32.totalorder %v1806, 1
      %vm1839 = vcmp.eq.s32.totalorder %v1807, 1
      %vm1840 = vcmp.eq.s32.totalorder %v1808, 1
      %vm1841 = vcmp.eq.s32.totalorder %v1809, 1
      %vm1842 = vcmp.eq.s32.totalorder %v1810, 1
      %vm1843 = vcmp.eq.s32.totalorder %v1811, 1
      %vm1844 = vcmp.eq.s32.totalorder %v1812, 1
      %vm1845 = vcmp.eq.s32.totalorder %v1813, 1
      %vm1846 = vcmp.eq.s32.totalorder %v1814, 1
      %vm1847 = vcmp.eq.s32.totalorder %v1815, 1
      %vm1848 = vcmp.eq.s32.totalorder %v1816, 1
      %vm1849 = vcmp.eq.s32.totalorder %v1817, 1
      %vm1850 = vcmp.eq.s32.totalorder %v1818, 1
      %vm1851 = vcmp.eq.s32.totalorder %v1819, 1
      %vm1852 = vcmp.eq.s32.totalorder %v1820, 1
      %vm1853 = vcmp.eq.s32.totalorder %v1821, 1
      %vm1854 = vcmp.eq.s32.totalorder %v1822, 1
      %vm1855 = vcmp.eq.s32.totalorder %v1823, 1
      %vm1856 = vcmp.eq.s32.totalorder %v1824, 1
      %vm1857 = vcmp.eq.s32.totalorder %v1825, 1
      %vm1858 = vcmp.eq.s32.totalorder %v1826, 1
      %vm1859 = vcmp.eq.s32.totalorder %v1827, 1
      %vm1860 = vcmp.eq.s32.totalorder %v1828, 1
      %vm1861 = vcmp.eq.s32.totalorder %v1829, 1
      %vm1862 = vcmp.eq.s32.totalorder %v1830, 1
      %vm1863 = vcmp.eq.s32.totalorder %v1831, 1
      %vm1864 = vcmp.eq.s32.totalorder %v1832, 1
      %vm1865 = vcmp.eq.s32.totalorder %v1833, 1
      %vm1866 = vcmp.eq.s32.totalorder %v1834, 1
      %v1867 = vsel %vm1835, %v1771, 0.0
      %v1868 = vsel %vm1836, %v1772, 0.0
      %v1869 = vsel %vm1837, %v1773, 0.0
      %v1870 = vsel %vm1838, %v1774, 0.0
      %v1871 = vsel %vm1839, %v1775, 0.0
      %v1872 = vsel %vm1840, %v1776, 0.0
      %v1873 = vsel %vm1841, %v1777, 0.0
      %v1874 = vsel %vm1842, %v1778, 0.0
      %v1875 = vsel %vm1843, %v1779, 0.0
      %v1876 = vsel %vm1844, %v1780, 0.0
      %v1877 = vsel %vm1845, %v1781, 0.0
      %v1878 = vsel %vm1846, %v1782, 0.0
      %v1879 = vsel %vm1847, %v1783, 0.0
      %v1880 = vsel %vm1848, %v1784, 0.0
      %v1881 = vsel %vm1849, %v1785, 0.0
      %v1882 = vsel %vm1850, %v1786, 0.0
      %v1883 = vsel %vm1851, %v1787, 0.0
      %v1884 = vsel %vm1852, %v1788, 0.0
      %v1885 = vsel %vm1853, %v1789, 0.0
      %v1886 = vsel %vm1854, %v1790, 0.0
      %v1887 = vsel %vm1855, %v1791, 0.0
      %v1888 = vsel %vm1856, %v1792, 0.0
      %v1889 = vsel %vm1857, %v1793, 0.0
      %v1890 = vsel %vm1858, %v1794, 0.0
      %v1891 = vsel %vm1859, %v1795, 0.0
      %v1892 = vsel %vm1860, %v1796, 0.0
      %v1893 = vsel %vm1861, %v1797, 0.0
      %v1894 = vsel %vm1862, %v1798, 0.0
      %v1895 = vsel %vm1863, %v1799, 0.0
      %v1896 = vsel %vm1864, %v1800, 0.0
      %v1897 = vsel %vm1865, %v1801, 0.0
      %v1898 = vsel %vm1866, %v1802, 0.0
      %v1899 = vlaneseq
      %v1900 = vshrl.u32 %v1899, 7
      %v1901 = vsub.s32 2, %v1900
      %v1902 = vrot.slane %v960, %v1901
      %v1903 = vadd.f32 %v1867, %v1902
      %v1904 = vadd.f32 %v1868, %v1902
      %v1905 = vadd.f32 %v1869, %v1902
      %v1906 = vadd.f32 %v1870, %v1902
      %v1907 = vadd.f32 %v1871, %v1902
      %v1908 = vadd.f32 %v1872, %v1902
      %v1909 = vadd.f32 %v1873, %v1902
      %v1910 = vadd.f32 %v1874, %v1902
      %v1911 = vadd.f32 %v1875, %v1902
      %v1912 = vadd.f32 %v1876, %v1902
      %v1913 = vadd.f32 %v1877, %v1902
      %v1914 = vadd.f32 %v1878, %v1902
      %v1915 = vadd.f32 %v1879, %v1902
      %v1916 = vadd.f32 %v1880, %v1902
      %v1917 = vadd.f32 %v1881, %v1902
      %v1918 = vadd.f32 %v1882, %v1902
      %v1919 = vadd.f32 %v1883, %v1902
      %v1920 = vadd.f32 %v1884, %v1902
      %v1921 = vadd.f32 %v1885, %v1902
      %v1922 = vadd.f32 %v1886, %v1902
      %v1923 = vadd.f32 %v1887, %v1902
      %v1924 = vadd.f32 %v1888, %v1902
      %v1925 = vadd.f32 %v1889, %v1902
      %v1926 = vadd.f32 %v1890, %v1902
      %v1927 = vadd.f32 %v1891, %v1902
      %v1928 = vadd.f32 %v1892, %v1902
      %v1929 = vadd.f32 %v1893, %v1902
      %v1930 = vadd.f32 %v1894, %v1902
      %v1931 = vadd.f32 %v1895, %v1902
      %v1932 = vadd.f32 %v1896, %v1902
      %v1933 = vadd.f32 %v1897, %v1902
      %v1934 = vadd.f32 %v1898, %v1902
      %v1935 = vmul.f32 %v427, %v1903
      %v1936 = vmul.f32 %v430, %v1904
      %v1937 = vmul.f32 %v435, %v1905
      %v1938 = vmul.f32 %v438, %v1906
      %v1939 = vmul.f32 %v443, %v1907
      %v1940 = vmul.f32 %v446, %v1908
      %v1941 = vmul.f32 %v451, %v1909
      %v1942 = vmul.f32 %v454, %v1910
      %v1943 = vmul.f32 %v459, %v1911
      %v1944 = vmul.f32 %v462, %v1912
      %v1945 = vmul.f32 %v467, %v1913
      %v1946 = vmul.f32 %v470, %v1914
      %v1947 = vmul.f32 %v475, %v1915
      %v1948 = vmul.f32 %v478, %v1916
      %v1949 = vmul.f32 %v483, %v1917
      %v1950 = vmul.f32 %v486, %v1918
      %v1951 = vmul.f32 %v491, %v1919
      %v1952 = vmul.f32 %v494, %v1920
      %v1953 = vmul.f32 %v499, %v1921
      %v1954 = vmul.f32 %v502, %v1922
      %v1955 = vmul.f32 %v507, %v1923
      %v1956 = vmul.f32 %v510, %v1924
      %v1957 = vmul.f32 %v515, %v1925
      %v1958 = vmul.f32 %v518, %v1926
      %v1959 = vmul.f32 %v523, %v1927
      %v1960 = vmul.f32 %v526, %v1928
      %v1961 = vmul.f32 %v531, %v1929
      %v1962 = vmul.f32 %v534, %v1930
      %v1963 = vmul.f32 %v539, %v1931
      %v1964 = vmul.f32 %v542, %v1932
      %v1965 = vmul.f32 %v547, %v1933
      %v1966 = vmul.f32 %v550, %v1934
      %v1967 = vmax.f32 %v1739, %v1935
      %v1968 = vmax.f32 %v1740, %v1936
      %v1969 = vmax.f32 %v1741, %v1937
      %v1970 = vmax.f32 %v1742, %v1938
      %v1971 = vmax.f32 %v1743, %v1939
      %v1972 = vmax.f32 %v1744, %v1940
      %v1973 = vmax.f32 %v1745, %v1941
      %v1974 = vmax.f32 %v1746, %v1942
      %v1975 = vmax.f32 %v1747, %v1943
      %v1976 = vmax.f32 %v1748, %v1944
      %v1977 = vmax.f32 %v1749, %v1945
      %v1978 = vmax.f32 %v1750, %v1946
      %v1979 = vmax.f32 %v1751, %v1947
      %v1980 = vmax.f32 %v1752, %v1948
      %v1981 = vmax.f32 %v1753, %v1949
      %v1982 = vmax.f32 %v1754, %v1950
      %v1983 = vmax.f32 %v1755, %v1951
      %v1984 = vmax.f32 %v1756, %v1952
      %v1985 = vmax.f32 %v1757, %v1953
      %v1986 = vmax.f32 %v1758, %v1954
      %v1987 = vmax.f32 %v1759, %v1955
      %v1988 = vmax.f32 %v1760, %v1956
      %v1989 = vmax.f32 %v1761, %v1957
      %v1990 = vmax.f32 %v1762, %v1958
      %v1991 = vmax.f32 %v1763, %v1959
      %v1992 = vmax.f32 %v1764, %v1960
      %v1993 = vmax.f32 %v1765, %v1961
      %v1994 = vmax.f32 %v1766, %v1962
      %v1995 = vmax.f32 %v1767, %v1963
      %v1996 = vmax.f32 %v1768, %v1964
      %v1997 = vmax.f32 %v1769, %v1965
      %v1998 = vmax.f32 %v1770, %v1966
      %v1999 = vld [vmem:[#allocation2 + $0x107] sm:$0xff]
      %v2000 = vld [vmem:[#allocation2 + $0x10f] sm:$0xff]
      %v2001 = vsel %vm1507, %v1445, 0.0
      %v2002 = vsel %vm1508, %v1446, 0.0
      %v2003 = vsel %vm1509, %v1447, 0.0
      %v2004 = vsel %vm1510, %v1448, 0.0
      %v2005 = vsel %vm1511, %v1449, 0.0
      %v2006 = vsel %vm1512, %v1450, 0.0
      %v2007 = vsel %vm1513, %v1451, 0.0
      %v2008 = vsel %vm1514, %v1452, 0.0
      %v2009 = vsel %vm1515, %v1453, 0.0
      %v2010 = vsel %vm1516, %v1454, 0.0
      %v2011 = vsel %vm1517, %v1455, 0.0
      %v2012 = vsel %vm1518, %v1456, 0.0
      %v2013 = vsel %vm1519, %v1457, 0.0
      %v2014 = vsel %vm1520, %v1458, 0.0
      %v2015 = vsel %vm1521, %v1459, 0.0
      %v2016 = vsel %vm1522, %v1460, 0.0
      %v2017 = vsel %vm1523, %v1461, 0.0
      %v2018 = vsel %vm1524, %v1462, 0.0
      %v2019 = vsel %vm1525, %v1463, 0.0
      %v2020 = vsel %vm1526, %v1464, 0.0
      %v2021 = vsel %vm1527, %v1465, 0.0
      %v2022 = vsel %vm1528, %v1466, 0.0
      %v2023 = vsel %vm1529, %v1467, 0.0
      %v2024 = vsel %vm1530, %v1468, 0.0
      %v2025 = vsel %vm1531, %v1469, 0.0
      %v2026 = vsel %vm1532, %v1470, 0.0
      %v2027 = vsel %vm1533, %v1471, 0.0
      %v2028 = vsel %vm1534, %v1472, 0.0
      %v2029 = vsel %vm1535, %v1473, 0.0
      %v2030 = vsel %vm1536, %v1474, 0.0
      %v2031 = vsel %vm1537, %v1999, 0.0
      %v2032 = vsel %vm1538, %v2000, 0.0
      %v2033 = vlaneseq
      %v2034 = vshrl.u32 %v2033, 7
      %v2035 = vsub.s32 3, %v2034
      %v2036 = vrot.slane %v960, %v2035
      %v2037 = vadd.f32 %v2001, %v2036
      %v2038 = vadd.f32 %v2002, %v2036
      %v2039 = vadd.f32 %v2003, %v2036
      %v2040 = vadd.f32 %v2004, %v2036
      %v2041 = vadd.f32 %v2005, %v2036
      %v2042 = vadd.f32 %v2006, %v2036
      %v2043 = vadd.f32 %v2007, %v2036
      %v2044 = vadd.f32 %v2008, %v2036
      %v2045 = vadd.f32 %v2009, %v2036
      %v2046 = vadd.f32 %v2010, %v2036
      %v2047 = vadd.f32 %v2011, %v2036
      %v2048 = vadd.f32 %v2012, %v2036
      %v2049 = vadd.f32 %v2013, %v2036
      %v2050 = vadd.f32 %v2014, %v2036
      %v2051 = vadd.f32 %v2015, %v2036
      %v2052 = vadd.f32 %v2016, %v2036
      %v2053 = vadd.f32 %v2017, %v2036
      %v2054 = vadd.f32 %v2018, %v2036
      %v2055 = vadd.f32 %v2019, %v2036
      %v2056 = vadd.f32 %v2020, %v2036
      %v2057 = vadd.f32 %v2021, %v2036
      %v2058 = vadd.f32 %v2022, %v2036
      %v2059 = vadd.f32 %v2023, %v2036
      %v2060 = vadd.f32 %v2024, %v2036
      %v2061 = vadd.f32 %v2025, %v2036
      %v2062 = vadd.f32 %v2026, %v2036
      %v2063 = vadd.f32 %v2027, %v2036
      %v2064 = vadd.f32 %v2028, %v2036
      %v2065 = vadd.f32 %v2029, %v2036
      %v2066 = vadd.f32 %v2030, %v2036
      %v2067 = vadd.f32 %v2031, %v2036
      %v2068 = vadd.f32 %v2032, %v2036
      %v2069 = vmul.f32 %v427, %v2037
      %v2070 = vmul.f32 %v430, %v2038
      %v2071 = vmul.f32 %v435, %v2039
      %v2072 = vmul.f32 %v438, %v2040
      %v2073 = vmul.f32 %v443, %v2041
      %v2074 = vmul.f32 %v446, %v2042
      %v2075 = vmul.f32 %v451, %v2043
      %v2076 = vmul.f32 %v454, %v2044
      %v2077 = vmul.f32 %v459, %v2045
      %v2078 = vmul.f32 %v462, %v2046
      %v2079 = vmul.f32 %v467, %v2047
      %v2080 = vmul.f32 %v470, %v2048
      %v2081 = vmul.f32 %v475, %v2049
      %v2082 = vmul.f32 %v478, %v2050
      %v2083 = vmul.f32 %v483, %v2051
      %v2084 = vmul.f32 %v486, %v2052
      %v2085 = vmul.f32 %v491, %v2053
      %v2086 = vmul.f32 %v494, %v2054
      %v2087 = vmul.f32 %v499, %v2055
      %v2088 = vmul.f32 %v502, %v2056
      %v2089 = vmul.f32 %v507, %v2057
      %v2090 = vmul.f32 %v510, %v2058
      %v2091 = vmul.f32 %v515, %v2059
      %v2092 = vmul.f32 %v518, %v2060
      %v2093 = vmul.f32 %v523, %v2061
      %v2094 = vmul.f32 %v526, %v2062
      %v2095 = vmul.f32 %v531, %v2063
      %v2096 = vmul.f32 %v534, %v2064
      %v2097 = vmul.f32 %v539, %v2065
      %v2098 = vmul.f32 %v542, %v2066
      %v2099 = vmul.f32 %v547, %v2067
      %v2100 = vmul.f32 %v550, %v2068
      %v2101 = vmax.f32 %v1967, %v2069
      %v2102 = vmax.f32 %v1968, %v2070
      %v2103 = vmax.f32 %v1969, %v2071
      %v2104 = vmax.f32 %v1970, %v2072
      %v2105 = vmax.f32 %v1971, %v2073
      %v2106 = vmax.f32 %v1972, %v2074
      %v2107 = vmax.f32 %v1973, %v2075
      %v2108 = vmax.f32 %v1974, %v2076
      %v2109 = vmax.f32 %v1975, %v2077
      %v2110 = vmax.f32 %v1976, %v2078
      %v2111 = vmax.f32 %v1977, %v2079
      %v2112 = vmax.f32 %v1978, %v2080
      %v2113 = vmax.f32 %v1979, %v2081
      %v2114 = vmax.f32 %v1980, %v2082
      %v2115 = vmax.f32 %v1981, %v2083
      %v2116 = vmax.f32 %v1982, %v2084
      %v2117 = vmax.f32 %v1983, %v2085
      %v2118 = vmax.f32 %v1984, %v2086
      %v2119 = vmax.f32 %v1985, %v2087
      %v2120 = vmax.f32 %v1986, %v2088
      %v2121 = vmax.f32 %v1987, %v2089
      %v2122 = vmax.f32 %v1988, %v2090
      %v2123 = vmax.f32 %v1989, %v2091
      %v2124 = vmax.f32 %v1990, %v2092
      %v2125 = vmax.f32 %v1991, %v2093
      %v2126 = vmax.f32 %v1992, %v2094
      %v2127 = vmax.f32 %v1993, %v2095
      %v2128 = vmax.f32 %v1994, %v2096
      %v2129 = vmax.f32 %v1995, %v2097
      %v2130 = vmax.f32 %v1996, %v2098
      %v2131 = vmax.f32 %v1997, %v2099
      %v2132 = vmax.f32 %v1998, %v2100
      %v2133 = vld [vmem:[#allocation2 + $0x108] sm:$0xff]
      %v2134 = vld [vmem:[#allocation2 + $0x110] sm:$0xff]
      %v2135 = vlaneseq
      %v2136 = vshrl.u32 %v2135, 7
      %v2137 = vsub.s32 4, %v2136
      %v2138 = vrot.slane %v960, %v2137
      %v2139 = vadd.f32 %v1641, %v2138
      %v2140 = vadd.f32 %v1642, %v2138
      %v2141 = vadd.f32 %v1643, %v2138
      %v2142 = vadd.f32 %v1644, %v2138
      %v2143 = vadd.f32 %v1645, %v2138
      %v2144 = vadd.f32 %v1646, %v2138
      %v2145 = vadd.f32 %v1647, %v2138
      %v2146 = vadd.f32 %v1648, %v2138
      %v2147 = vadd.f32 %v1649, %v2138
      %v2148 = vadd.f32 %v1650, %v2138
      %v2149 = vadd.f32 %v1651, %v2138
      %v2150 = vadd.f32 %v1652, %v2138
      %v2151 = vadd.f32 %v1653, %v2138
      %v2152 = vadd.f32 %v1654, %v2138
      %v2153 = vadd.f32 %v1655, %v2138
      %v2154 = vadd.f32 %v1656, %v2138
      %v2155 = vadd.f32 %v1657, %v2138
      %v2156 = vadd.f32 %v1658, %v2138
      %v2157 = vadd.f32 %v1659, %v2138
      %v2158 = vadd.f32 %v1660, %v2138
      %v2159 = vadd.f32 %v1661, %v2138
      %v2160 = vadd.f32 %v1662, %v2138
      %v2161 = vadd.f32 %v1663, %v2138
      %v2162 = vadd.f32 %v1664, %v2138
      %v2163 = vadd.f32 %v1665, %v2138
      %v2164 = vadd.f32 %v1666, %v2138
      %v2165 = vadd.f32 %v1667, %v2138
      %v2166 = vadd.f32 %v1668, %v2138
      %v2167 = vadd.f32 %v1669, %v2138
      %v2168 = vadd.f32 %v1670, %v2138
      %v2169 = vadd.f32 %v2133, %v2138
      %v2170 = vadd.f32 %v2134, %v2138
      %v2171 = vmul.f32 %v427, %v2139
      %v2172 = vmul.f32 %v430, %v2140
      %v2173 = vmul.f32 %v435, %v2141
      %v2174 = vmul.f32 %v438, %v2142
      %v2175 = vmul.f32 %v443, %v2143
      %v2176 = vmul.f32 %v446, %v2144
      %v2177 = vmul.f32 %v451, %v2145
      %v2178 = vmul.f32 %v454, %v2146
      %v2179 = vmul.f32 %v459, %v2147
      %v2180 = vmul.f32 %v462, %v2148
      %v2181 = vmul.f32 %v467, %v2149
      %v2182 = vmul.f32 %v470, %v2150
      %v2183 = vmul.f32 %v475, %v2151
      %v2184 = vmul.f32 %v478, %v2152
      %v2185 = vmul.f32 %v483, %v2153
      %v2186 = vmul.f32 %v486, %v2154
      %v2187 = vmul.f32 %v491, %v2155
      %v2188 = vmul.f32 %v494, %v2156
      %v2189 = vmul.f32 %v499, %v2157
      %v2190 = vmul.f32 %v502, %v2158
      %v2191 = vmul.f32 %v507, %v2159
      %v2192 = vmul.f32 %v510, %v2160
      %v2193 = vmul.f32 %v515, %v2161
      %v2194 = vmul.f32 %v518, %v2162
      %v2195 = vmul.f32 %v523, %v2163
      %v2196 = vmul.f32 %v526, %v2164
      %v2197 = vmul.f32 %v531, %v2165
      %v2198 = vmul.f32 %v534, %v2166
      %v2199 = vmul.f32 %v539, %v2167
      %v2200 = vmul.f32 %v542, %v2168
      %v2201 = vmul.f32 %v547, %v2169
      %v2202 = vmul.f32 %v550, %v2170
      %v2203 = vmax.f32 %v2101, %v2171
      %v2204 = vmax.f32 %v2102, %v2172
      %v2205 = vmax.f32 %v2103, %v2173
      %v2206 = vmax.f32 %v2104, %v2174
      %v2207 = vmax.f32 %v2105, %v2175
      %v2208 = vmax.f32 %v2106, %v2176
      %v2209 = vmax.f32 %v2107, %v2177
      %v2210 = vmax.f32 %v2108, %v2178
      %v2211 = vmax.f32 %v2109, %v2179
      %v2212 = vmax.f32 %v2110, %v2180
      %v2213 = vmax.f32 %v2111, %v2181
      %v2214 = vmax.f32 %v2112, %v2182
      %v2215 = vmax.f32 %v2113, %v2183
      %v2216 = vmax.f32 %v2114, %v2184
      %v2217 = vmax.f32 %v2115, %v2185
      %v2218 = vmax.f32 %v2116, %v2186
      %v2219 = vmax.f32 %v2117, %v2187
      %v2220 = vmax.f32 %v2118, %v2188
      %v2221 = vmax.f32 %v2119, %v2189
      %v2222 = vmax.f32 %v2120, %v2190
      %v2223 = vmax.f32 %v2121, %v2191
      %v2224 = vmax.f32 %v2122, %v2192
      %v2225 = vmax.f32 %v2123, %v2193
      %v2226 = vmax.f32 %v2124, %v2194
      %v2227 = vmax.f32 %v2125, %v2195
      %v2228 = vmax.f32 %v2126, %v2196
      %v2229 = vmax.f32 %v2127, %v2197
      %v2230 = vmax.f32 %v2128, %v2198
      %v2231 = vmax.f32 %v2129, %v2199
      %v2232 = vmax.f32 %v2130, %v2200
      %v2233 = vmax.f32 %v2131, %v2201
      %v2234 = vmax.f32 %v2132, %v2202
      %v2235 = vld [vmem:[#allocation2 + $0x109] sm:$0xff]
      %v2236 = vld [vmem:[#allocation2 + $0x111] sm:$0xff]
      %v2237 = vsel %vm1835, %v1773, 0.0
      %v2238 = vsel %vm1836, %v1774, 0.0
      %v2239 = vsel %vm1837, %v1775, 0.0
      %v2240 = vsel %vm1838, %v1776, 0.0
      %v2241 = vsel %vm1839, %v1777, 0.0
      %v2242 = vsel %vm1840, %v1778, 0.0
      %v2243 = vsel %vm1841, %v1779, 0.0
      %v2244 = vsel %vm1842, %v1780, 0.0
      %v2245 = vsel %vm1843, %v1781, 0.0
      %v2246 = vsel %vm1844, %v1782, 0.0
      %v2247 = vsel %vm1845, %v1783, 0.0
      %v2248 = vsel %vm1846, %v1784, 0.0
      %v2249 = vsel %vm1847, %v1785, 0.0
      %v2250 = vsel %vm1848, %v1786, 0.0
      %v2251 = vsel %vm1849, %v1787, 0.0
      %v2252 = vsel %vm1850, %v1788, 0.0
      %v2253 = vsel %vm1851, %v1789, 0.0
      %v2254 = vsel %vm1852, %v1790, 0.0
      %v2255 = vsel %vm1853, %v1791, 0.0
      %v2256 = vsel %vm1854, %v1792, 0.0
      %v2257 = vsel %vm1855, %v1793, 0.0
      %v2258 = vsel %vm1856, %v1794, 0.0
      %v2259 = vsel %vm1857, %v1795, 0.0
      %v2260 = vsel %vm1858, %v1796, 0.0
      %v2261 = vsel %vm1859, %v1797, 0.0
      %v2262 = vsel %vm1860, %v1798, 0.0
      %v2263 = vsel %vm1861, %v1799, 0.0
      %v2264 = vsel %vm1862, %v1800, 0.0
      %v2265 = vsel %vm1863, %v1801, 0.0
      %v2266 = vsel %vm1864, %v1802, 0.0
      %v2267 = vsel %vm1865, %v2235, 0.0
      %v2268 = vsel %vm1866, %v2236, 0.0
      %v2269 = vlaneseq
      %v2270 = vshrl.u32 %v2269, 7
      %v2271 = vsub.s32 5, %v2270
      %v2272 = vrot.slane %v960, %v2271
      %v2273 = vadd.f32 %v2237, %v2272
      %v2274 = vadd.f32 %v2238, %v2272
      %v2275 = vadd.f32 %v2239, %v2272
      %v2276 = vadd.f32 %v2240, %v2272
      %v2277 = vadd.f32 %v2241, %v2272
      %v2278 = vadd.f32 %v2242, %v2272
      %v2279 = vadd.f32 %v2243, %v2272
      %v2280 = vadd.f32 %v2244, %v2272
      %v2281 = vadd.f32 %v2245, %v2272
      %v2282 = vadd.f32 %v2246, %v2272
      %v2283 = vadd.f32 %v2247, %v2272
      %v2284 = vadd.f32 %v2248, %v2272
      %v2285 = vadd.f32 %v2249, %v2272
      %v2286 = vadd.f32 %v2250, %v2272
      %v2287 = vadd.f32 %v2251, %v2272
      %v2288 = vadd.f32 %v2252, %v2272
      %v2289 = vadd.f32 %v2253, %v2272
      %v2290 = vadd.f32 %v2254, %v2272
      %v2291 = vadd.f32 %v2255, %v2272
      %v2292 = vadd.f32 %v2256, %v2272
      %v2293 = vadd.f32 %v2257, %v2272
      %v2294 = vadd.f32 %v2258, %v2272
      %v2295 = vadd.f32 %v2259, %v2272
      %v2296 = vadd.f32 %v2260, %v2272
      %v2297 = vadd.f32 %v2261, %v2272
      %v2298 = vadd.f32 %v2262, %v2272
      %v2299 = vadd.f32 %v2263, %v2272
      %v2300 = vadd.f32 %v2264, %v2272
      %v2301 = vadd.f32 %v2265, %v2272
      %v2302 = vadd.f32 %v2266, %v2272
      %v2303 = vadd.f32 %v2267, %v2272
      %v2304 = vadd.f32 %v2268, %v2272
      %v2305 = vmul.f32 %v427, %v2273
      %v2306 = vmul.f32 %v430, %v2274
      %v2307 = vmul.f32 %v435, %v2275
      %v2308 = vmul.f32 %v438, %v2276
      %v2309 = vmul.f32 %v443, %v2277
      %v2310 = vmul.f32 %v446, %v2278
      %v2311 = vmul.f32 %v451, %v2279
      %v2312 = vmul.f32 %v454, %v2280
      %v2313 = vmul.f32 %v459, %v2281
      %v2314 = vmul.f32 %v462, %v2282
      %v2315 = vmul.f32 %v467, %v2283
      %v2316 = vmul.f32 %v470, %v2284
      %v2317 = vmul.f32 %v475, %v2285
      %v2318 = vmul.f32 %v478, %v2286
      %v2319 = vmul.f32 %v483, %v2287
      %v2320 = vmul.f32 %v486, %v2288
      %v2321 = vmul.f32 %v491, %v2289
      %v2322 = vmul.f32 %v494, %v2290
      %v2323 = vmul.f32 %v499, %v2291
      %v2324 = vmul.f32 %v502, %v2292
      %v2325 = vmul.f32 %v507, %v2293
      %v2326 = vmul.f32 %v510, %v2294
      %v2327 = vmul.f32 %v515, %v2295
      %v2328 = vmul.f32 %v518, %v2296
      %v2329 = vmul.f32 %v523, %v2297
      %v2330 = vmul.f32 %v526, %v2298
      %v2331 = vmul.f32 %v531, %v2299
      %v2332 = vmul.f32 %v534, %v2300
      %v2333 = vmul.f32 %v539, %v2301
      %v2334 = vmul.f32 %v542, %v2302
      %v2335 = vmul.f32 %v547, %v2303
      %v2336 = vmul.f32 %v550, %v2304
      %v2337 = vmax.f32 %v2203, %v2305
      %v2338 = vmax.f32 %v2204, %v2306
      %v2339 = vmax.f32 %v2205, %v2307
      %v2340 = vmax.f32 %v2206, %v2308
      %v2341 = vmax.f32 %v2207, %v2309
      %v2342 = vmax.f32 %v2208, %v2310
      %v2343 = vmax.f32 %v2209, %v2311
      %v2344 = vmax.f32 %v2210, %v2312
      %v2345 = vmax.f32 %v2211, %v2313
      %v2346 = vmax.f32 %v2212, %v2314
      %v2347 = vmax.f32 %v2213, %v2315
      %v2348 = vmax.f32 %v2214, %v2316
      %v2349 = vmax.f32 %v2215, %v2317
      %v2350 = vmax.f32 %v2216, %v2318
      %v2351 = vmax.f32 %v2217, %v2319
      %v2352 = vmax.f32 %v2218, %v2320
      %v2353 = vmax.f32 %v2219, %v2321
      %v2354 = vmax.f32 %v2220, %v2322
      %v2355 = vmax.f32 %v2221, %v2323
      %v2356 = vmax.f32 %v2222, %v2324
      %v2357 = vmax.f32 %v2223, %v2325
      %v2358 = vmax.f32 %v2224, %v2326
      %v2359 = vmax.f32 %v2225, %v2327
      %v2360 = vmax.f32 %v2226, %v2328
      %v2361 = vmax.f32 %v2227, %v2329
      %v2362 = vmax.f32 %v2228, %v2330
      %v2363 = vmax.f32 %v2229, %v2331
      %v2364 = vmax.f32 %v2230, %v2332
      %v2365 = vmax.f32 %v2231, %v2333
      %v2366 = vmax.f32 %v2232, %v2334
      %v2367 = vmax.f32 %v2233, %v2335
      %v2368 = vmax.f32 %v2234, %v2336
      %v2369 = vld [vmem:[#allocation2 + $0x117] sm:$0xff]
      %v2370 = vld [vmem:[#allocation2 + $0x11f] sm:$0xff]
      %v2371 = vsel %vm1507, %v1447, 0.0
      %v2372 = vsel %vm1508, %v1448, 0.0
      %v2373 = vsel %vm1509, %v1449, 0.0
      %v2374 = vsel %vm1510, %v1450, 0.0
      %v2375 = vsel %vm1511, %v1451, 0.0
      %v2376 = vsel %vm1512, %v1452, 0.0
      %v2377 = vsel %vm1513, %v1453, 0.0
      %v2378 = vsel %vm1514, %v1454, 0.0
      %v2379 = vsel %vm1515, %v1455, 0.0
      %v2380 = vsel %vm1516, %v1456, 0.0
      %v2381 = vsel %vm1517, %v1457, 0.0
      %v2382 = vsel %vm1518, %v1458, 0.0
      %v2383 = vsel %vm1519, %v1459, 0.0
      %v2384 = vsel %vm1520, %v1460, 0.0
      %v2385 = vsel %vm1521, %v1461, 0.0
      %v2386 = vsel %vm1522, %v1462, 0.0
      %v2387 = vsel %vm1523, %v1463, 0.0
      %v2388 = vsel %vm1524, %v1464, 0.0
      %v2389 = vsel %vm1525, %v1465, 0.0
      %v2390 = vsel %vm1526, %v1466, 0.0
      %v2391 = vsel %vm1527, %v1467, 0.0
      %v2392 = vsel %vm1528, %v1468, 0.0
      %v2393 = vsel %vm1529, %v1469, 0.0
      %v2394 = vsel %vm1530, %v1470, 0.0
      %v2395 = vsel %vm1531, %v1471, 0.0
      %v2396 = vsel %vm1532, %v1472, 0.0
      %v2397 = vsel %vm1533, %v1473, 0.0
      %v2398 = vsel %vm1534, %v1474, 0.0
      %v2399 = vsel %vm1535, %v1999, 0.0
      %v2400 = vsel %vm1536, %v2000, 0.0
      %v2401 = vsel %vm1537, %v2369, 0.0
      %v2402 = vsel %vm1538, %v2370, 0.0
      %v2403 = vlaneseq
      %v2404 = vshrl.u32 %v2403, 7
      %v2405 = vsub.s32 6, %v2404
      %v2406 = vrot.slane %v960, %v2405
      %v2407 = vadd.f32 %v2371, %v2406
      %v2408 = vadd.f32 %v2372, %v2406
      %v2409 = vadd.f32 %v2373, %v2406
      %v2410 = vadd.f32 %v2374, %v2406
      %v2411 = vadd.f32 %v2375, %v2406
      %v2412 = vadd.f32 %v2376, %v2406
      %v2413 = vadd.f32 %v2377, %v2406
      %v2414 = vadd.f32 %v2378, %v2406
      %v2415 = vadd.f32 %v2379, %v2406
      %v2416 = vadd.f32 %v2380, %v2406
      %v2417 = vadd.f32 %v2381, %v2406
      %v2418 = vadd.f32 %v2382, %v2406
      %v2419 = vadd.f32 %v2383, %v2406
      %v2420 = vadd.f32 %v2384, %v2406
      %v2421 = vadd.f32 %v2385, %v2406
      %v2422 = vadd.f32 %v2386, %v2406
      %v2423 = vadd.f32 %v2387, %v2406
      %v2424 = vadd.f32 %v2388, %v2406
      %v2425 = vadd.f32 %v2389, %v2406
      %v2426 = vadd.f32 %v2390, %v2406
      %v2427 = vadd.f32 %v2391, %v2406
      %v2428 = vadd.f32 %v2392, %v2406
      %v2429 = vadd.f32 %v2393, %v2406
      %v2430 = vadd.f32 %v2394, %v2406
      %v2431 = vadd.f32 %v2395, %v2406
      %v2432 = vadd.f32 %v2396, %v2406
      %v2433 = vadd.f32 %v2397, %v2406
      %v2434 = vadd.f32 %v2398, %v2406
      %v2435 = vadd.f32 %v2399, %v2406
      %v2436 = vadd.f32 %v2400, %v2406
      %v2437 = vadd.f32 %v2401, %v2406
      %v2438 = vadd.f32 %v2402, %v2406
      %v2439 = vmul.f32 %v427, %v2407
      %v2440 = vmul.f32 %v430, %v2408
      %v2441 = vmul.f32 %v435, %v2409
      %v2442 = vmul.f32 %v438, %v2410
      %v2443 = vmul.f32 %v443, %v2411
      %v2444 = vmul.f32 %v446, %v2412
      %v2445 = vmul.f32 %v451, %v2413
      %v2446 = vmul.f32 %v454, %v2414
      %v2447 = vmul.f32 %v459, %v2415
      %v2448 = vmul.f32 %v462, %v2416
      %v2449 = vmul.f32 %v467, %v2417
      %v2450 = vmul.f32 %v470, %v2418
      %v2451 = vmul.f32 %v475, %v2419
      %v2452 = vmul.f32 %v478, %v2420
      %v2453 = vmul.f32 %v483, %v2421
      %v2454 = vmul.f32 %v486, %v2422
      %v2455 = vmul.f32 %v491, %v2423
      %v2456 = vmul.f32 %v494, %v2424
      %v2457 = vmul.f32 %v499, %v2425
      %v2458 = vmul.f32 %v502, %v2426
      %v2459 = vmul.f32 %v507, %v2427
      %v2460 = vmul.f32 %v510, %v2428
      %v2461 = vmul.f32 %v515, %v2429
      %v2462 = vmul.f32 %v518, %v2430
      %v2463 = vmul.f32 %v523, %v2431
      %v2464 = vmul.f32 %v526, %v2432
      %v2465 = vmul.f32 %v531, %v2433
      %v2466 = vmul.f32 %v534, %v2434
      %v2467 = vmul.f32 %v539, %v2435
      %v2468 = vmul.f32 %v542, %v2436
      %v2469 = vmul.f32 %v547, %v2437
      %v2470 = vmul.f32 %v550, %v2438
      %v2471 = vmax.f32 %v2337, %v2439
      %v2472 = vmax.f32 %v2338, %v2440
      %v2473 = vmax.f32 %v2339, %v2441
      %v2474 = vmax.f32 %v2340, %v2442
      %v2475 = vmax.f32 %v2341, %v2443
      %v2476 = vmax.f32 %v2342, %v2444
      %v2477 = vmax.f32 %v2343, %v2445
      %v2478 = vmax.f32 %v2344, %v2446
      %v2479 = vmax.f32 %v2345, %v2447
      %v2480 = vmax.f32 %v2346, %v2448
      %v2481 = vmax.f32 %v2347, %v2449
      %v2482 = vmax.f32 %v2348, %v2450
      %v2483 = vmax.f32 %v2349, %v2451
      %v2484 = vmax.f32 %v2350, %v2452
      %v2485 = vmax.f32 %v2351, %v2453
      %v2486 = vmax.f32 %v2352, %v2454
      %v2487 = vmax.f32 %v2353, %v2455
      %v2488 = vmax.f32 %v2354, %v2456
      %v2489 = vmax.f32 %v2355, %v2457
      %v2490 = vmax.f32 %v2356, %v2458
      %v2491 = vmax.f32 %v2357, %v2459
      %v2492 = vmax.f32 %v2358, %v2460
      %v2493 = vmax.f32 %v2359, %v2461
      %v2494 = vmax.f32 %v2360, %v2462
      %v2495 = vmax.f32 %v2361, %v2463
      %v2496 = vmax.f32 %v2362, %v2464
      %v2497 = vmax.f32 %v2363, %v2465
      %v2498 = vmax.f32 %v2364, %v2466
      %v2499 = vmax.f32 %v2365, %v2467
      %v2500 = vmax.f32 %v2366, %v2468
      %v2501 = vmax.f32 %v2367, %v2469
      %v2502 = vmax.f32 %v2368, %v2470
      %v2503 = vld [vmem:[#allocation2 + $0x118] sm:$0xff]
      %v2504 = vld [vmem:[#allocation2 + $0x120] sm:$0xff]
      %v2505 = vlaneseq
      %v2506 = vshrl.u32 %v2505, 7
      %v2507 = vsub.s32 7, %v2506
      %v2508 = vrot.slane %v960, %v2507
      %v2509 = vadd.f32 %v1643, %v2508
      %v2510 = vadd.f32 %v1644, %v2508
      %v2511 = vadd.f32 %v1645, %v2508
      %v2512 = vadd.f32 %v1646, %v2508
      %v2513 = vadd.f32 %v1647, %v2508
      %v2514 = vadd.f32 %v1648, %v2508
      %v2515 = vadd.f32 %v1649, %v2508
      %v2516 = vadd.f32 %v1650, %v2508
      %v2517 = vadd.f32 %v1651, %v2508
      %v2518 = vadd.f32 %v1652, %v2508
      %v2519 = vadd.f32 %v1653, %v2508
      %v2520 = vadd.f32 %v1654, %v2508
      %v2521 = vadd.f32 %v1655, %v2508
      %v2522 = vadd.f32 %v1656, %v2508
      %v2523 = vadd.f32 %v1657, %v2508
      %v2524 = vadd.f32 %v1658, %v2508
      %v2525 = vadd.f32 %v1659, %v2508
      %v2526 = vadd.f32 %v1660, %v2508
      %v2527 = vadd.f32 %v1661, %v2508
      %v2528 = vadd.f32 %v1662, %v2508
      %v2529 = vadd.f32 %v1663, %v2508
      %v2530 = vadd.f32 %v1664, %v2508
      %v2531 = vadd.f32 %v1665, %v2508
      %v2532 = vadd.f32 %v1666, %v2508
      %v2533 = vadd.f32 %v1667, %v2508
      %v2534 = vadd.f32 %v1668, %v2508
      %v2535 = vadd.f32 %v1669, %v2508
      %v2536 = vadd.f32 %v1670, %v2508
      %v2537 = vadd.f32 %v2133, %v2508
      %v2538 = vadd.f32 %v2134, %v2508
      %v2539 = vadd.f32 %v2503, %v2508
      %v2540 = vadd.f32 %v2504, %v2508
      %v2541 = vmul.f32 %v427, %v2509
      %v2542 = vmul.f32 %v430, %v2510
      %v2543 = vmul.f32 %v435, %v2511
      %v2544 = vmul.f32 %v438, %v2512
      %v2545 = vmul.f32 %v443, %v2513
      %v2546 = vmul.f32 %v446, %v2514
      %v2547 = vmul.f32 %v451, %v2515
      %v2548 = vmul.f32 %v454, %v2516
      %v2549 = vmul.f32 %v459, %v2517
      %v2550 = vmul.f32 %v462, %v2518
      %v2551 = vmul.f32 %v467, %v2519
      %v2552 = vmul.f32 %v470, %v2520
      %v2553 = vmul.f32 %v475, %v2521
      %v2554 = vmul.f32 %v478, %v2522
      %v2555 = vmul.f32 %v483, %v2523
      %v2556 = vmul.f32 %v486, %v2524
      %v2557 = vmul.f32 %v491, %v2525
      %v2558 = vmul.f32 %v494, %v2526
      %v2559 = vmul.f32 %v499, %v2527
      %v2560 = vmul.f32 %v502, %v2528
      %v2561 = vmul.f32 %v507, %v2529
      %v2562 = vmul.f32 %v510, %v2530
      %v2563 = vmul.f32 %v515, %v2531
      %v2564 = vmul.f32 %v518, %v2532
      %v2565 = vmul.f32 %v523, %v2533
      %v2566 = vmul.f32 %v526, %v2534
      %v2567 = vmul.f32 %v531, %v2535
      %v2568 = vmul.f32 %v534, %v2536
      %v2569 = vmul.f32 %v539, %v2537
      %v2570 = vmul.f32 %v542, %v2538
      %v2571 = vmul.f32 %v547, %v2539
      %v2572 = vmul.f32 %v550, %v2540
      %v2573 = vmax.f32 %v2471, %v2541
      %v2574 = vmax.f32 %v2472, %v2542
      %v2575 = vmax.f32 %v2473, %v2543
      %v2576 = vmax.f32 %v2474, %v2544
      %v2577 = vmax.f32 %v2475, %v2545
      %v2578 = vmax.f32 %v2476, %v2546
      %v2579 = vmax.f32 %v2477, %v2547
      %v2580 = vmax.f32 %v2478, %v2548
      %v2581 = vmax.f32 %v2479, %v2549
      %v2582 = vmax.f32 %v2480, %v2550
      %v2583 = vmax.f32 %v2481, %v2551
      %v2584 = vmax.f32 %v2482, %v2552
      %v2585 = vmax.f32 %v2483, %v2553
      %v2586 = vmax.f32 %v2484, %v2554
      %v2587 = vmax.f32 %v2485, %v2555
      %v2588 = vmax.f32 %v2486, %v2556
      %v2589 = vmax.f32 %v2487, %v2557
      %v2590 = vmax.f32 %v2488, %v2558
      %v2591 = vmax.f32 %v2489, %v2559
      %v2592 = vmax.f32 %v2490, %v2560
      %v2593 = vmax.f32 %v2491, %v2561
      %v2594 = vmax.f32 %v2492, %v2562
      %v2595 = vmax.f32 %v2493, %v2563
      %v2596 = vmax.f32 %v2494, %v2564
      %v2597 = vmax.f32 %v2495, %v2565
      %v2598 = vmax.f32 %v2496, %v2566
      %v2599 = vmax.f32 %v2497, %v2567
      %v2600 = vmax.f32 %v2498, %v2568
      %v2601 = vmax.f32 %v2499, %v2569
      %v2602 = vmax.f32 %v2500, %v2570
      %v2603 = vmax.f32 %v2501, %v2571
      %v2604 = vmax.f32 %v2502, %v2572
      %v2605 = vld [vmem:[#allocation2 + $0x119] sm:$0xff]
      %v2606 = vld [vmem:[#allocation2 + $0x121] sm:$0xff]
      %v2607 = vsel %vm1835, %v1775, 0.0
      %v2608 = vsel %vm1836, %v1776, 0.0
      %v2609 = vsel %vm1837, %v1777, 0.0
      %v2610 = vsel %vm1838, %v1778, 0.0
      %v2611 = vsel %vm1839, %v1779, 0.0
      %v2612 = vsel %vm1840, %v1780, 0.0
      %v2613 = vsel %vm1841, %v1781, 0.0
      %v2614 = vsel %vm1842, %v1782, 0.0
      %v2615 = vsel %vm1843, %v1783, 0.0
      %v2616 = vsel %vm1844, %v1784, 0.0
      %v2617 = vsel %vm1845, %v1785, 0.0
      %v2618 = vsel %vm1846, %v1786, 0.0
      %v2619 = vsel %vm1847, %v1787, 0.0
      %v2620 = vsel %vm1848, %v1788, 0.0
      %v2621 = vsel %vm1849, %v1789, 0.0
      %v2622 = vsel %vm1850, %v1790, 0.0
      %v2623 = vsel %vm1851, %v1791, 0.0
      %v2624 = vsel %vm1852, %v1792, 0.0
      %v2625 = vsel %vm1853, %v1793, 0.0
      %v2626 = vsel %vm1854, %v1794, 0.0
      %v2627 = vsel %vm1855, %v1795, 0.0
      %v2628 = vsel %vm1856, %v1796, 0.0
      %v2629 = vsel %vm1857, %v1797, 0.0
      %v2630 = vsel %vm1858, %v1798, 0.0
      %v2631 = vsel %vm1859, %v1799, 0.0
      %v2632 = vsel %vm1860, %v1800, 0.0
      %v2633 = vsel %vm1861, %v1801, 0.0
      %v2634 = vsel %vm1862, %v1802, 0.0
      %v2635 = vsel %vm1863, %v2235, 0.0
      %v2636 = vsel %vm1864, %v2236, 0.0
      %v2637 = vsel %vm1865, %v2605, 0.0
      %v2638 = vsel %vm1866, %v2606, 0.0
      %v2639 = vlaneseq
      %v2640 = vshrl.u32 %v2639, 7
      %v2641 = vsub.s32 0, %v2640
      %v2642 = vrot.slane %v961, %v2641
      %v2643 = vadd.f32 %v2607, %v2642
      %v2644 = vadd.f32 %v2608, %v2642
      %v2645 = vadd.f32 %v2609, %v2642
      %v2646 = vadd.f32 %v2610, %v2642
      %v2647 = vadd.f32 %v2611, %v2642
      %v2648 = vadd.f32 %v2612, %v2642
      %v2649 = vadd.f32 %v2613, %v2642
      %v2650 = vadd.f32 %v2614, %v2642
      %v2651 = vadd.f32 %v2615, %v2642
      %v2652 = vadd.f32 %v2616, %v2642
      %v2653 = vadd.f32 %v2617, %v2642
      %v2654 = vadd.f32 %v2618, %v2642
      %v2655 = vadd.f32 %v2619, %v2642
      %v2656 = vadd.f32 %v2620, %v2642
      %v2657 = vadd.f32 %v2621, %v2642
      %v2658 = vadd.f32 %v2622, %v2642
      %v2659 = vadd.f32 %v2623, %v2642
      %v2660 = vadd.f32 %v2624, %v2642
      %v2661 = vadd.f32 %v2625, %v2642
      %v2662 = vadd.f32 %v2626, %v2642
      %v2663 = vadd.f32 %v2627, %v2642
      %v2664 = vadd.f32 %v2628, %v2642
      %v2665 = vadd.f32 %v2629, %v2642
      %v2666 = vadd.f32 %v2630, %v2642
      %v2667 = vadd.f32 %v2631, %v2642
      %v2668 = vadd.f32 %v2632, %v2642
      %v2669 = vadd.f32 %v2633, %v2642
      %v2670 = vadd.f32 %v2634, %v2642
      %v2671 = vadd.f32 %v2635, %v2642
      %v2672 = vadd.f32 %v2636, %v2642
      %v2673 = vadd.f32 %v2637, %v2642
      %v2674 = vadd.f32 %v2638, %v2642
      %v2675 = vmul.f32 %v427, %v2643
      %v2676 = vmul.f32 %v430, %v2644
      %v2677 = vmul.f32 %v435, %v2645
      %v2678 = vmul.f32 %v438, %v2646
      %v2679 = vmul.f32 %v443, %v2647
      %v2680 = vmul.f32 %v446, %v2648
      %v2681 = vmul.f32 %v451, %v2649
      %v2682 = vmul.f32 %v454, %v2650
      %v2683 = vmul.f32 %v459, %v2651
      %v2684 = vmul.f32 %v462, %v2652
      %v2685 = vmul.f32 %v467, %v2653
      %v2686 = vmul.f32 %v470, %v2654
      %v2687 = vmul.f32 %v475, %v2655
      %v2688 = vmul.f32 %v478, %v2656
      %v2689 = vmul.f32 %v483, %v2657
      %v2690 = vmul.f32 %v486, %v2658
      %v2691 = vmul.f32 %v491, %v2659
      %v2692 = vmul.f32 %v494, %v2660
      %v2693 = vmul.f32 %v499, %v2661
      %v2694 = vmul.f32 %v502, %v2662
      %v2695 = vmul.f32 %v507, %v2663
      %v2696 = vmul.f32 %v510, %v2664
      %v2697 = vmul.f32 %v515, %v2665
      %v2698 = vmul.f32 %v518, %v2666
      %v2699 = vmul.f32 %v523, %v2667
      %v2700 = vmul.f32 %v526, %v2668
      %v2701 = vmul.f32 %v531, %v2669
      %v2702 = vmul.f32 %v534, %v2670
      %v2703 = vmul.f32 %v539, %v2671
      %v2704 = vmul.f32 %v542, %v2672
      %v2705 = vmul.f32 %v547, %v2673
      %v2706 = vmul.f32 %v550, %v2674
      %v2707 = vmax.f32 %v2573, %v2675
      %v2708 = vmax.f32 %v2574, %v2676
      %v2709 = vmax.f32 %v2575, %v2677
      %v2710 = vmax.f32 %v2576, %v2678
      %v2711 = vmax.f32 %v2577, %v2679
      %v2712 = vmax.f32 %v2578, %v2680
      %v2713 = vmax.f32 %v2579, %v2681
      %v2714 = vmax.f32 %v2580, %v2682
      %v2715 = vmax.f32 %v2581, %v2683
      %v2716 = vmax.f32 %v2582, %v2684
      %v2717 = vmax.f32 %v2583, %v2685
      %v2718 = vmax.f32 %v2584, %v2686
      %v2719 = vmax.f32 %v2585, %v2687
      %v2720 = vmax.f32 %v2586, %v2688
      %v2721 = vmax.f32 %v2587, %v2689
      %v2722 = vmax.f32 %v2588, %v2690
      %v2723 = vmax.f32 %v2589, %v2691
      %v2724 = vmax.f32 %v2590, %v2692
      %v2725 = vmax.f32 %v2591, %v2693
      %v2726 = vmax.f32 %v2592, %v2694
      %v2727 = vmax.f32 %v2593, %v2695
      %v2728 = vmax.f32 %v2594, %v2696
      %v2729 = vmax.f32 %v2595, %v2697
      %v2730 = vmax.f32 %v2596, %v2698
      %v2731 = vmax.f32 %v2597, %v2699
      %v2732 = vmax.f32 %v2598, %v2700
      %v2733 = vmax.f32 %v2599, %v2701
      %v2734 = vmax.f32 %v2600, %v2702
      %v2735 = vmax.f32 %v2601, %v2703
      %v2736 = vmax.f32 %v2602, %v2704
      %v2737 = vmax.f32 %v2603, %v2705
      %v2738 = vmax.f32 %v2604, %v2706
      %v2739 = vsub.f32 %v1607, %v2707
      %v2740 = vsub.f32 %v1608, %v2708
      %v2741 = vsub.f32 %v1609, %v2709
      %v2742 = vsub.f32 %v1610, %v2710
      %v2743 = vsub.f32 %v1611, %v2711
      %v2744 = vsub.f32 %v1612, %v2712
      %v2745 = vsub.f32 %v1613, %v2713
      %v2746 = vsub.f32 %v1614, %v2714
      %v2747 = vsub.f32 %v1615, %v2715
      %v2748 = vsub.f32 %v1616, %v2716
      %v2749 = vsub.f32 %v1617, %v2717
      %v2750 = vsub.f32 %v1618, %v2718
      %v2751 = vsub.f32 %v1619, %v2719
      %v2752 = vsub.f32 %v1620, %v2720
      %v2753 = vsub.f32 %v1621, %v2721
      %v2754 = vsub.f32 %v1622, %v2722
      %v2755 = vsub.f32 %v1623, %v2723
      %v2756 = vsub.f32 %v1624, %v2724
      %v2757 = vsub.f32 %v1625, %v2725
      %v2758 = vsub.f32 %v1626, %v2726
      %v2759 = vsub.f32 %v1627, %v2727
      %v2760 = vsub.f32 %v1628, %v2728
      %v2761 = vsub.f32 %v1629, %v2729
      %v2762 = vsub.f32 %v1630, %v2730
      %v2763 = vsub.f32 %v1631, %v2731
      %v2764 = vsub.f32 %v1632, %v2732
      %v2765 = vsub.f32 %v1633, %v2733
      %v2766 = vsub.f32 %v1634, %v2734
      %v2767 = vsub.f32 %v1635, %v2735
      %v2768 = vsub.f32 %v1636, %v2736
      %v2769 = vsub.f32 %v1637, %v2737
      %v2770 = vsub.f32 %v1638, %v2738
      %v2771 = vmul.f32 %v2739, 1.442695
      %v2772 = vpow.pop %v2771
      %v2773 = vmul.f32 %v2740, 1.442695
      %v2774 = vpow.pop %v2773
      %v2775 = vmul.f32 %v2741, 1.442695
      %v2776 = vpow.pop %v2775
      %v2777 = vmul.f32 %v2742, 1.442695
      %v2778 = vpow.pop %v2777
      %v2779 = vmul.f32 %v2743, 1.442695
      %v2780 = vpow.pop %v2779
      %v2781 = vmul.f32 %v2744, 1.442695
      %v2782 = vpow.pop %v2781
      %v2783 = vmul.f32 %v2745, 1.442695
      %v2784 = vpow.pop %v2783
      %v2785 = vmul.f32 %v2746, 1.442695
      %v2786 = vpow.pop %v2785
      %v2787 = vmul.f32 %v2747, 1.442695
      %v2788 = vpow.pop %v2787
      %v2789 = vmul.f32 %v2748, 1.442695
      %v2790 = vpow.pop %v2789
      %v2791 = vmul.f32 %v2749, 1.442695
      %v2792 = vpow.pop %v2791
      %v2793 = vmul.f32 %v2750, 1.442695
      %v2794 = vpow.pop %v2793
      %v2795 = vmul.f32 %v2751, 1.442695
      %v2796 = vpow.pop %v2795
      %v2797 = vmul.f32 %v2752, 1.442695
      %v2798 = vpow.pop %v2797
      %v2799 = vmul.f32 %v2753, 1.442695
      %v2800 = vpow.pop %v2799
      %v2801 = vmul.f32 %v2754, 1.442695
      %v2802 = vpow.pop %v2801
      %v2803 = vmul.f32 %v2755, 1.442695
      %v2804 = vpow.pop %v2803
      %v2805 = vmul.f32 %v2756, 1.442695
      %v2806 = vpow.pop %v2805
      %v2807 = vmul.f32 %v2757, 1.442695
      %v2808 = vpow.pop %v2807
      %v2809 = vmul.f32 %v2758, 1.442695
      %v2810 = vpow.pop %v2809
      %v2811 = vmul.f32 %v2759, 1.442695
      %v2812 = vpow.pop %v2811
      %v2813 = vmul.f32 %v2760, 1.442695
      %v2814 = vpow.pop %v2813
      %v2815 = vmul.f32 %v2761, 1.442695
      %v2816 = vpow.pop %v2815
      %v2817 = vmul.f32 %v2762, 1.442695
      %v2818 = vpow.pop %v2817
      %v2819 = vmul.f32 %v2763, 1.442695
      %v2820 = vpow.pop %v2819
      %v2821 = vmul.f32 %v2764, 1.442695
      %v2822 = vpow.pop %v2821
      %v2823 = vmul.f32 %v2765, 1.442695
      %v2824 = vpow.pop %v2823
      %v2825 = vmul.f32 %v2766, 1.442695
      %v2826 = vpow.pop %v2825
      %v2827 = vmul.f32 %v2767, 1.442695
      %v2828 = vpow.pop %v2827
      %v2829 = vmul.f32 %v2768, 1.442695
      %v2830 = vpow.pop %v2829
      %v2831 = vmul.f32 %v2769, 1.442695
      %v2832 = vpow.pop %v2831
      %v2833 = vmul.f32 %v2770, 1.442695
      %v2834 = vpow.pop %v2833
      %v2835 = vadd.f32 %v2772, 0.0
      %v2836 = vadd.f32 %v2774, 0.0
      %v2837 = vadd.f32 %v2776, 0.0
      %v2838 = vadd.f32 %v2778, 0.0
      %v2839 = vadd.f32 %v2780, 0.0
      %v2840 = vadd.f32 %v2782, 0.0
      %v2841 = vadd.f32 %v2784, 0.0
      %v2842 = vadd.f32 %v2786, 0.0
      %v2843 = vadd.f32 %v2788, 0.0
      %v2844 = vadd.f32 %v2790, 0.0
      %v2845 = vadd.f32 %v2792, 0.0
      %v2846 = vadd.f32 %v2794, 0.0
      %v2847 = vadd.f32 %v2796, 0.0
      %v2848 = vadd.f32 %v2798, 0.0
      %v2849 = vadd.f32 %v2800, 0.0
      %v2850 = vadd.f32 %v2802, 0.0
      %v2851 = vadd.f32 %v2804, 0.0
      %v2852 = vadd.f32 %v2806, 0.0
      %v2853 = vadd.f32 %v2808, 0.0
      %v2854 = vadd.f32 %v2810, 0.0
      %v2855 = vadd.f32 %v2812, 0.0
      %v2856 = vadd.f32 %v2814, 0.0
      %v2857 = vadd.f32 %v2816, 0.0
      %v2858 = vadd.f32 %v2818, 0.0
      %v2859 = vadd.f32 %v2820, 0.0
      %v2860 = vadd.f32 %v2822, 0.0
      %v2861 = vadd.f32 %v2824, 0.0
      %v2862 = vadd.f32 %v2826, 0.0
      %v2863 = vadd.f32 %v2828, 0.0
      %v2864 = vadd.f32 %v2830, 0.0
      %v2865 = vadd.f32 %v2832, 0.0
      %v2866 = vadd.f32 %v2834, 0.0
      %v2867 = vld [vmem:[#allocation3 + $0x7] sm:$0xff]
      %v2868 = vld [vmem:[#allocation3 + $0xf] sm:$0xff]
      %v2869 = vld [vmem:[#allocation3 + $0x17] sm:$0xff]
      %v2870 = vld [vmem:[#allocation3 + $0x1f] sm:$0xff]
      %v2871 = vld [vmem:[#allocation3 + $0x27] sm:$0xff]
      %v2872 = vld [vmem:[#allocation3 + $0x2f] sm:$0xff]
      %v2873 = vld [vmem:[#allocation3 + $0x37] sm:$0xff]
      %v2874 = vld [vmem:[#allocation3 + $0x3f] sm:$0xff]
      %v2875 = vld [vmem:[#allocation3 + $0x47] sm:$0xff]
      %v2876 = vld [vmem:[#allocation3 + $0x4f] sm:$0xff]
      %v2877 = vld [vmem:[#allocation3 + $0x57] sm:$0xff]
      %v2878 = vld [vmem:[#allocation3 + $0x5f] sm:$0xff]
      %v2879 = vld [vmem:[#allocation3 + $0x67] sm:$0xff]
      %v2880 = vld [vmem:[#allocation3 + $0x6f] sm:$0xff]
      %v2881 = vld [vmem:[#allocation3 + $0x77] sm:$0xff]
      %v2882 = vld [vmem:[#allocation3 + $0x7f] sm:$0xff]
      %v2883 = vld [vmem:[#allocation3 + $0x87] sm:$0xff]
      %v2884 = vld [vmem:[#allocation3 + $0x8f] sm:$0xff]
      %v2885 = vld [vmem:[#allocation3 + $0x97] sm:$0xff]
      %v2886 = vld [vmem:[#allocation3 + $0x9f] sm:$0xff]
      %v2887 = vld [vmem:[#allocation3 + $0xa7] sm:$0xff]
      %v2888 = vld [vmem:[#allocation3 + $0xaf] sm:$0xff]
      %v2889 = vld [vmem:[#allocation3 + $0xb7] sm:$0xff]
      %v2890 = vld [vmem:[#allocation3 + $0xbf] sm:$0xff]
      %v2891 = vld [vmem:[#allocation3 + $0xc7] sm:$0xff]
      %v2892 = vld [vmem:[#allocation3 + $0xcf] sm:$0xff]
      %v2893 = vld [vmem:[#allocation3 + $0xd7] sm:$0xff]
      %v2894 = vld [vmem:[#allocation3 + $0xdf] sm:$0xff]
      %v2895 = vld [vmem:[#allocation3 + $0xe7] sm:$0xff]
      %v2896 = vld [vmem:[#allocation3 + $0xef] sm:$0xff]
      %v2897 = vld [vmem:[#allocation3 + $0xf7] sm:$0xff]
      %v2898 = vld [vmem:[#allocation3 + $0xff] sm:$0xff]
      %v2899 = vsel %vm1507, %v2867, 0.0
      %v2900 = vsel %vm1508, %v2868, 0.0
      %v2901 = vsel %vm1509, %v2869, 0.0
      %v2902 = vsel %vm1510, %v2870, 0.0
      %v2903 = vsel %vm1511, %v2871, 0.0
      %v2904 = vsel %vm1512, %v2872, 0.0
      %v2905 = vsel %vm1513, %v2873, 0.0
      %v2906 = vsel %vm1514, %v2874, 0.0
      %v2907 = vsel %vm1515, %v2875, 0.0
      %v2908 = vsel %vm1516, %v2876, 0.0
      %v2909 = vsel %vm1517, %v2877, 0.0
      %v2910 = vsel %vm1518, %v2878, 0.0
      %v2911 = vsel %vm1519, %v2879, 0.0
      %v2912 = vsel %vm1520, %v2880, 0.0
      %v2913 = vsel %vm1521, %v2881, 0.0
      %v2914 = vsel %vm1522, %v2882, 0.0
      %v2915 = vsel %vm1523, %v2883, 0.0
      %v2916 = vsel %vm1524, %v2884, 0.0
      %v2917 = vsel %vm1525, %v2885, 0.0
      %v2918 = vsel %vm1526, %v2886, 0.0
      %v2919 = vsel %vm1527, %v2887, 0.0
      %v2920 = vsel %vm1528, %v2888, 0.0
      %v2921 = vsel %vm1529, %v2889, 0.0
      %v2922 = vsel %vm1530, %v2890, 0.0
      %v2923 = vsel %vm1531, %v2891, 0.0
      %v2924 = vsel %vm1532, %v2892, 0.0
      %v2925 = vsel %vm1533, %v2893, 0.0
      %v2926 = vsel %vm1534, %v2894, 0.0
      %v2927 = vsel %vm1535, %v2895, 0.0
      %v2928 = vsel %vm1536, %v2896, 0.0
      %v2929 = vsel %vm1537, %v2897, 0.0
      %v2930 = vsel %vm1538, %v2898, 0.0
      %v2931 = vmul.f32 %v2772, %v2899
      %v2932 = vmul.f32 %v2774, %v2900
      %v2933 = vmul.f32 %v2776, %v2901
      %v2934 = vmul.f32 %v2778, %v2902
      %v2935 = vmul.f32 %v2780, %v2903
      %v2936 = vmul.f32 %v2782, %v2904
      %v2937 = vmul.f32 %v2784, %v2905
      %v2938 = vmul.f32 %v2786, %v2906
      %v2939 = vmul.f32 %v2788, %v2907
      %v2940 = vmul.f32 %v2790, %v2908
      %v2941 = vmul.f32 %v2792, %v2909
      %v2942 = vmul.f32 %v2794, %v2910
      %v2943 = vmul.f32 %v2796, %v2911
      %v2944 = vmul.f32 %v2798, %v2912
      %v2945 = vmul.f32 %v2800, %v2913
      %v2946 = vmul.f32 %v2802, %v2914
      %v2947 = vmul.f32 %v2804, %v2915
      %v2948 = vmul.f32 %v2806, %v2916
      %v2949 = vmul.f32 %v2808, %v2917
      %v2950 = vmul.f32 %v2810, %v2918
      %v2951 = vmul.f32 %v2812, %v2919
      %v2952 = vmul.f32 %v2814, %v2920
      %v2953 = vmul.f32 %v2816, %v2921
      %v2954 = vmul.f32 %v2818, %v2922
      %v2955 = vmul.f32 %v2820, %v2923
      %v2956 = vmul.f32 %v2822, %v2924
      %v2957 = vmul.f32 %v2824, %v2925
      %v2958 = vmul.f32 %v2826, %v2926
      %v2959 = vmul.f32 %v2828, %v2927
      %v2960 = vmul.f32 %v2830, %v2928
      %v2961 = vmul.f32 %v2832, %v2929
      %v2962 = vmul.f32 %v2834, %v2930
      %v2963 = vadd.f32 %v2931, 0.0
      %v2964 = vadd.f32 %v2932, 0.0
      %v2965 = vadd.f32 %v2933, 0.0
      %v2966 = vadd.f32 %v2934, 0.0
      %v2967 = vadd.f32 %v2935, 0.0
      %v2968 = vadd.f32 %v2936, 0.0
      %v2969 = vadd.f32 %v2937, 0.0
      %v2970 = vadd.f32 %v2938, 0.0
      %v2971 = vadd.f32 %v2939, 0.0
      %v2972 = vadd.f32 %v2940, 0.0
      %v2973 = vadd.f32 %v2941, 0.0
      %v2974 = vadd.f32 %v2942, 0.0
      %v2975 = vadd.f32 %v2943, 0.0
      %v2976 = vadd.f32 %v2944, 0.0
      %v2977 = vadd.f32 %v2945, 0.0
      %v2978 = vadd.f32 %v2946, 0.0
      %v2979 = vadd.f32 %v2947, 0.0
      %v2980 = vadd.f32 %v2948, 0.0
      %v2981 = vadd.f32 %v2949, 0.0
      %v2982 = vadd.f32 %v2950, 0.0
      %v2983 = vadd.f32 %v2951, 0.0
      %v2984 = vadd.f32 %v2952, 0.0
      %v2985 = vadd.f32 %v2953, 0.0
      %v2986 = vadd.f32 %v2954, 0.0
      %v2987 = vadd.f32 %v2955, 0.0
      %v2988 = vadd.f32 %v2956, 0.0
      %v2989 = vadd.f32 %v2957, 0.0
      %v2990 = vadd.f32 %v2958, 0.0
      %v2991 = vadd.f32 %v2959, 0.0
      %v2992 = vadd.f32 %v2960, 0.0
      %v2993 = vadd.f32 %v2961, 0.0
      %v2994 = vadd.f32 %v2962, 0.0
      %v2995 = vsub.f32 %v1707, %v2707
      %v2996 = vsub.f32 %v1708, %v2708
      %v2997 = vsub.f32 %v1709, %v2709
      %v2998 = vsub.f32 %v1710, %v2710
      %v2999 = vsub.f32 %v1711, %v2711
      %v3000 = vsub.f32 %v1712, %v2712
      %v3001 = vsub.f32 %v1713, %v2713
      %v3002 = vsub.f32 %v1714, %v2714
      %v3003 = vsub.f32 %v1715, %v2715
      %v3004 = vsub.f32 %v1716, %v2716
      %v3005 = vsub.f32 %v1717, %v2717
      %v3006 = vsub.f32 %v1718, %v2718
      %v3007 = vsub.f32 %v1719, %v2719
      %v3008 = vsub.f32 %v1720, %v2720
      %v3009 = vsub.f32 %v1721, %v2721
      %v3010 = vsub.f32 %v1722, %v2722
      %v3011 = vsub.f32 %v1723, %v2723
      %v3012 = vsub.f32 %v1724, %v2724
      %v3013 = vsub.f32 %v1725, %v2725
      %v3014 = vsub.f32 %v1726, %v2726
      %v3015 = vsub.f32 %v1727, %v2727
      %v3016 = vsub.f32 %v1728, %v2728
      %v3017 = vsub.f32 %v1729, %v2729
      %v3018 = vsub.f32 %v1730, %v2730
      %v3019 = vsub.f32 %v1731, %v2731
      %v3020 = vsub.f32 %v1732, %v2732
      %v3021 = vsub.f32 %v1733, %v2733
      %v3022 = vsub.f32 %v1734, %v2734
      %v3023 = vsub.f32 %v1735, %v2735
      %v3024 = vsub.f32 %v1736, %v2736
      %v3025 = vsub.f32 %v1737, %v2737
      %v3026 = vsub.f32 %v1738, %v2738
      %v3027 = vmul.f32 %v2995, 1.442695
      %v3028 = vpow.pop %v3027
      %v3029 = vmul.f32 %v2996, 1.442695
      %v3030 = vpow.pop %v3029
      %v3031 = vmul.f32 %v2997, 1.442695
      %v3032 = vpow.pop %v3031
      %v3033 = vmul.f32 %v2998, 1.442695
      %v3034 = vpow.pop %v3033
      %v3035 = vmul.f32 %v2999, 1.442695
      %v3036 = vpow.pop %v3035
      %v3037 = vmul.f32 %v3000, 1.442695
      %v3038 = vpow.pop %v3037
      %v3039 = vmul.f32 %v3001, 1.442695
      %v3040 = vpow.pop %v3039
      %v3041 = vmul.f32 %v3002, 1.442695
      %v3042 = vpow.pop %v3041
      %v3043 = vmul.f32 %v3003, 1.442695
      %v3044 = vpow.pop %v3043
      %v3045 = vmul.f32 %v3004, 1.442695
      %v3046 = vpow.pop %v3045
      %v3047 = vmul.f32 %v3005, 1.442695
      %v3048 = vpow.pop %v3047
      %v3049 = vmul.f32 %v3006, 1.442695
      %v3050 = vpow.pop %v3049
      %v3051 = vmul.f32 %v3007, 1.442695
      %v3052 = vpow.pop %v3051
      %v3053 = vmul.f32 %v3008, 1.442695
      %v3054 = vpow.pop %v3053
      %v3055 = vmul.f32 %v3009, 1.442695
      %v3056 = vpow.pop %v3055
      %v3057 = vmul.f32 %v3010, 1.442695
      %v3058 = vpow.pop %v3057
      %v3059 = vmul.f32 %v3011, 1.442695
      %v3060 = vpow.pop %v3059
      %v3061 = vmul.f32 %v3012, 1.442695
      %v3062 = vpow.pop %v3061
      %v3063 = vmul.f32 %v3013, 1.442695
      %v3064 = vpow.pop %v3063
      %v3065 = vmul.f32 %v3014, 1.442695
      %v3066 = vpow.pop %v3065
      %v3067 = vmul.f32 %v3015, 1.442695
      %v3068 = vpow.pop %v3067
      %v3069 = vmul.f32 %v3016, 1.442695
      %v3070 = vpow.pop %v3069
      %v3071 = vmul.f32 %v3017, 1.442695
      %v3072 = vpow.pop %v3071
      %v3073 = vmul.f32 %v3018, 1.442695
      %v3074 = vpow.pop %v3073
      %v3075 = vmul.f32 %v3019, 1.442695
      %v3076 = vpow.pop %v3075
      %v3077 = vmul.f32 %v3020, 1.442695
      %v3078 = vpow.pop %v3077
      %v3079 = vmul.f32 %v3021, 1.442695
      %v3080 = vpow.pop %v3079
      %v3081 = vmul.f32 %v3022, 1.442695
      %v3082 = vpow.pop %v3081
      %v3083 = vmul.f32 %v3023, 1.442695
      %v3084 = vpow.pop %v3083
      %v3085 = vmul.f32 %v3024, 1.442695
      %v3086 = vpow.pop %v3085
      %v3087 = vmul.f32 %v3025, 1.442695
      %v3088 = vpow.pop %v3087
      %v3089 = vmul.f32 %v3026, 1.442695
      %v3090 = vpow.pop %v3089
      %v3091 = vadd.f32 %v2835, %v3028
      %v3092 = vadd.f32 %v2836, %v3030
      %v3093 = vadd.f32 %v2837, %v3032
      %v3094 = vadd.f32 %v2838, %v3034
      %v3095 = vadd.f32 %v2839, %v3036
      %v3096 = vadd.f32 %v2840, %v3038
      %v3097 = vadd.f32 %v2841, %v3040
      %v3098 = vadd.f32 %v2842, %v3042
      %v3099 = vadd.f32 %v2843, %v3044
      %v3100 = vadd.f32 %v2844, %v3046
      %v3101 = vadd.f32 %v2845, %v3048
      %v3102 = vadd.f32 %v2846, %v3050
      %v3103 = vadd.f32 %v2847, %v3052
      %v3104 = vadd.f32 %v2848, %v3054
      %v3105 = vadd.f32 %v2849, %v3056
      %v3106 = vadd.f32 %v2850, %v3058
      %v3107 = vadd.f32 %v2851, %v3060
      %v3108 = vadd.f32 %v2852, %v3062
      %v3109 = vadd.f32 %v2853, %v3064
      %v3110 = vadd.f32 %v2854, %v3066
      %v3111 = vadd.f32 %v2855, %v3068
      %v3112 = vadd.f32 %v2856, %v3070
      %v3113 = vadd.f32 %v2857, %v3072
      %v3114 = vadd.f32 %v2858, %v3074
      %v3115 = vadd.f32 %v2859, %v3076
      %v3116 = vadd.f32 %v2860, %v3078
      %v3117 = vadd.f32 %v2861, %v3080
      %v3118 = vadd.f32 %v2862, %v3082
      %v3119 = vadd.f32 %v2863, %v3084
      %v3120 = vadd.f32 %v2864, %v3086
      %v3121 = vadd.f32 %v2865, %v3088
      %v3122 = vadd.f32 %v2866, %v3090
      %v3123 = vld [vmem:[#allocation3 + $0x8] sm:$0xff]
      %v3124 = vld [vmem:[#allocation3 + $0x10] sm:$0xff]
      %v3125 = vld [vmem:[#allocation3 + $0x18] sm:$0xff]
      %v3126 = vld [vmem:[#allocation3 + $0x20] sm:$0xff]
      %v3127 = vld [vmem:[#allocation3 + $0x28] sm:$0xff]
      %v3128 = vld [vmem:[#allocation3 + $0x30] sm:$0xff]
      %v3129 = vld [vmem:[#allocation3 + $0x38] sm:$0xff]
      %v3130 = vld [vmem:[#allocation3 + $0x40] sm:$0xff]
      %v3131 = vld [vmem:[#allocation3 + $0x48] sm:$0xff]
      %v3132 = vld [vmem:[#allocation3 + $0x50] sm:$0xff]
      %v3133 = vld [vmem:[#allocation3 + $0x58] sm:$0xff]
      %v3134 = vld [vmem:[#allocation3 + $0x60] sm:$0xff]
      %v3135 = vld [vmem:[#allocation3 + $0x68] sm:$0xff]
      %v3136 = vld [vmem:[#allocation3 + $0x70] sm:$0xff]
      %v3137 = vld [vmem:[#allocation3 + $0x78] sm:$0xff]
      %v3138 = vld [vmem:[#allocation3 + $0x80] sm:$0xff]
      %v3139 = vld [vmem:[#allocation3 + $0x88] sm:$0xff]
      %v3140 = vld [vmem:[#allocation3 + $0x90] sm:$0xff]
      %v3141 = vld [vmem:[#allocation3 + $0x98] sm:$0xff]
      %v3142 = vld [vmem:[#allocation3 + $0xa0] sm:$0xff]
      %v3143 = vld [vmem:[#allocation3 + $0xa8] sm:$0xff]
      %v3144 = vld [vmem:[#allocation3 + $0xb0] sm:$0xff]
      %v3145 = vld [vmem:[#allocation3 + $0xb8] sm:$0xff]
      %v3146 = vld [vmem:[#allocation3 + $0xc0] sm:$0xff]
      %v3147 = vld [vmem:[#allocation3 + $0xc8] sm:$0xff]
      %v3148 = vld [vmem:[#allocation3 + $0xd0] sm:$0xff]
      %v3149 = vld [vmem:[#allocation3 + $0xd8] sm:$0xff]
      %v3150 = vld [vmem:[#allocation3 + $0xe0] sm:$0xff]
      %v3151 = vld [vmem:[#allocation3 + $0xe8] sm:$0xff]
      %v3152 = vld [vmem:[#allocation3 + $0xf0] sm:$0xff]
      %v3153 = vld [vmem:[#allocation3 + $0xf8] sm:$0xff]
      %v3154 = vld [vmem:[#allocation3 + $0x100] sm:$0xff]
      %v3155 = vmul.f32 %v3028, %v3123
      %v3156 = vmul.f32 %v3030, %v3124
      %v3157 = vmul.f32 %v3032, %v3125
      %v3158 = vmul.f32 %v3034, %v3126
      %v3159 = vmul.f32 %v3036, %v3127
      %v3160 = vmul.f32 %v3038, %v3128
      %v3161 = vmul.f32 %v3040, %v3129
      %v3162 = vmul.f32 %v3042, %v3130
      %v3163 = vmul.f32 %v3044, %v3131
      %v3164 = vmul.f32 %v3046, %v3132
      %v3165 = vmul.f32 %v3048, %v3133
      %v3166 = vmul.f32 %v3050, %v3134
      %v3167 = vmul.f32 %v3052, %v3135
      %v3168 = vmul.f32 %v3054, %v3136
      %v3169 = vmul.f32 %v3056, %v3137
      %v3170 = vmul.f32 %v3058, %v3138
      %v3171 = vmul.f32 %v3060, %v3139
      %v3172 = vmul.f32 %v3062, %v3140
      %v3173 = vmul.f32 %v3064, %v3141
      %v3174 = vmul.f32 %v3066, %v3142
      %v3175 = vmul.f32 %v3068, %v3143
      %v3176 = vmul.f32 %v3070, %v3144
      %v3177 = vmul.f32 %v3072, %v3145
      %v3178 = vmul.f32 %v3074, %v3146
      %v3179 = vmul.f32 %v3076, %v3147
      %v3180 = vmul.f32 %v3078, %v3148
      %v3181 = vmul.f32 %v3080, %v3149
      %v3182 = vmul.f32 %v3082, %v3150
      %v3183 = vmul.f32 %v3084, %v3151
      %v3184 = vmul.f32 %v3086, %v3152
      %v3185 = vmul.f32 %v3088, %v3153
      %v3186 = vmul.f32 %v3090, %v3154
      %v3187 = vadd.f32 %v2963, %v3155
      %v3188 = vadd.f32 %v2964, %v3156
      %v3189 = vadd.f32 %v2965, %v3157
      %v3190 = vadd.f32 %v2966, %v3158
      %v3191 = vadd.f32 %v2967, %v3159
      %v3192 = vadd.f32 %v2968, %v3160
      %v3193 = vadd.f32 %v2969, %v3161
      %v3194 = vadd.f32 %v2970, %v3162
      %v3195 = vadd.f32 %v2971, %v3163
      %v3196 = vadd.f32 %v2972, %v3164
      %v3197 = vadd.f32 %v2973, %v3165
      %v3198 = vadd.f32 %v2974, %v3166
      %v3199 = vadd.f32 %v2975, %v3167
      %v3200 = vadd.f32 %v2976, %v3168
      %v3201 = vadd.f32 %v2977, %v3169
      %v3202 = vadd.f32 %v2978, %v3170
      %v3203 = vadd.f32 %v2979, %v3171
      %v3204 = vadd.f32 %v2980, %v3172
      %v3205 = vadd.f32 %v2981, %v3173
      %v3206 = vadd.f32 %v2982, %v3174
      %v3207 = vadd.f32 %v2983, %v3175
      %v3208 = vadd.f32 %v2984, %v3176
      %v3209 = vadd.f32 %v2985, %v3177
      %v3210 = vadd.f32 %v2986, %v3178
      %v3211 = vadd.f32 %v2987, %v3179
      %v3212 = vadd.f32 %v2988, %v3180
      %v3213 = vadd.f32 %v2989, %v3181
      %v3214 = vadd.f32 %v2990, %v3182
      %v3215 = vadd.f32 %v2991, %v3183
      %v3216 = vadd.f32 %v2992, %v3184
      %v3217 = vadd.f32 %v2993, %v3185
      %v3218 = vadd.f32 %v2994, %v3186
      %v3219 = vsub.f32 %v1935, %v2707
      %v3220 = vsub.f32 %v1936, %v2708
      %v3221 = vsub.f32 %v1937, %v2709
      %v3222 = vsub.f32 %v1938, %v2710
      %v3223 = vsub.f32 %v1939, %v2711
      %v3224 = vsub.f32 %v1940, %v2712
      %v3225 = vsub.f32 %v1941, %v2713
      %v3226 = vsub.f32 %v1942, %v2714
      %v3227 = vsub.f32 %v1943, %v2715
      %v3228 = vsub.f32 %v1944, %v2716
      %v3229 = vsub.f32 %v1945, %v2717
      %v3230 = vsub.f32 %v1946, %v2718
      %v3231 = vsub.f32 %v1947, %v2719
      %v3232 = vsub.f32 %v1948, %v2720
      %v3233 = vsub.f32 %v1949, %v2721
      %v3234 = vsub.f32 %v1950, %v2722
      %v3235 = vsub.f32 %v1951, %v2723
      %v3236 = vsub.f32 %v1952, %v2724
      %v3237 = vsub.f32 %v1953, %v2725
      %v3238 = vsub.f32 %v1954, %v2726
      %v3239 = vsub.f32 %v1955, %v2727
      %v3240 = vsub.f32 %v1956, %v2728
      %v3241 = vsub.f32 %v1957, %v2729
      %v3242 = vsub.f32 %v1958, %v2730
      %v3243 = vsub.f32 %v1959, %v2731
      %v3244 = vsub.f32 %v1960, %v2732
      %v3245 = vsub.f32 %v1961, %v2733
      %v3246 = vsub.f32 %v1962, %v2734
      %v3247 = vsub.f32 %v1963, %v2735
      %v3248 = vsub.f32 %v1964, %v2736
      %v3249 = vsub.f32 %v1965, %v2737
      %v3250 = vsub.f32 %v1966, %v2738
      %v3251 = vmul.f32 %v3219, 1.442695
      %v3252 = vpow.pop %v3251
      %v3253 = vmul.f32 %v3220, 1.442695
      %v3254 = vpow.pop %v3253
      %v3255 = vmul.f32 %v3221, 1.442695
      %v3256 = vpow.pop %v3255
      %v3257 = vmul.f32 %v3222, 1.442695
      %v3258 = vpow.pop %v3257
      %v3259 = vmul.f32 %v3223, 1.442695
      %v3260 = vpow.pop %v3259
      %v3261 = vmul.f32 %v3224, 1.442695
      %v3262 = vpow.pop %v3261
      %v3263 = vmul.f32 %v3225, 1.442695
      %v3264 = vpow.pop %v3263
      %v3265 = vmul.f32 %v3226, 1.442695
      %v3266 = vpow.pop %v3265
      %v3267 = vmul.f32 %v3227, 1.442695
      %v3268 = vpow.pop %v3267
      %v3269 = vmul.f32 %v3228, 1.442695
      %v3270 = vpow.pop %v3269
      %v3271 = vmul.f32 %v3229, 1.442695
      %v3272 = vpow.pop %v3271
      %v3273 = vmul.f32 %v3230, 1.442695
      %v3274 = vpow.pop %v3273
      %v3275 = vmul.f32 %v3231, 1.442695
      %v3276 = vpow.pop %v3275
      %v3277 = vmul.f32 %v3232, 1.442695
      %v3278 = vpow.pop %v3277
      %v3279 = vmul.f32 %v3233, 1.442695
      %v3280 = vpow.pop %v3279
      %v3281 = vmul.f32 %v3234, 1.442695
      %v3282 = vpow.pop %v3281
      %v3283 = vmul.f32 %v3235, 1.442695
      %v3284 = vpow.pop %v3283
      %v3285 = vmul.f32 %v3236, 1.442695
      %v3286 = vpow.pop %v3285
      %v3287 = vmul.f32 %v3237, 1.442695
      %v3288 = vpow.pop %v3287
      %v3289 = vmul.f32 %v3238, 1.442695
      %v3290 = vpow.pop %v3289
      %v3291 = vmul.f32 %v3239, 1.442695
      %v3292 = vpow.pop %v3291
      %v3293 = vmul.f32 %v3240, 1.442695
      %v3294 = vpow.pop %v3293
      %v3295 = vmul.f32 %v3241, 1.442695
      %v3296 = vpow.pop %v3295
      %v3297 = vmul.f32 %v3242, 1.442695
      %v3298 = vpow.pop %v3297
      %v3299 = vmul.f32 %v3243, 1.442695
      %v3300 = vpow.pop %v3299
      %v3301 = vmul.f32 %v3244, 1.442695
      %v3302 = vpow.pop %v3301
      %v3303 = vmul.f32 %v3245, 1.442695
      %v3304 = vpow.pop %v3303
      %v3305 = vmul.f32 %v3246, 1.442695
      %v3306 = vpow.pop %v3305
      %v3307 = vmul.f32 %v3247, 1.442695
      %v3308 = vpow.pop %v3307
      %v3309 = vmul.f32 %v3248, 1.442695
      %v3310 = vpow.pop %v3309
      %v3311 = vmul.f32 %v3249, 1.442695
      %v3312 = vpow.pop %v3311
      %v3313 = vmul.f32 %v3250, 1.442695
      %v3314 = vpow.pop %v3313
      %v3315 = vadd.f32 %v3091, %v3252
      %v3316 = vadd.f32 %v3092, %v3254
      %v3317 = vadd.f32 %v3093, %v3256
      %v3318 = vadd.f32 %v3094, %v3258
      %v3319 = vadd.f32 %v3095, %v3260
      %v3320 = vadd.f32 %v3096, %v3262
      %v3321 = vadd.f32 %v3097, %v3264
      %v3322 = vadd.f32 %v3098, %v3266
      %v3323 = vadd.f32 %v3099, %v3268
      %v3324 = vadd.f32 %v3100, %v3270
      %v3325 = vadd.f32 %v3101, %v3272
      %v3326 = vadd.f32 %v3102, %v3274
      %v3327 = vadd.f32 %v3103, %v3276
      %v3328 = vadd.f32 %v3104, %v3278
      %v3329 = vadd.f32 %v3105, %v3280
      %v3330 = vadd.f32 %v3106, %v3282
      %v3331 = vadd.f32 %v3107, %v3284
      %v3332 = vadd.f32 %v3108, %v3286
      %v3333 = vadd.f32 %v3109, %v3288
      %v3334 = vadd.f32 %v3110, %v3290
      %v3335 = vadd.f32 %v3111, %v3292
      %v3336 = vadd.f32 %v3112, %v3294
      %v3337 = vadd.f32 %v3113, %v3296
      %v3338 = vadd.f32 %v3114, %v3298
      %v3339 = vadd.f32 %v3115, %v3300
      %v3340 = vadd.f32 %v3116, %v3302
      %v3341 = vadd.f32 %v3117, %v3304
      %v3342 = vadd.f32 %v3118, %v3306
      %v3343 = vadd.f32 %v3119, %v3308
      %v3344 = vadd.f32 %v3120, %v3310
      %v3345 = vadd.f32 %v3121, %v3312
      %v3346 = vadd.f32 %v3122, %v3314
      %v3347 = vld [vmem:[#allocation3 + $0x9] sm:$0xff]
      %v3348 = vld [vmem:[#allocation3 + $0x11] sm:$0xff]
      %v3349 = vld [vmem:[#allocation3 + $0x19] sm:$0xff]
      %v3350 = vld [vmem:[#allocation3 + $0x21] sm:$0xff]
      %v3351 = vld [vmem:[#allocation3 + $0x29] sm:$0xff]
      %v3352 = vld [vmem:[#allocation3 + $0x31] sm:$0xff]
      %v3353 = vld [vmem:[#allocation3 + $0x39] sm:$0xff]
      %v3354 = vld [vmem:[#allocation3 + $0x41] sm:$0xff]
      %v3355 = vld [vmem:[#allocation3 + $0x49] sm:$0xff]
      %v3356 = vld [vmem:[#allocation3 + $0x51] sm:$0xff]
      %v3357 = vld [vmem:[#allocation3 + $0x59] sm:$0xff]
      %v3358 = vld [vmem:[#allocation3 + $0x61] sm:$0xff]
      %v3359 = vld [vmem:[#allocation3 + $0x69] sm:$0xff]
      %v3360 = vld [vmem:[#allocation3 + $0x71] sm:$0xff]
      %v3361 = vld [vmem:[#allocation3 + $0x79] sm:$0xff]
      %v3362 = vld [vmem:[#allocation3 + $0x81] sm:$0xff]
      %v3363 = vld [vmem:[#allocation3 + $0x89] sm:$0xff]
      %v3364 = vld [vmem:[#allocation3 + $0x91] sm:$0xff]
      %v3365 = vld [vmem:[#allocation3 + $0x99] sm:$0xff]
      %v3366 = vld [vmem:[#allocation3 + $0xa1] sm:$0xff]
      %v3367 = vld [vmem:[#allocation3 + $0xa9] sm:$0xff]
      %v3368 = vld [vmem:[#allocation3 + $0xb1] sm:$0xff]
      %v3369 = vld [vmem:[#allocation3 + $0xb9] sm:$0xff]
      %v3370 = vld [vmem:[#allocation3 + $0xc1] sm:$0xff]
      %v3371 = vld [vmem:[#allocation3 + $0xc9] sm:$0xff]
      %v3372 = vld [vmem:[#allocation3 + $0xd1] sm:$0xff]
      %v3373 = vld [vmem:[#allocation3 + $0xd9] sm:$0xff]
      %v3374 = vld [vmem:[#allocation3 + $0xe1] sm:$0xff]
      %v3375 = vld [vmem:[#allocation3 + $0xe9] sm:$0xff]
      %v3376 = vld [vmem:[#allocation3 + $0xf1] sm:$0xff]
      %v3377 = vld [vmem:[#allocation3 + $0xf9] sm:$0xff]
      %v3378 = vld [vmem:[#allocation3 + $0x101] sm:$0xff]
      %v3379 = vsel %vm1835, %v3347, 0.0
      %v3380 = vsel %vm1836, %v3348, 0.0
      %v3381 = vsel %vm1837, %v3349, 0.0
      %v3382 = vsel %vm1838, %v3350, 0.0
      %v3383 = vsel %vm1839, %v3351, 0.0
      %v3384 = vsel %vm1840, %v3352, 0.0
      %v3385 = vsel %vm1841, %v3353, 0.0
      %v3386 = vsel %vm1842, %v3354, 0.0
      %v3387 = vsel %vm1843, %v3355, 0.0
      %v3388 = vsel %vm1844, %v3356, 0.0
      %v3389 = vsel %vm1845, %v3357, 0.0
      %v3390 = vsel %vm1846, %v3358, 0.0
      %v3391 = vsel %vm1847, %v3359, 0.0
      %v3392 = vsel %vm1848, %v3360, 0.0
      %v3393 = vsel %vm1849, %v3361, 0.0
      %v3394 = vsel %vm1850, %v3362, 0.0
      %v3395 = vsel %vm1851, %v3363, 0.0
      %v3396 = vsel %vm1852, %v3364, 0.0
      %v3397 = vsel %vm1853, %v3365, 0.0
      %v3398 = vsel %vm1854, %v3366, 0.0
      %v3399 = vsel %vm1855, %v3367, 0.0
      %v3400 = vsel %vm1856, %v3368, 0.0
      %v3401 = vsel %vm1857, %v3369, 0.0
      %v3402 = vsel %vm1858, %v3370, 0.0
      %v3403 = vsel %vm1859, %v3371, 0.0
      %v3404 = vsel %vm1860, %v3372, 0.0
      %v3405 = vsel %vm1861, %v3373, 0.0
      %v3406 = vsel %vm1862, %v3374, 0.0
      %v3407 = vsel %vm1863, %v3375, 0.0
      %v3408 = vsel %vm1864, %v3376, 0.0
      %v3409 = vsel %vm1865, %v3377, 0.0
      %v3410 = vsel %vm1866, %v3378, 0.0
      %v3411 = vmul.f32 %v3252, %v3379
      %v3412 = vmul.f32 %v3254, %v3380
      %v3413 = vmul.f32 %v3256, %v3381
      %v3414 = vmul.f32 %v3258, %v3382
      %v3415 = vmul.f32 %v3260, %v3383
      %v3416 = vmul.f32 %v3262, %v3384
      %v3417 = vmul.f32 %v3264, %v3385
      %v3418 = vmul.f32 %v3266, %v3386
      %v3419 = vmul.f32 %v3268, %v3387
      %v3420 = vmul.f32 %v3270, %v3388
      %v3421 = vmul.f32 %v3272, %v3389
      %v3422 = vmul.f32 %v3274, %v3390
      %v3423 = vmul.f32 %v3276, %v3391
      %v3424 = vmul.f32 %v3278, %v3392
      %v3425 = vmul.f32 %v3280, %v3393
      %v3426 = vmul.f32 %v3282, %v3394
      %v3427 = vmul.f32 %v3284, %v3395
      %v3428 = vmul.f32 %v3286, %v3396
      %v3429 = vmul.f32 %v3288, %v3397
      %v3430 = vmul.f32 %v3290, %v3398
      %v3431 = vmul.f32 %v3292, %v3399
      %v3432 = vmul.f32 %v3294, %v3400
      %v3433 = vmul.f32 %v3296, %v3401
      %v3434 = vmul.f32 %v3298, %v3402
      %v3435 = vmul.f32 %v3300, %v3403
      %v3436 = vmul.f32 %v3302, %v3404
      %v3437 = vmul.f32 %v3304, %v3405
      %v3438 = vmul.f32 %v3306, %v3406
      %v3439 = vmul.f32 %v3308, %v3407
      %v3440 = vmul.f32 %v3310, %v3408
      %v3441 = vmul.f32 %v3312, %v3409
      %v3442 = vmul.f32 %v3314, %v3410
      %v3443 = vadd.f32 %v3187, %v3411
      %v3444 = vadd.f32 %v3188, %v3412
      %v3445 = vadd.f32 %v3189, %v3413
      %v3446 = vadd.f32 %v3190, %v3414
      %v3447 = vadd.f32 %v3191, %v3415
      %v3448 = vadd.f32 %v3192, %v3416
      %v3449 = vadd.f32 %v3193, %v3417
      %v3450 = vadd.f32 %v3194, %v3418
      %v3451 = vadd.f32 %v3195, %v3419
      %v3452 = vadd.f32 %v3196, %v3420
      %v3453 = vadd.f32 %v3197, %v3421
      %v3454 = vadd.f32 %v3198, %v3422
      %v3455 = vadd.f32 %v3199, %v3423
      %v3456 = vadd.f32 %v3200, %v3424
      %v3457 = vadd.f32 %v3201, %v3425
      %v3458 = vadd.f32 %v3202, %v3426
      %v3459 = vadd.f32 %v3203, %v3427
      %v3460 = vadd.f32 %v3204, %v3428
      %v3461 = vadd.f32 %v3205, %v3429
      %v3462 = vadd.f32 %v3206, %v3430
      %v3463 = vadd.f32 %v3207, %v3431
      %v3464 = vadd.f32 %v3208, %v3432
      %v3465 = vadd.f32 %v3209, %v3433
      %v3466 = vadd.f32 %v3210, %v3434
      %v3467 = vadd.f32 %v3211, %v3435
      %v3468 = vadd.f32 %v3212, %v3436
      %v3469 = vadd.f32 %v3213, %v3437
      %v3470 = vadd.f32 %v3214, %v3438
      %v3471 = vadd.f32 %v3215, %v3439
      %v3472 = vadd.f32 %v3216, %v3440
      %v3473 = vadd.f32 %v3217, %v3441
      %v3474 = vadd.f32 %v3218, %v3442
      %v3475 = vsub.f32 %v2069, %v2707
      %v3476 = vsub.f32 %v2070, %v2708
      %v3477 = vsub.f32 %v2071, %v2709
      %v3478 = vsub.f32 %v2072, %v2710
      %v3479 = vsub.f32 %v2073, %v2711
      %v3480 = vsub.f32 %v2074, %v2712
      %v3481 = vsub.f32 %v2075, %v2713
      %v3482 = vsub.f32 %v2076, %v2714
      %v3483 = vsub.f32 %v2077, %v2715
      %v3484 = vsub.f32 %v2078, %v2716
      %v3485 = vsub.f32 %v2079, %v2717
      %v3486 = vsub.f32 %v2080, %v2718
      %v3487 = vsub.f32 %v2081, %v2719
      %v3488 = vsub.f32 %v2082, %v2720
      %v3489 = vsub.f32 %v2083, %v2721
      %v3490 = vsub.f32 %v2084, %v2722
      %v3491 = vsub.f32 %v2085, %v2723
      %v3492 = vsub.f32 %v2086, %v2724
      %v3493 = vsub.f32 %v2087, %v2725
      %v3494 = vsub.f32 %v2088, %v2726
      %v3495 = vsub.f32 %v2089, %v2727
      %v3496 = vsub.f32 %v2090, %v2728
      %v3497 = vsub.f32 %v2091, %v2729
      %v3498 = vsub.f32 %v2092, %v2730
      %v3499 = vsub.f32 %v2093, %v2731
      %v3500 = vsub.f32 %v2094, %v2732
      %v3501 = vsub.f32 %v2095, %v2733
      %v3502 = vsub.f32 %v2096, %v2734
      %v3503 = vsub.f32 %v2097, %v2735
      %v3504 = vsub.f32 %v2098, %v2736
      %v3505 = vsub.f32 %v2099, %v2737
      %v3506 = vsub.f32 %v2100, %v2738
      %v3507 = vmul.f32 %v3475, 1.442695
      %v3508 = vpow.pop %v3507
      %v3509 = vmul.f32 %v3476, 1.442695
      %v3510 = vpow.pop %v3509
      %v3511 = vmul.f32 %v3477, 1.442695
      %v3512 = vpow.pop %v3511
      %v3513 = vmul.f32 %v3478, 1.442695
      %v3514 = vpow.pop %v3513
      %v3515 = vmul.f32 %v3479, 1.442695
      %v3516 = vpow.pop %v3515
      %v3517 = vmul.f32 %v3480, 1.442695
      %v3518 = vpow.pop %v3517
      %v3519 = vmul.f32 %v3481, 1.442695
      %v3520 = vpow.pop %v3519
      %v3521 = vmul.f32 %v3482, 1.442695
      %v3522 = vpow.pop %v3521
      %v3523 = vmul.f32 %v3483, 1.442695
      %v3524 = vpow.pop %v3523
      %v3525 = vmul.f32 %v3484, 1.442695
      %v3526 = vpow.pop %v3525
      %v3527 = vmul.f32 %v3485, 1.442695
      %v3528 = vpow.pop %v3527
      %v3529 = vmul.f32 %v3486, 1.442695
      %v3530 = vpow.pop %v3529
      %v3531 = vmul.f32 %v3487, 1.442695
      %v3532 = vpow.pop %v3531
      %v3533 = vmul.f32 %v3488, 1.442695
      %v3534 = vpow.pop %v3533
      %v3535 = vmul.f32 %v3489, 1.442695
      %v3536 = vpow.pop %v3535
      %v3537 = vmul.f32 %v3490, 1.442695
      %v3538 = vpow.pop %v3537
      %v3539 = vmul.f32 %v3491, 1.442695
      %v3540 = vpow.pop %v3539
      %v3541 = vmul.f32 %v3492, 1.442695
      %v3542 = vpow.pop %v3541
      %v3543 = vmul.f32 %v3493, 1.442695
      %v3544 = vpow.pop %v3543
      %v3545 = vmul.f32 %v3494, 1.442695
      %v3546 = vpow.pop %v3545
      %v3547 = vmul.f32 %v3495, 1.442695
      %v3548 = vpow.pop %v3547
      %v3549 = vmul.f32 %v3496, 1.442695
      %v3550 = vpow.pop %v3549
      %v3551 = vmul.f32 %v3497, 1.442695
      %v3552 = vpow.pop %v3551
      %v3553 = vmul.f32 %v3498, 1.442695
      %v3554 = vpow.pop %v3553
      %v3555 = vmul.f32 %v3499, 1.442695
      %v3556 = vpow.pop %v3555
      %v3557 = vmul.f32 %v3500, 1.442695
      %v3558 = vpow.pop %v3557
      %v3559 = vmul.f32 %v3501, 1.442695
      %v3560 = vpow.pop %v3559
      %v3561 = vmul.f32 %v3502, 1.442695
      %v3562 = vpow.pop %v3561
      %v3563 = vmul.f32 %v3503, 1.442695
      %v3564 = vpow.pop %v3563
      %v3565 = vmul.f32 %v3504, 1.442695
      %v3566 = vpow.pop %v3565
      %v3567 = vmul.f32 %v3505, 1.442695
      %v3568 = vpow.pop %v3567
      %v3569 = vmul.f32 %v3506, 1.442695
      %v3570 = vpow.pop %v3569
      %v3571 = vadd.f32 %v3315, %v3508
      %v3572 = vadd.f32 %v3316, %v3510
      %v3573 = vadd.f32 %v3317, %v3512
      %v3574 = vadd.f32 %v3318, %v3514
      %v3575 = vadd.f32 %v3319, %v3516
      %v3576 = vadd.f32 %v3320, %v3518
      %v3577 = vadd.f32 %v3321, %v3520
      %v3578 = vadd.f32 %v3322, %v3522
      %v3579 = vadd.f32 %v3323, %v3524
      %v3580 = vadd.f32 %v3324, %v3526
      %v3581 = vadd.f32 %v3325, %v3528
      %v3582 = vadd.f32 %v3326, %v3530
      %v3583 = vadd.f32 %v3327, %v3532
      %v3584 = vadd.f32 %v3328, %v3534
      %v3585 = vadd.f32 %v3329, %v3536
      %v3586 = vadd.f32 %v3330, %v3538
      %v3587 = vadd.f32 %v3331, %v3540
      %v3588 = vadd.f32 %v3332, %v3542
      %v3589 = vadd.f32 %v3333, %v3544
      %v3590 = vadd.f32 %v3334, %v3546
      %v3591 = vadd.f32 %v3335, %v3548
      %v3592 = vadd.f32 %v3336, %v3550
      %v3593 = vadd.f32 %v3337, %v3552
      %v3594 = vadd.f32 %v3338, %v3554
      %v3595 = vadd.f32 %v3339, %v3556
      %v3596 = vadd.f32 %v3340, %v3558
      %v3597 = vadd.f32 %v3341, %v3560
      %v3598 = vadd.f32 %v3342, %v3562
      %v3599 = vadd.f32 %v3343, %v3564
      %v3600 = vadd.f32 %v3344, %v3566
      %v3601 = vadd.f32 %v3345, %v3568
      %v3602 = vadd.f32 %v3346, %v3570
      %v3603 = vld [vmem:[#allocation3 + $0x107] sm:$0xff]
      %v3604 = vld [vmem:[#allocation3 + $0x10f] sm:$0xff]
      %v3605 = vsel %vm1507, %v2869, 0.0
      %v3606 = vsel %vm1508, %v2870, 0.0
      %v3607 = vsel %vm1509, %v2871, 0.0
      %v3608 = vsel %vm1510, %v2872, 0.0
      %v3609 = vsel %vm1511, %v2873, 0.0
      %v3610 = vsel %vm1512, %v2874, 0.0
      %v3611 = vsel %vm1513, %v2875, 0.0
      %v3612 = vsel %vm1514, %v2876, 0.0
      %v3613 = vsel %vm1515, %v2877, 0.0
      %v3614 = vsel %vm1516, %v2878, 0.0
      %v3615 = vsel %vm1517, %v2879, 0.0
      %v3616 = vsel %vm1518, %v2880, 0.0
      %v3617 = vsel %vm1519, %v2881, 0.0
      %v3618 = vsel %vm1520, %v2882, 0.0
      %v3619 = vsel %vm1521, %v2883, 0.0
      %v3620 = vsel %vm1522, %v2884, 0.0
      %v3621 = vsel %vm1523, %v2885, 0.0
      %v3622 = vsel %vm1524, %v2886, 0.0
      %v3623 = vsel %vm1525, %v2887, 0.0
      %v3624 = vsel %vm1526, %v2888, 0.0
      %v3625 = vsel %vm1527, %v2889, 0.0
      %v3626 = vsel %vm1528, %v2890, 0.0
      %v3627 = vsel %vm1529, %v2891, 0.0
      %v3628 = vsel %vm1530, %v2892, 0.0
      %v3629 = vsel %vm1531, %v2893, 0.0
      %v3630 = vsel %vm1532, %v2894, 0.0
      %v3631 = vsel %vm1533, %v2895, 0.0
      %v3632 = vsel %vm1534, %v2896, 0.0
      %v3633 = vsel %vm1535, %v2897, 0.0
      %v3634 = vsel %vm1536, %v2898, 0.0
      %v3635 = vsel %vm1537, %v3603, 0.0
      %v3636 = vsel %vm1538, %v3604, 0.0
      %v3637 = vmul.f32 %v3508, %v3605
      %v3638 = vmul.f32 %v3510, %v3606
      %v3639 = vmul.f32 %v3512, %v3607
      %v3640 = vmul.f32 %v3514, %v3608
      %v3641 = vmul.f32 %v3516, %v3609
      %v3642 = vmul.f32 %v3518, %v3610
      %v3643 = vmul.f32 %v3520, %v3611
      %v3644 = vmul.f32 %v3522, %v3612
      %v3645 = vmul.f32 %v3524, %v3613
      %v3646 = vmul.f32 %v3526, %v3614
      %v3647 = vmul.f32 %v3528, %v3615
      %v3648 = vmul.f32 %v3530, %v3616
      %v3649 = vmul.f32 %v3532, %v3617
      %v3650 = vmul.f32 %v3534, %v3618
      %v3651 = vmul.f32 %v3536, %v3619
      %v3652 = vmul.f32 %v3538, %v3620
      %v3653 = vmul.f32 %v3540, %v3621
      %v3654 = vmul.f32 %v3542, %v3622
      %v3655 = vmul.f32 %v3544, %v3623
      %v3656 = vmul.f32 %v3546, %v3624
      %v3657 = vmul.f32 %v3548, %v3625
      %v3658 = vmul.f32 %v3550, %v3626
      %v3659 = vmul.f32 %v3552, %v3627
      %v3660 = vmul.f32 %v3554, %v3628
      %v3661 = vmul.f32 %v3556, %v3629
      %v3662 = vmul.f32 %v3558, %v3630
      %v3663 = vmul.f32 %v3560, %v3631
      %v3664 = vmul.f32 %v3562, %v3632
      %v3665 = vmul.f32 %v3564, %v3633
      %v3666 = vmul.f32 %v3566, %v3634
      %v3667 = vmul.f32 %v3568, %v3635
      %v3668 = vmul.f32 %v3570, %v3636
      %v3669 = vadd.f32 %v3443, %v3637
      %v3670 = vadd.f32 %v3444, %v3638
      %v3671 = vadd.f32 %v3445, %v3639
      %v3672 = vadd.f32 %v3446, %v3640
      %v3673 = vadd.f32 %v3447, %v3641
      %v3674 = vadd.f32 %v3448, %v3642
      %v3675 = vadd.f32 %v3449, %v3643
      %v3676 = vadd.f32 %v3450, %v3644
      %v3677 = vadd.f32 %v3451, %v3645
      %v3678 = vadd.f32 %v3452, %v3646
      %v3679 = vadd.f32 %v3453, %v3647
      %v3680 = vadd.f32 %v3454, %v3648
      %v3681 = vadd.f32 %v3455, %v3649
      %v3682 = vadd.f32 %v3456, %v3650
      %v3683 = vadd.f32 %v3457, %v3651
      %v3684 = vadd.f32 %v3458, %v3652
      %v3685 = vadd.f32 %v3459, %v3653
      %v3686 = vadd.f32 %v3460, %v3654
      %v3687 = vadd.f32 %v3461, %v3655
      %v3688 = vadd.f32 %v3462, %v3656
      %v3689 = vadd.f32 %v3463, %v3657
      %v3690 = vadd.f32 %v3464, %v3658
      %v3691 = vadd.f32 %v3465, %v3659
      %v3692 = vadd.f32 %v3466, %v3660
      %v3693 = vadd.f32 %v3467, %v3661
      %v3694 = vadd.f32 %v3468, %v3662
      %v3695 = vadd.f32 %v3469, %v3663
      %v3696 = vadd.f32 %v3470, %v3664
      %v3697 = vadd.f32 %v3471, %v3665
      %v3698 = vadd.f32 %v3472, %v3666
      %v3699 = vadd.f32 %v3473, %v3667
      %v3700 = vadd.f32 %v3474, %v3668
      %v3701 = vsub.f32 %v2171, %v2707
      %v3702 = vsub.f32 %v2172, %v2708
      %v3703 = vsub.f32 %v2173, %v2709
      %v3704 = vsub.f32 %v2174, %v2710
      %v3705 = vsub.f32 %v2175, %v2711
      %v3706 = vsub.f32 %v2176, %v2712
      %v3707 = vsub.f32 %v2177, %v2713
      %v3708 = vsub.f32 %v2178, %v2714
      %v3709 = vsub.f32 %v2179, %v2715
      %v3710 = vsub.f32 %v2180, %v2716
      %v3711 = vsub.f32 %v2181, %v2717
      %v3712 = vsub.f32 %v2182, %v2718
      %v3713 = vsub.f32 %v2183, %v2719
      %v3714 = vsub.f32 %v2184, %v2720
      %v3715 = vsub.f32 %v2185, %v2721
      %v3716 = vsub.f32 %v2186, %v2722
      %v3717 = vsub.f32 %v2187, %v2723
      %v3718 = vsub.f32 %v2188, %v2724
      %v3719 = vsub.f32 %v2189, %v2725
      %v3720 = vsub.f32 %v2190, %v2726
      %v3721 = vsub.f32 %v2191, %v2727
      %v3722 = vsub.f32 %v2192, %v2728
      %v3723 = vsub.f32 %v2193, %v2729
      %v3724 = vsub.f32 %v2194, %v2730
      %v3725 = vsub.f32 %v2195, %v2731
      %v3726 = vsub.f32 %v2196, %v2732
      %v3727 = vsub.f32 %v2197, %v2733
      %v3728 = vsub.f32 %v2198, %v2734
      %v3729 = vsub.f32 %v2199, %v2735
      %v3730 = vsub.f32 %v2200, %v2736
      %v3731 = vsub.f32 %v2201, %v2737
      %v3732 = vsub.f32 %v2202, %v2738
      %v3733 = vmul.f32 %v3701, 1.442695
      %v3734 = vpow.pop %v3733
      %v3735 = vmul.f32 %v3702, 1.442695
      %v3736 = vpow.pop %v3735
      %v3737 = vmul.f32 %v3703, 1.442695
      %v3738 = vpow.pop %v3737
      %v3739 = vmul.f32 %v3704, 1.442695
      %v3740 = vpow.pop %v3739
      %v3741 = vmul.f32 %v3705, 1.442695
      %v3742 = vpow.pop %v3741
      %v3743 = vmul.f32 %v3706, 1.442695
      %v3744 = vpow.pop %v3743
      %v3745 = vmul.f32 %v3707, 1.442695
      %v3746 = vpow.pop %v3745
      %v3747 = vmul.f32 %v3708, 1.442695
      %v3748 = vpow.pop %v3747
      %v3749 = vmul.f32 %v3709, 1.442695
      %v3750 = vpow.pop %v3749
      %v3751 = vmul.f32 %v3710, 1.442695
      %v3752 = vpow.pop %v3751
      %v3753 = vmul.f32 %v3711, 1.442695
      %v3754 = vpow.pop %v3753
      %v3755 = vmul.f32 %v3712, 1.442695
      %v3756 = vpow.pop %v3755
      %v3757 = vmul.f32 %v3713, 1.442695
      %v3758 = vpow.pop %v3757
      %v3759 = vmul.f32 %v3714, 1.442695
      %v3760 = vpow.pop %v3759
      %v3761 = vmul.f32 %v3715, 1.442695
      %v3762 = vpow.pop %v3761
      %v3763 = vmul.f32 %v3716, 1.442695
      %v3764 = vpow.pop %v3763
      %v3765 = vmul.f32 %v3717, 1.442695
      %v3766 = vpow.pop %v3765
      %v3767 = vmul.f32 %v3718, 1.442695
      %v3768 = vpow.pop %v3767
      %v3769 = vmul.f32 %v3719, 1.442695
      %v3770 = vpow.pop %v3769
      %v3771 = vmul.f32 %v3720, 1.442695
      %v3772 = vpow.pop %v3771
      %v3773 = vmul.f32 %v3721, 1.442695
      %v3774 = vpow.pop %v3773
      %v3775 = vmul.f32 %v3722, 1.442695
      %v3776 = vpow.pop %v3775
      %v3777 = vmul.f32 %v3723, 1.442695
      %v3778 = vpow.pop %v3777
      %v3779 = vmul.f32 %v3724, 1.442695
      %v3780 = vpow.pop %v3779
      %v3781 = vmul.f32 %v3725, 1.442695
      %v3782 = vpow.pop %v3781
      %v3783 = vmul.f32 %v3726, 1.442695
      %v3784 = vpow.pop %v3783
      %v3785 = vmul.f32 %v3727, 1.442695
      %v3786 = vpow.pop %v3785
      %v3787 = vmul.f32 %v3728, 1.442695
      %v3788 = vpow.pop %v3787
      %v3789 = vmul.f32 %v3729, 1.442695
      %v3790 = vpow.pop %v3789
      %v3791 = vmul.f32 %v3730, 1.442695
      %v3792 = vpow.pop %v3791
      %v3793 = vmul.f32 %v3731, 1.442695
      %v3794 = vpow.pop %v3793
      %v3795 = vmul.f32 %v3732, 1.442695
      %v3796 = vpow.pop %v3795
      %v3797 = vadd.f32 %v3571, %v3734
      %v3798 = vadd.f32 %v3572, %v3736
      %v3799 = vadd.f32 %v3573, %v3738
      %v3800 = vadd.f32 %v3574, %v3740
      %v3801 = vadd.f32 %v3575, %v3742
      %v3802 = vadd.f32 %v3576, %v3744
      %v3803 = vadd.f32 %v3577, %v3746
      %v3804 = vadd.f32 %v3578, %v3748
      %v3805 = vadd.f32 %v3579, %v3750
      %v3806 = vadd.f32 %v3580, %v3752
      %v3807 = vadd.f32 %v3581, %v3754
      %v3808 = vadd.f32 %v3582, %v3756
      %v3809 = vadd.f32 %v3583, %v3758
      %v3810 = vadd.f32 %v3584, %v3760
      %v3811 = vadd.f32 %v3585, %v3762
      %v3812 = vadd.f32 %v3586, %v3764
      %v3813 = vadd.f32 %v3587, %v3766
      %v3814 = vadd.f32 %v3588, %v3768
      %v3815 = vadd.f32 %v3589, %v3770
      %v3816 = vadd.f32 %v3590, %v3772
      %v3817 = vadd.f32 %v3591, %v3774
      %v3818 = vadd.f32 %v3592, %v3776
      %v3819 = vadd.f32 %v3593, %v3778
      %v3820 = vadd.f32 %v3594, %v3780
      %v3821 = vadd.f32 %v3595, %v3782
      %v3822 = vadd.f32 %v3596, %v3784
      %v3823 = vadd.f32 %v3597, %v3786
      %v3824 = vadd.f32 %v3598, %v3788
      %v3825 = vadd.f32 %v3599, %v3790
      %v3826 = vadd.f32 %v3600, %v3792
      %v3827 = vadd.f32 %v3601, %v3794
      %v3828 = vadd.f32 %v3602, %v3796
      %v3829 = vld [vmem:[#allocation3 + $0x108] sm:$0xff]
      %v3830 = vld [vmem:[#allocation3 + $0x110] sm:$0xff]
      %v3831 = vmul.f32 %v3734, %v3125
      %v3832 = vmul.f32 %v3736, %v3126
      %v3833 = vmul.f32 %v3738, %v3127
      %v3834 = vmul.f32 %v3740, %v3128
      %v3835 = vmul.f32 %v3742, %v3129
      %v3836 = vmul.f32 %v3744, %v3130
      %v3837 = vmul.f32 %v3746, %v3131
      %v3838 = vmul.f32 %v3748, %v3132
      %v3839 = vmul.f32 %v3750, %v3133
      %v3840 = vmul.f32 %v3752, %v3134
      %v3841 = vmul.f32 %v3754, %v3135
      %v3842 = vmul.f32 %v3756, %v3136
      %v3843 = vmul.f32 %v3758, %v3137
      %v3844 = vmul.f32 %v3760, %v3138
      %v3845 = vmul.f32 %v3762, %v3139
      %v3846 = vmul.f32 %v3764, %v3140
      %v3847 = vmul.f32 %v3766, %v3141
      %v3848 = vmul.f32 %v3768, %v3142
      %v3849 = vmul.f32 %v3770, %v3143
      %v3850 = vmul.f32 %v3772, %v3144
      %v3851 = vmul.f32 %v3774, %v3145
      %v3852 = vmul.f32 %v3776, %v3146
      %v3853 = vmul.f32 %v3778, %v3147
      %v3854 = vmul.f32 %v3780, %v3148
      %v3855 = vmul.f32 %v3782, %v3149
      %v3856 = vmul.f32 %v3784, %v3150
      %v3857 = vmul.f32 %v3786, %v3151
      %v3858 = vmul.f32 %v3788, %v3152
      %v3859 = vmul.f32 %v3790, %v3153
      %v3860 = vmul.f32 %v3792, %v3154
      %v3861 = vmul.f32 %v3794, %v3829
      %v3862 = vmul.f32 %v3796, %v3830
      %v3863 = vadd.f32 %v3669, %v3831
      %v3864 = vadd.f32 %v3670, %v3832
      %v3865 = vadd.f32 %v3671, %v3833
      %v3866 = vadd.f32 %v3672, %v3834
      %v3867 = vadd.f32 %v3673, %v3835
      %v3868 = vadd.f32 %v3674, %v3836
      %v3869 = vadd.f32 %v3675, %v3837
      %v3870 = vadd.f32 %v3676, %v3838
      %v3871 = vadd.f32 %v3677, %v3839
      %v3872 = vadd.f32 %v3678, %v3840
      %v3873 = vadd.f32 %v3679, %v3841
      %v3874 = vadd.f32 %v3680, %v3842
      %v3875 = vadd.f32 %v3681, %v3843
      %v3876 = vadd.f32 %v3682, %v3844
      %v3877 = vadd.f32 %v3683, %v3845
      %v3878 = vadd.f32 %v3684, %v3846
      %v3879 = vadd.f32 %v3685, %v3847
      %v3880 = vadd.f32 %v3686, %v3848
      %v3881 = vadd.f32 %v3687, %v3849
      %v3882 = vadd.f32 %v3688, %v3850
      %v3883 = vadd.f32 %v3689, %v3851
      %v3884 = vadd.f32 %v3690, %v3852
      %v3885 = vadd.f32 %v3691, %v3853
      %v3886 = vadd.f32 %v3692, %v3854
      %v3887 = vadd.f32 %v3693, %v3855
      %v3888 = vadd.f32 %v3694, %v3856
      %v3889 = vadd.f32 %v3695, %v3857
      %v3890 = vadd.f32 %v3696, %v3858
      %v3891 = vadd.f32 %v3697, %v3859
      %v3892 = vadd.f32 %v3698, %v3860
      %v3893 = vadd.f32 %v3699, %v3861
      %v3894 = vadd.f32 %v3700, %v3862
      %v3895 = vsub.f32 %v2305, %v2707
      %v3896 = vsub.f32 %v2306, %v2708
      %v3897 = vsub.f32 %v2307, %v2709
      %v3898 = vsub.f32 %v2308, %v2710
      %v3899 = vsub.f32 %v2309, %v2711
      %v3900 = vsub.f32 %v2310, %v2712
      %v3901 = vsub.f32 %v2311, %v2713
      %v3902 = vsub.f32 %v2312, %v2714
      %v3903 = vsub.f32 %v2313, %v2715
      %v3904 = vsub.f32 %v2314, %v2716
      %v3905 = vsub.f32 %v2315, %v2717
      %v3906 = vsub.f32 %v2316, %v2718
      %v3907 = vsub.f32 %v2317, %v2719
      %v3908 = vsub.f32 %v2318, %v2720
      %v3909 = vsub.f32 %v2319, %v2721
      %v3910 = vsub.f32 %v2320, %v2722
      %v3911 = vsub.f32 %v2321, %v2723
      %v3912 = vsub.f32 %v2322, %v2724
      %v3913 = vsub.f32 %v2323, %v2725
      %v3914 = vsub.f32 %v2324, %v2726
      %v3915 = vsub.f32 %v2325, %v2727
      %v3916 = vsub.f32 %v2326, %v2728
      %v3917 = vsub.f32 %v2327, %v2729
      %v3918 = vsub.f32 %v2328, %v2730
      %v3919 = vsub.f32 %v2329, %v2731
      %v3920 = vsub.f32 %v2330, %v2732
      %v3921 = vsub.f32 %v2331, %v2733
      %v3922 = vsub.f32 %v2332, %v2734
      %v3923 = vsub.f32 %v2333, %v2735
      %v3924 = vsub.f32 %v2334, %v2736
      %v3925 = vsub.f32 %v2335, %v2737
      %v3926 = vsub.f32 %v2336, %v2738
      %v3927 = vmul.f32 %v3895, 1.442695
      %v3928 = vpow.pop %v3927
      %v3929 = vmul.f32 %v3896, 1.442695
      %v3930 = vpow.pop %v3929
      %v3931 = vmul.f32 %v3897, 1.442695
      %v3932 = vpow.pop %v3931
      %v3933 = vmul.f32 %v3898, 1.442695
      %v3934 = vpow.pop %v3933
      %v3935 = vmul.f32 %v3899, 1.442695
      %v3936 = vpow.pop %v3935
      %v3937 = vmul.f32 %v3900, 1.442695
      %v3938 = vpow.pop %v3937
      %v3939 = vmul.f32 %v3901, 1.442695
      %v3940 = vpow.pop %v3939
      %v3941 = vmul.f32 %v3902, 1.442695
      %v3942 = vpow.pop %v3941
      %v3943 = vmul.f32 %v3903, 1.442695
      %v3944 = vpow.pop %v3943
      %v3945 = vmul.f32 %v3904, 1.442695
      %v3946 = vpow.pop %v3945
      %v3947 = vmul.f32 %v3905, 1.442695
      %v3948 = vpow.pop %v3947
      %v3949 = vmul.f32 %v3906, 1.442695
      %v3950 = vpow.pop %v3949
      %v3951 = vmul.f32 %v3907, 1.442695
      %v3952 = vpow.pop %v3951
      %v3953 = vmul.f32 %v3908, 1.442695
      %v3954 = vpow.pop %v3953
      %v3955 = vmul.f32 %v3909, 1.442695
      %v3956 = vpow.pop %v3955
      %v3957 = vmul.f32 %v3910, 1.442695
      %v3958 = vpow.pop %v3957
      %v3959 = vmul.f32 %v3911, 1.442695
      %v3960 = vpow.pop %v3959
      %v3961 = vmul.f32 %v3912, 1.442695
      %v3962 = vpow.pop %v3961
      %v3963 = vmul.f32 %v3913, 1.442695
      %v3964 = vpow.pop %v3963
      %v3965 = vmul.f32 %v3914, 1.442695
      %v3966 = vpow.pop %v3965
      %v3967 = vmul.f32 %v3915, 1.442695
      %v3968 = vpow.pop %v3967
      %v3969 = vmul.f32 %v3916, 1.442695
      %v3970 = vpow.pop %v3969
      %v3971 = vmul.f32 %v3917, 1.442695
      %v3972 = vpow.pop %v3971
      %v3973 = vmul.f32 %v3918, 1.442695
      %v3974 = vpow.pop %v3973
      %v3975 = vmul.f32 %v3919, 1.442695
      %v3976 = vpow.pop %v3975
      %v3977 = vmul.f32 %v3920, 1.442695
      %v3978 = vpow.pop %v3977
      %v3979 = vmul.f32 %v3921, 1.442695
      %v3980 = vpow.pop %v3979
      %v3981 = vmul.f32 %v3922, 1.442695
      %v3982 = vpow.pop %v3981
      %v3983 = vmul.f32 %v3923, 1.442695
      %v3984 = vpow.pop %v3983
      %v3985 = vmul.f32 %v3924, 1.442695
      %v3986 = vpow.pop %v3985
      %v3987 = vmul.f32 %v3925, 1.442695
      %v3988 = vpow.pop %v3987
      %v3989 = vmul.f32 %v3926, 1.442695
      %v3990 = vpow.pop %v3989
      %v3991 = vadd.f32 %v3797, %v3928
      %v3992 = vadd.f32 %v3798, %v3930
      %v3993 = vadd.f32 %v3799, %v3932
      %v3994 = vadd.f32 %v3800, %v3934
      %v3995 = vadd.f32 %v3801, %v3936
      %v3996 = vadd.f32 %v3802, %v3938
      %v3997 = vadd.f32 %v3803, %v3940
      %v3998 = vadd.f32 %v3804, %v3942
      %v3999 = vadd.f32 %v3805, %v3944
      %v4000 = vadd.f32 %v3806, %v3946
      %v4001 = vadd.f32 %v3807, %v3948
      %v4002 = vadd.f32 %v3808, %v3950
      %v4003 = vadd.f32 %v3809, %v3952
      %v4004 = vadd.f32 %v3810, %v3954
      %v4005 = vadd.f32 %v3811, %v3956
      %v4006 = vadd.f32 %v3812, %v3958
      %v4007 = vadd.f32 %v3813, %v3960
      %v4008 = vadd.f32 %v3814, %v3962
      %v4009 = vadd.f32 %v3815, %v3964
      %v4010 = vadd.f32 %v3816, %v3966
      %v4011 = vadd.f32 %v3817, %v3968
      %v4012 = vadd.f32 %v3818, %v3970
      %v4013 = vadd.f32 %v3819, %v3972
      %v4014 = vadd.f32 %v3820, %v3974
      %v4015 = vadd.f32 %v3821, %v3976
      %v4016 = vadd.f32 %v3822, %v3978
      %v4017 = vadd.f32 %v3823, %v3980
      %v4018 = vadd.f32 %v3824, %v3982
      %v4019 = vadd.f32 %v3825, %v3984
      %v4020 = vadd.f32 %v3826, %v3986
      %v4021 = vadd.f32 %v3827, %v3988
      %v4022 = vadd.f32 %v3828, %v3990
      %v4023 = vld [vmem:[#allocation3 + $0x109] sm:$0xff]
      %v4024 = vld [vmem:[#allocation3 + $0x111] sm:$0xff]
      %v4025 = vsel %vm1835, %v3349, 0.0
      %v4026 = vsel %vm1836, %v3350, 0.0
      %v4027 = vsel %vm1837, %v3351, 0.0
      %v4028 = vsel %vm1838, %v3352, 0.0
      %v4029 = vsel %vm1839, %v3353, 0.0
      %v4030 = vsel %vm1840, %v3354, 0.0
      %v4031 = vsel %vm1841, %v3355, 0.0
      %v4032 = vsel %vm1842, %v3356, 0.0
      %v4033 = vsel %vm1843, %v3357, 0.0
      %v4034 = vsel %vm1844, %v3358, 0.0
      %v4035 = vsel %vm1845, %v3359, 0.0
      %v4036 = vsel %vm1846, %v3360, 0.0
      %v4037 = vsel %vm1847, %v3361, 0.0
      %v4038 = vsel %vm1848, %v3362, 0.0
      %v4039 = vsel %vm1849, %v3363, 0.0
      %v4040 = vsel %vm1850, %v3364, 0.0
      %v4041 = vsel %vm1851, %v3365, 0.0
      %v4042 = vsel %vm1852, %v3366, 0.0
      %v4043 = vsel %vm1853, %v3367, 0.0
      %v4044 = vsel %vm1854, %v3368, 0.0
      %v4045 = vsel %vm1855, %v3369, 0.0
      %v4046 = vsel %vm1856, %v3370, 0.0
      %v4047 = vsel %vm1857, %v3371, 0.0
      %v4048 = vsel %vm1858, %v3372, 0.0
      %v4049 = vsel %vm1859, %v3373, 0.0
      %v4050 = vsel %vm1860, %v3374, 0.0
      %v4051 = vsel %vm1861, %v3375, 0.0
      %v4052 = vsel %vm1862, %v3376, 0.0
      %v4053 = vsel %vm1863, %v3377, 0.0
      %v4054 = vsel %vm1864, %v3378, 0.0
      %v4055 = vsel %vm1865, %v4023, 0.0
      %v4056 = vsel %vm1866, %v4024, 0.0
      %v4057 = vmul.f32 %v3928, %v4025
      %v4058 = vmul.f32 %v3930, %v4026
      %v4059 = vmul.f32 %v3932, %v4027
      %v4060 = vmul.f32 %v3934, %v4028
      %v4061 = vmul.f32 %v3936, %v4029
      %v4062 = vmul.f32 %v3938, %v4030
      %v4063 = vmul.f32 %v3940, %v4031
      %v4064 = vmul.f32 %v3942, %v4032
      %v4065 = vmul.f32 %v3944, %v4033
      %v4066 = vmul.f32 %v3946, %v4034
      %v4067 = vmul.f32 %v3948, %v4035
      %v4068 = vmul.f32 %v3950, %v4036
      %v4069 = vmul.f32 %v3952, %v4037
      %v4070 = vmul.f32 %v3954, %v4038
      %v4071 = vmul.f32 %v3956, %v4039
      %v4072 = vmul.f32 %v3958, %v4040
      %v4073 = vmul.f32 %v3960, %v4041
      %v4074 = vmul.f32 %v3962, %v4042
      %v4075 = vmul.f32 %v3964, %v4043
      %v4076 = vmul.f32 %v3966, %v4044
      %v4077 = vmul.f32 %v3968, %v4045
      %v4078 = vmul.f32 %v3970, %v4046
      %v4079 = vmul.f32 %v3972, %v4047
      %v4080 = vmul.f32 %v3974, %v4048
      %v4081 = vmul.f32 %v3976, %v4049
      %v4082 = vmul.f32 %v3978, %v4050
      %v4083 = vmul.f32 %v3980, %v4051
      %v4084 = vmul.f32 %v3982, %v4052
      %v4085 = vmul.f32 %v3984, %v4053
      %v4086 = vmul.f32 %v3986, %v4054
      %v4087 = vmul.f32 %v3988, %v4055
      %v4088 = vmul.f32 %v3990, %v4056
      %v4089 = vadd.f32 %v3863, %v4057
      %v4090 = vadd.f32 %v3864, %v4058
      %v4091 = vadd.f32 %v3865, %v4059
      %v4092 = vadd.f32 %v3866, %v4060
      %v4093 = vadd.f32 %v3867, %v4061
      %v4094 = vadd.f32 %v3868, %v4062
      %v4095 = vadd.f32 %v3869, %v4063
      %v4096 = vadd.f32 %v3870, %v4064
      %v4097 = vadd.f32 %v3871, %v4065
      %v4098 = vadd.f32 %v3872, %v4066
      %v4099 = vadd.f32 %v3873, %v4067
      %v4100 = vadd.f32 %v3874, %v4068
      %v4101 = vadd.f32 %v3875, %v4069
      %v4102 = vadd.f32 %v3876, %v4070
      %v4103 = vadd.f32 %v3877, %v4071
      %v4104 = vadd.f32 %v3878, %v4072
      %v4105 = vadd.f32 %v3879, %v4073
      %v4106 = vadd.f32 %v3880, %v4074
      %v4107 = vadd.f32 %v3881, %v4075
      %v4108 = vadd.f32 %v3882, %v4076
      %v4109 = vadd.f32 %v3883, %v4077
      %v4110 = vadd.f32 %v3884, %v4078
      %v4111 = vadd.f32 %v3885, %v4079
      %v4112 = vadd.f32 %v3886, %v4080
      %v4113 = vadd.f32 %v3887, %v4081
      %v4114 = vadd.f32 %v3888, %v4082
      %v4115 = vadd.f32 %v3889, %v4083
      %v4116 = vadd.f32 %v3890, %v4084
      %v4117 = vadd.f32 %v3891, %v4085
      %v4118 = vadd.f32 %v3892, %v4086
      %v4119 = vadd.f32 %v3893, %v4087
      %v4120 = vadd.f32 %v3894, %v4088
      %v4121 = vsub.f32 %v2439, %v2707
      %v4122 = vsub.f32 %v2440, %v2708
      %v4123 = vsub.f32 %v2441, %v2709
      %v4124 = vsub.f32 %v2442, %v2710
      %v4125 = vsub.f32 %v2443, %v2711
      %v4126 = vsub.f32 %v2444, %v2712
      %v4127 = vsub.f32 %v2445, %v2713
      %v4128 = vsub.f32 %v2446, %v2714
      %v4129 = vsub.f32 %v2447, %v2715
      %v4130 = vsub.f32 %v2448, %v2716
      %v4131 = vsub.f32 %v2449, %v2717
      %v4132 = vsub.f32 %v2450, %v2718
      %v4133 = vsub.f32 %v2451, %v2719
      %v4134 = vsub.f32 %v2452, %v2720
      %v4135 = vsub.f32 %v2453, %v2721
      %v4136 = vsub.f32 %v2454, %v2722
      %v4137 = vsub.f32 %v2455, %v2723
      %v4138 = vsub.f32 %v2456, %v2724
      %v4139 = vsub.f32 %v2457, %v2725
      %v4140 = vsub.f32 %v2458, %v2726
      %v4141 = vsub.f32 %v2459, %v2727
      %v4142 = vsub.f32 %v2460, %v2728
      %v4143 = vsub.f32 %v2461, %v2729
      %v4144 = vsub.f32 %v2462, %v2730
      %v4145 = vsub.f32 %v2463, %v2731
      %v4146 = vsub.f32 %v2464, %v2732
      %v4147 = vsub.f32 %v2465, %v2733
      %v4148 = vsub.f32 %v2466, %v2734
      %v4149 = vsub.f32 %v2467, %v2735
      %v4150 = vsub.f32 %v2468, %v2736
      %v4151 = vsub.f32 %v2469, %v2737
      %v4152 = vsub.f32 %v2470, %v2738
      %v4153 = vmul.f32 %v4121, 1.442695
      %v4154 = vpow.pop %v4153
      %v4155 = vmul.f32 %v4122, 1.442695
      %v4156 = vpow.pop %v4155
      %v4157 = vmul.f32 %v4123, 1.442695
      %v4158 = vpow.pop %v4157
      %v4159 = vmul.f32 %v4124, 1.442695
      %v4160 = vpow.pop %v4159
      %v4161 = vmul.f32 %v4125, 1.442695
      %v4162 = vpow.pop %v4161
      %v4163 = vmul.f32 %v4126, 1.442695
      %v4164 = vpow.pop %v4163
      %v4165 = vmul.f32 %v4127, 1.442695
      %v4166 = vpow.pop %v4165
      %v4167 = vmul.f32 %v4128, 1.442695
      %v4168 = vpow.pop %v4167
      %v4169 = vmul.f32 %v4129, 1.442695
      %v4170 = vpow.pop %v4169
      %v4171 = vmul.f32 %v4130, 1.442695
      %v4172 = vpow.pop %v4171
      %v4173 = vmul.f32 %v4131, 1.442695
      %v4174 = vpow.pop %v4173
      %v4175 = vmul.f32 %v4132, 1.442695
      %v4176 = vpow.pop %v4175
      %v4177 = vmul.f32 %v4133, 1.442695
      %v4178 = vpow.pop %v4177
      %v4179 = vmul.f32 %v4134, 1.442695
      %v4180 = vpow.pop %v4179
      %v4181 = vmul.f32 %v4135, 1.442695
      %v4182 = vpow.pop %v4181
      %v4183 = vmul.f32 %v4136, 1.442695
      %v4184 = vpow.pop %v4183
      %v4185 = vmul.f32 %v4137, 1.442695
      %v4186 = vpow.pop %v4185
      %v4187 = vmul.f32 %v4138, 1.442695
      %v4188 = vpow.pop %v4187
      %v4189 = vmul.f32 %v4139, 1.442695
      %v4190 = vpow.pop %v4189
      %v4191 = vmul.f32 %v4140, 1.442695
      %v4192 = vpow.pop %v4191
      %v4193 = vmul.f32 %v4141, 1.442695
      %v4194 = vpow.pop %v4193
      %v4195 = vmul.f32 %v4142, 1.442695
      %v4196 = vpow.pop %v4195
      %v4197 = vmul.f32 %v4143, 1.442695
      %v4198 = vpow.pop %v4197
      %v4199 = vmul.f32 %v4144, 1.442695
      %v4200 = vpow.pop %v4199
      %v4201 = vmul.f32 %v4145, 1.442695
      %v4202 = vpow.pop %v4201
      %v4203 = vmul.f32 %v4146, 1.442695
      %v4204 = vpow.pop %v4203
      %v4205 = vmul.f32 %v4147, 1.442695
      %v4206 = vpow.pop %v4205
      %v4207 = vmul.f32 %v4148, 1.442695
      %v4208 = vpow.pop %v4207
      %v4209 = vmul.f32 %v4149, 1.442695
      %v4210 = vpow.pop %v4209
      %v4211 = vmul.f32 %v4150, 1.442695
      %v4212 = vpow.pop %v4211
      %v4213 = vmul.f32 %v4151, 1.442695
      %v4214 = vpow.pop %v4213
      %v4215 = vmul.f32 %v4152, 1.442695
      %v4216 = vpow.pop %v4215
      %v4217 = vadd.f32 %v3991, %v4154
      %v4218 = vadd.f32 %v3992, %v4156
      %v4219 = vadd.f32 %v3993, %v4158
      %v4220 = vadd.f32 %v3994, %v4160
      %v4221 = vadd.f32 %v3995, %v4162
      %v4222 = vadd.f32 %v3996, %v4164
      %v4223 = vadd.f32 %v3997, %v4166
      %v4224 = vadd.f32 %v3998, %v4168
      %v4225 = vadd.f32 %v3999, %v4170
      %v4226 = vadd.f32 %v4000, %v4172
      %v4227 = vadd.f32 %v4001, %v4174
      %v4228 = vadd.f32 %v4002, %v4176
      %v4229 = vadd.f32 %v4003, %v4178
      %v4230 = vadd.f32 %v4004, %v4180
      %v4231 = vadd.f32 %v4005, %v4182
      %v4232 = vadd.f32 %v4006, %v4184
      %v4233 = vadd.f32 %v4007, %v4186
      %v4234 = vadd.f32 %v4008, %v4188
      %v4235 = vadd.f32 %v4009, %v4190
      %v4236 = vadd.f32 %v4010, %v4192
      %v4237 = vadd.f32 %v4011, %v4194
      %v4238 = vadd.f32 %v4012, %v4196
      %v4239 = vadd.f32 %v4013, %v4198
      %v4240 = vadd.f32 %v4014, %v4200
      %v4241 = vadd.f32 %v4015, %v4202
      %v4242 = vadd.f32 %v4016, %v4204
      %v4243 = vadd.f32 %v4017, %v4206
      %v4244 = vadd.f32 %v4018, %v4208
      %v4245 = vadd.f32 %v4019, %v4210
      %v4246 = vadd.f32 %v4020, %v4212
      %v4247 = vadd.f32 %v4021, %v4214
      %v4248 = vadd.f32 %v4022, %v4216
      %v4249 = vld [vmem:[#allocation3 + $0x117] sm:$0xff]
      %v4250 = vld [vmem:[#allocation3 + $0x11f] sm:$0xff]
      %v4251 = vsel %vm1507, %v2871, 0.0
      %v4252 = vsel %vm1508, %v2872, 0.0
      %v4253 = vsel %vm1509, %v2873, 0.0
      %v4254 = vsel %vm1510, %v2874, 0.0
      %v4255 = vsel %vm1511, %v2875, 0.0
      %v4256 = vsel %vm1512, %v2876, 0.0
      %v4257 = vsel %vm1513, %v2877, 0.0
      %v4258 = vsel %vm1514, %v2878, 0.0
      %v4259 = vsel %vm1515, %v2879, 0.0
      %v4260 = vsel %vm1516, %v2880, 0.0
      %v4261 = vsel %vm1517, %v2881, 0.0
      %v4262 = vsel %vm1518, %v2882, 0.0
      %v4263 = vsel %vm1519, %v2883, 0.0
      %v4264 = vsel %vm1520, %v2884, 0.0
      %v4265 = vsel %vm1521, %v2885, 0.0
      %v4266 = vsel %vm1522, %v2886, 0.0
      %v4267 = vsel %vm1523, %v2887, 0.0
      %v4268 = vsel %vm1524, %v2888, 0.0
      %v4269 = vsel %vm1525, %v2889, 0.0
      %v4270 = vsel %vm1526, %v2890, 0.0
      %v4271 = vsel %vm1527, %v2891, 0.0
      %v4272 = vsel %vm1528, %v2892, 0.0
      %v4273 = vsel %vm1529, %v2893, 0.0
      %v4274 = vsel %vm1530, %v2894, 0.0
      %v4275 = vsel %vm1531, %v2895, 0.0
      %v4276 = vsel %vm1532, %v2896, 0.0
      %v4277 = vsel %vm1533, %v2897, 0.0
      %v4278 = vsel %vm1534, %v2898, 0.0
      %v4279 = vsel %vm1535, %v3603, 0.0
      %v4280 = vsel %vm1536, %v3604, 0.0
      %v4281 = vsel %vm1537, %v4249, 0.0
      %v4282 = vsel %vm1538, %v4250, 0.0
      %v4283 = vmul.f32 %v4154, %v4251
      %v4284 = vmul.f32 %v4156, %v4252
      %v4285 = vmul.f32 %v4158, %v4253
      %v4286 = vmul.f32 %v4160, %v4254
      %v4287 = vmul.f32 %v4162, %v4255
      %v4288 = vmul.f32 %v4164, %v4256
      %v4289 = vmul.f32 %v4166, %v4257
      %v4290 = vmul.f32 %v4168, %v4258
      %v4291 = vmul.f32 %v4170, %v4259
      %v4292 = vmul.f32 %v4172, %v4260
      %v4293 = vmul.f32 %v4174, %v4261
      %v4294 = vmul.f32 %v4176, %v4262
      %v4295 = vmul.f32 %v4178, %v4263
      %v4296 = vmul.f32 %v4180, %v4264
      %v4297 = vmul.f32 %v4182, %v4265
      %v4298 = vmul.f32 %v4184, %v4266
      %v4299 = vmul.f32 %v4186, %v4267
      %v4300 = vmul.f32 %v4188, %v4268
      %v4301 = vmul.f32 %v4190, %v4269
      %v4302 = vmul.f32 %v4192, %v4270
      %v4303 = vmul.f32 %v4194, %v4271
      %v4304 = vmul.f32 %v4196, %v4272
      %v4305 = vmul.f32 %v4198, %v4273
      %v4306 = vmul.f32 %v4200, %v4274
      %v4307 = vmul.f32 %v4202, %v4275
      %v4308 = vmul.f32 %v4204, %v4276
      %v4309 = vmul.f32 %v4206, %v4277
      %v4310 = vmul.f32 %v4208, %v4278
      %v4311 = vmul.f32 %v4210, %v4279
      %v4312 = vmul.f32 %v4212, %v4280
      %v4313 = vmul.f32 %v4214, %v4281
      %v4314 = vmul.f32 %v4216, %v4282
      %v4315 = vadd.f32 %v4089, %v4283
      %v4316 = vadd.f32 %v4090, %v4284
      %v4317 = vadd.f32 %v4091, %v4285
      %v4318 = vadd.f32 %v4092, %v4286
      %v4319 = vadd.f32 %v4093, %v4287
      %v4320 = vadd.f32 %v4094, %v4288
      %v4321 = vadd.f32 %v4095, %v4289
      %v4322 = vadd.f32 %v4096, %v4290
      %v4323 = vadd.f32 %v4097, %v4291
      %v4324 = vadd.f32 %v4098, %v4292
      %v4325 = vadd.f32 %v4099, %v4293
      %v4326 = vadd.f32 %v4100, %v4294
      %v4327 = vadd.f32 %v4101, %v4295
      %v4328 = vadd.f32 %v4102, %v4296
      %v4329 = vadd.f32 %v4103, %v4297
      %v4330 = vadd.f32 %v4104, %v4298
      %v4331 = vadd.f32 %v4105, %v4299
      %v4332 = vadd.f32 %v4106, %v4300
      %v4333 = vadd.f32 %v4107, %v4301
      %v4334 = vadd.f32 %v4108, %v4302
      %v4335 = vadd.f32 %v4109, %v4303
      %v4336 = vadd.f32 %v4110, %v4304
      %v4337 = vadd.f32 %v4111, %v4305
      %v4338 = vadd.f32 %v4112, %v4306
      %v4339 = vadd.f32 %v4113, %v4307
      %v4340 = vadd.f32 %v4114, %v4308
      %v4341 = vadd.f32 %v4115, %v4309
      %v4342 = vadd.f32 %v4116, %v4310
      %v4343 = vadd.f32 %v4117, %v4311
      %v4344 = vadd.f32 %v4118, %v4312
      %v4345 = vadd.f32 %v4119, %v4313
      %v4346 = vadd.f32 %v4120, %v4314
      %v4347 = vsub.f32 %v2541, %v2707
      %v4348 = vsub.f32 %v2542, %v2708
      %v4349 = vsub.f32 %v2543, %v2709
      %v4350 = vsub.f32 %v2544, %v2710
      %v4351 = vsub.f32 %v2545, %v2711
      %v4352 = vsub.f32 %v2546, %v2712
      %v4353 = vsub.f32 %v2547, %v2713
      %v4354 = vsub.f32 %v2548, %v2714
      %v4355 = vsub.f32 %v2549, %v2715
      %v4356 = vsub.f32 %v2550, %v2716
      %v4357 = vsub.f32 %v2551, %v2717
      %v4358 = vsub.f32 %v2552, %v2718
      %v4359 = vsub.f32 %v2553, %v2719
      %v4360 = vsub.f32 %v2554, %v2720
      %v4361 = vsub.f32 %v2555, %v2721
      %v4362 = vsub.f32 %v2556, %v2722
      %v4363 = vsub.f32 %v2557, %v2723
      %v4364 = vsub.f32 %v2558, %v2724
      %v4365 = vsub.f32 %v2559, %v2725
      %v4366 = vsub.f32 %v2560, %v2726
      %v4367 = vsub.f32 %v2561, %v2727
      %v4368 = vsub.f32 %v2562, %v2728
      %v4369 = vsub.f32 %v2563, %v2729
      %v4370 = vsub.f32 %v2564, %v2730
      %v4371 = vsub.f32 %v2565, %v2731
      %v4372 = vsub.f32 %v2566, %v2732
      %v4373 = vsub.f32 %v2567, %v2733
      %v4374 = vsub.f32 %v2568, %v2734
      %v4375 = vsub.f32 %v2569, %v2735
      %v4376 = vsub.f32 %v2570, %v2736
      %v4377 = vsub.f32 %v2571, %v2737
      %v4378 = vsub.f32 %v2572, %v2738
      %v4379 = vmul.f32 %v4347, 1.442695
      %v4380 = vpow.pop %v4379
      %v4381 = vmul.f32 %v4348, 1.442695
      %v4382 = vpow.pop %v4381
      %v4383 = vmul.f32 %v4349, 1.442695
      %v4384 = vpow.pop %v4383
      %v4385 = vmul.f32 %v4350, 1.442695
      %v4386 = vpow.pop %v4385
      %v4387 = vmul.f32 %v4351, 1.442695
      %v4388 = vpow.pop %v4387
      %v4389 = vmul.f32 %v4352, 1.442695
      %v4390 = vpow.pop %v4389
      %v4391 = vmul.f32 %v4353, 1.442695
      %v4392 = vpow.pop %v4391
      %v4393 = vmul.f32 %v4354, 1.442695
      %v4394 = vpow.pop %v4393
      %v4395 = vmul.f32 %v4355, 1.442695
      %v4396 = vpow.pop %v4395
      %v4397 = vmul.f32 %v4356, 1.442695
      %v4398 = vpow.pop %v4397
      %v4399 = vmul.f32 %v4357, 1.442695
      %v4400 = vpow.pop %v4399
      %v4401 = vmul.f32 %v4358, 1.442695
      %v4402 = vpow.pop %v4401
      %v4403 = vmul.f32 %v4359, 1.442695
      %v4404 = vpow.pop %v4403
      %v4405 = vmul.f32 %v4360, 1.442695
      %v4406 = vpow.pop %v4405
      %v4407 = vmul.f32 %v4361, 1.442695
      %v4408 = vpow.pop %v4407
      %v4409 = vmul.f32 %v4362, 1.442695
      %v4410 = vpow.pop %v4409
      %v4411 = vmul.f32 %v4363, 1.442695
      %v4412 = vpow.pop %v4411
      %v4413 = vmul.f32 %v4364, 1.442695
      %v4414 = vpow.pop %v4413
      %v4415 = vmul.f32 %v4365, 1.442695
      %v4416 = vpow.pop %v4415
      %v4417 = vmul.f32 %v4366, 1.442695
      %v4418 = vpow.pop %v4417
      %v4419 = vmul.f32 %v4367, 1.442695
      %v4420 = vpow.pop %v4419
      %v4421 = vmul.f32 %v4368, 1.442695
      %v4422 = vpow.pop %v4421
      %v4423 = vmul.f32 %v4369, 1.442695
      %v4424 = vpow.pop %v4423
      %v4425 = vmul.f32 %v4370, 1.442695
      %v4426 = vpow.pop %v4425
      %v4427 = vmul.f32 %v4371, 1.442695
      %v4428 = vpow.pop %v4427
      %v4429 = vmul.f32 %v4372, 1.442695
      %v4430 = vpow.pop %v4429
      %v4431 = vmul.f32 %v4373, 1.442695
      %v4432 = vpow.pop %v4431
      %v4433 = vmul.f32 %v4374, 1.442695
      %v4434 = vpow.pop %v4433
      %v4435 = vmul.f32 %v4375, 1.442695
      %v4436 = vpow.pop %v4435
      %v4437 = vmul.f32 %v4376, 1.442695
      %v4438 = vpow.pop %v4437
      %v4439 = vmul.f32 %v4377, 1.442695
      %v4440 = vpow.pop %v4439
      %v4441 = vmul.f32 %v4378, 1.442695
      %v4442 = vpow.pop %v4441
      %v4443 = vadd.f32 %v4217, %v4380
      %v4444 = vadd.f32 %v4218, %v4382
      %v4445 = vadd.f32 %v4219, %v4384
      %v4446 = vadd.f32 %v4220, %v4386
      %v4447 = vadd.f32 %v4221, %v4388
      %v4448 = vadd.f32 %v4222, %v4390
      %v4449 = vadd.f32 %v4223, %v4392
      %v4450 = vadd.f32 %v4224, %v4394
      %v4451 = vadd.f32 %v4225, %v4396
      %v4452 = vadd.f32 %v4226, %v4398
      %v4453 = vadd.f32 %v4227, %v4400
      %v4454 = vadd.f32 %v4228, %v4402
      %v4455 = vadd.f32 %v4229, %v4404
      %v4456 = vadd.f32 %v4230, %v4406
      %v4457 = vadd.f32 %v4231, %v4408
      %v4458 = vadd.f32 %v4232, %v4410
      %v4459 = vadd.f32 %v4233, %v4412
      %v4460 = vadd.f32 %v4234, %v4414
      %v4461 = vadd.f32 %v4235, %v4416
      %v4462 = vadd.f32 %v4236, %v4418
      %v4463 = vadd.f32 %v4237, %v4420
      %v4464 = vadd.f32 %v4238, %v4422
      %v4465 = vadd.f32 %v4239, %v4424
      %v4466 = vadd.f32 %v4240, %v4426
      %v4467 = vadd.f32 %v4241, %v4428
      %v4468 = vadd.f32 %v4242, %v4430
      %v4469 = vadd.f32 %v4243, %v4432
      %v4470 = vadd.f32 %v4244, %v4434
      %v4471 = vadd.f32 %v4245, %v4436
      %v4472 = vadd.f32 %v4246, %v4438
      %v4473 = vadd.f32 %v4247, %v4440
      %v4474 = vadd.f32 %v4248, %v4442
      %v4475 = vld [vmem:[#allocation3 + $0x118] sm:$0xff]
      %v4476 = vld [vmem:[#allocation3 + $0x120] sm:$0xff]
      %v4477 = vmul.f32 %v4380, %v3127
      %v4478 = vmul.f32 %v4382, %v3128
      %v4479 = vmul.f32 %v4384, %v3129
      %v4480 = vmul.f32 %v4386, %v3130
      %v4481 = vmul.f32 %v4388, %v3131
      %v4482 = vmul.f32 %v4390, %v3132
      %v4483 = vmul.f32 %v4392, %v3133
      %v4484 = vmul.f32 %v4394, %v3134
      %v4485 = vmul.f32 %v4396, %v3135
      %v4486 = vmul.f32 %v4398, %v3136
      %v4487 = vmul.f32 %v4400, %v3137
      %v4488 = vmul.f32 %v4402, %v3138
      %v4489 = vmul.f32 %v4404, %v3139
      %v4490 = vmul.f32 %v4406, %v3140
      %v4491 = vmul.f32 %v4408, %v3141
      %v4492 = vmul.f32 %v4410, %v3142
      %v4493 = vmul.f32 %v4412, %v3143
      %v4494 = vmul.f32 %v4414, %v3144
      %v4495 = vmul.f32 %v4416, %v3145
      %v4496 = vmul.f32 %v4418, %v3146
      %v4497 = vmul.f32 %v4420, %v3147
      %v4498 = vmul.f32 %v4422, %v3148
      %v4499 = vmul.f32 %v4424, %v3149
      %v4500 = vmul.f32 %v4426, %v3150
      %v4501 = vmul.f32 %v4428, %v3151
      %v4502 = vmul.f32 %v4430, %v3152
      %v4503 = vmul.f32 %v4432, %v3153
      %v4504 = vmul.f32 %v4434, %v3154
      %v4505 = vmul.f32 %v4436, %v3829
      %v4506 = vmul.f32 %v4438, %v3830
      %v4507 = vmul.f32 %v4440, %v4475
      %v4508 = vmul.f32 %v4442, %v4476
      %v4509 = vadd.f32 %v4315, %v4477
      %v4510 = vadd.f32 %v4316, %v4478
      %v4511 = vadd.f32 %v4317, %v4479
      %v4512 = vadd.f32 %v4318, %v4480
      %v4513 = vadd.f32 %v4319, %v4481
      %v4514 = vadd.f32 %v4320, %v4482
      %v4515 = vadd.f32 %v4321, %v4483
      %v4516 = vadd.f32 %v4322, %v4484
      %v4517 = vadd.f32 %v4323, %v4485
      %v4518 = vadd.f32 %v4324, %v4486
      %v4519 = vadd.f32 %v4325, %v4487
      %v4520 = vadd.f32 %v4326, %v4488
      %v4521 = vadd.f32 %v4327, %v4489
      %v4522 = vadd.f32 %v4328, %v4490
      %v4523 = vadd.f32 %v4329, %v4491
      %v4524 = vadd.f32 %v4330, %v4492
      %v4525 = vadd.f32 %v4331, %v4493
      %v4526 = vadd.f32 %v4332, %v4494
      %v4527 = vadd.f32 %v4333, %v4495
      %v4528 = vadd.f32 %v4334, %v4496
      %v4529 = vadd.f32 %v4335, %v4497
      %v4530 = vadd.f32 %v4336, %v4498
      %v4531 = vadd.f32 %v4337, %v4499
      %v4532 = vadd.f32 %v4338, %v4500
      %v4533 = vadd.f32 %v4339, %v4501
      %v4534 = vadd.f32 %v4340, %v4502
      %v4535 = vadd.f32 %v4341, %v4503
      %v4536 = vadd.f32 %v4342, %v4504
      %v4537 = vadd.f32 %v4343, %v4505
      %v4538 = vadd.f32 %v4344, %v4506
      %v4539 = vadd.f32 %v4345, %v4507
      %v4540 = vadd.f32 %v4346, %v4508
      %v4541 = vsub.f32 %v2675, %v2707
      %v4542 = vsub.f32 %v2676, %v2708
      %v4543 = vsub.f32 %v2677, %v2709
      %v4544 = vsub.f32 %v2678, %v2710
      %v4545 = vsub.f32 %v2679, %v2711
      %v4546 = vsub.f32 %v2680, %v2712
      %v4547 = vsub.f32 %v2681, %v2713
      %v4548 = vsub.f32 %v2682, %v2714
      %v4549 = vsub.f32 %v2683, %v2715
      %v4550 = vsub.f32 %v2684, %v2716
      %v4551 = vsub.f32 %v2685, %v2717
      %v4552 = vsub.f32 %v2686, %v2718
      %v4553 = vsub.f32 %v2687, %v2719
      %v4554 = vsub.f32 %v2688, %v2720
      %v4555 = vsub.f32 %v2689, %v2721
      %v4556 = vsub.f32 %v2690, %v2722
      %v4557 = vsub.f32 %v2691, %v2723
      %v4558 = vsub.f32 %v2692, %v2724
      %v4559 = vsub.f32 %v2693, %v2725
      %v4560 = vsub.f32 %v2694, %v2726
      %v4561 = vsub.f32 %v2695, %v2727
      %v4562 = vsub.f32 %v2696, %v2728
      %v4563 = vsub.f32 %v2697, %v2729
      %v4564 = vsub.f32 %v2698, %v2730
      %v4565 = vsub.f32 %v2699, %v2731
      %v4566 = vsub.f32 %v2700, %v2732
      %v4567 = vsub.f32 %v2701, %v2733
      %v4568 = vsub.f32 %v2702, %v2734
      %v4569 = vsub.f32 %v2703, %v2735
      %v4570 = vsub.f32 %v2704, %v2736
      %v4571 = vsub.f32 %v2705, %v2737
      %v4572 = vsub.f32 %v2706, %v2738
      %v4573 = vmul.f32 %v4541, 1.442695
      %v4574 = vpow.pop %v4573
      %v4575 = vmul.f32 %v4542, 1.442695
      %v4576 = vpow.pop %v4575
      %v4577 = vmul.f32 %v4543, 1.442695
      %v4578 = vpow.pop %v4577
      %v4579 = vmul.f32 %v4544, 1.442695
      %v4580 = vpow.pop %v4579
      %v4581 = vmul.f32 %v4545, 1.442695
      %v4582 = vpow.pop %v4581
      %v4583 = vmul.f32 %v4546, 1.442695
      %v4584 = vpow.pop %v4583
      %v4585 = vmul.f32 %v4547, 1.442695
      %v4586 = vpow.pop %v4585
      %v4587 = vmul.f32 %v4548, 1.442695
      %v4588 = vpow.pop %v4587
      %v4589 = vmul.f32 %v4549, 1.442695
      %v4590 = vpow.pop %v4589
      %v4591 = vmul.f32 %v4550, 1.442695
      %v4592 = vpow.pop %v4591
      %v4593 = vmul.f32 %v4551, 1.442695
      %v4594 = vpow.pop %v4593
      %v4595 = vmul.f32 %v4552, 1.442695
      %v4596 = vpow.pop %v4595
      %v4597 = vmul.f32 %v4553, 1.442695
      %v4598 = vpow.pop %v4597
      %v4599 = vmul.f32 %v4554, 1.442695
      %v4600 = vpow.pop %v4599
      %v4601 = vmul.f32 %v4555, 1.442695
      %v4602 = vpow.pop %v4601
      %v4603 = vmul.f32 %v4556, 1.442695
      %v4604 = vpow.pop %v4603
      %v4605 = vmul.f32 %v4557, 1.442695
      %v4606 = vpow.pop %v4605
      %v4607 = vmul.f32 %v4558, 1.442695
      %v4608 = vpow.pop %v4607
      %v4609 = vmul.f32 %v4559, 1.442695
      %v4610 = vpow.pop %v4609
      %v4611 = vmul.f32 %v4560, 1.442695
      %v4612 = vpow.pop %v4611
      %v4613 = vmul.f32 %v4561, 1.442695
      %v4614 = vpow.pop %v4613
      %v4615 = vmul.f32 %v4562, 1.442695
      %v4616 = vpow.pop %v4615
      %v4617 = vmul.f32 %v4563, 1.442695
      %v4618 = vpow.pop %v4617
      %v4619 = vmul.f32 %v4564, 1.442695
      %v4620 = vpow.pop %v4619
      %v4621 = vmul.f32 %v4565, 1.442695
      %v4622 = vpow.pop %v4621
      %v4623 = vmul.f32 %v4566, 1.442695
      %v4624 = vpow.pop %v4623
      %v4625 = vmul.f32 %v4567, 1.442695
      %v4626 = vpow.pop %v4625
      %v4627 = vmul.f32 %v4568, 1.442695
      %v4628 = vpow.pop %v4627
      %v4629 = vmul.f32 %v4569, 1.442695
      %v4630 = vpow.pop %v4629
      %v4631 = vmul.f32 %v4570, 1.442695
      %v4632 = vpow.pop %v4631
      %v4633 = vmul.f32 %v4571, 1.442695
      %v4634 = vpow.pop %v4633
      %v4635 = vmul.f32 %v4572, 1.442695
      %v4636 = vpow.pop %v4635
      %v4637 = vadd.f32 %v4443, %v4574
      %v4638 = vadd.f32 %v4444, %v4576
      %v4639 = vadd.f32 %v4445, %v4578
      %v4640 = vadd.f32 %v4446, %v4580
      %v4641 = vadd.f32 %v4447, %v4582
      %v4642 = vadd.f32 %v4448, %v4584
      %v4643 = vadd.f32 %v4449, %v4586
      %v4644 = vadd.f32 %v4450, %v4588
      %v4645 = vadd.f32 %v4451, %v4590
      %v4646 = vadd.f32 %v4452, %v4592
      %v4647 = vadd.f32 %v4453, %v4594
      %v4648 = vadd.f32 %v4454, %v4596
      %v4649 = vadd.f32 %v4455, %v4598
      %v4650 = vadd.f32 %v4456, %v4600
      %v4651 = vadd.f32 %v4457, %v4602
      %v4652 = vadd.f32 %v4458, %v4604
      %v4653 = vadd.f32 %v4459, %v4606
      %v4654 = vadd.f32 %v4460, %v4608
      %v4655 = vadd.f32 %v4461, %v4610
      %v4656 = vadd.f32 %v4462, %v4612
      %v4657 = vadd.f32 %v4463, %v4614
      %v4658 = vadd.f32 %v4464, %v4616
      %v4659 = vadd.f32 %v4465, %v4618
      %v4660 = vadd.f32 %v4466, %v4620
      %v4661 = vadd.f32 %v4467, %v4622
      %v4662 = vadd.f32 %v4468, %v4624
      %v4663 = vadd.f32 %v4469, %v4626
      %v4664 = vadd.f32 %v4470, %v4628
      %v4665 = vadd.f32 %v4471, %v4630
      %v4666 = vadd.f32 %v4472, %v4632
      %v4667 = vadd.f32 %v4473, %v4634
      %v4668 = vadd.f32 %v4474, %v4636
      %v4669 = vld [vmem:[#allocation3 + $0x119] sm:$0xff]
      %v4670 = vld [vmem:[#allocation3 + $0x121] sm:$0xff]
      %v4671 = vsel %vm1835, %v3351, 0.0
      %v4672 = vsel %vm1836, %v3352, 0.0
      %v4673 = vsel %vm1837, %v3353, 0.0
      %v4674 = vsel %vm1838, %v3354, 0.0
      %v4675 = vsel %vm1839, %v3355, 0.0
      %v4676 = vsel %vm1840, %v3356, 0.0
      %v4677 = vsel %vm1841, %v3357, 0.0
      %v4678 = vsel %vm1842, %v3358, 0.0
      %v4679 = vsel %vm1843, %v3359, 0.0
      %v4680 = vsel %vm1844, %v3360, 0.0
      %v4681 = vsel %vm1845, %v3361, 0.0
      %v4682 = vsel %vm1846, %v3362, 0.0
      %v4683 = vsel %vm1847, %v3363, 0.0
      %v4684 = vsel %vm1848, %v3364, 0.0
      %v4685 = vsel %vm1849, %v3365, 0.0
      %v4686 = vsel %vm1850, %v3366, 0.0
      %v4687 = vsel %vm1851, %v3367, 0.0
      %v4688 = vsel %vm1852, %v3368, 0.0
      %v4689 = vsel %vm1853, %v3369, 0.0
      %v4690 = vsel %vm1854, %v3370, 0.0
      %v4691 = vsel %vm1855, %v3371, 0.0
      %v4692 = vsel %vm1856, %v3372, 0.0
      %v4693 = vsel %vm1857, %v3373, 0.0
      %v4694 = vsel %vm1858, %v3374, 0.0
      %v4695 = vsel %vm1859, %v3375, 0.0
      %v4696 = vsel %vm1860, %v3376, 0.0
      %v4697 = vsel %vm1861, %v3377, 0.0
      %v4698 = vsel %vm1862, %v3378, 0.0
      %v4699 = vsel %vm1863, %v4023, 0.0
      %v4700 = vsel %vm1864, %v4024, 0.0
      %v4701 = vsel %vm1865, %v4669, 0.0
      %v4702 = vsel %vm1866, %v4670, 0.0
      %v4703 = vmul.f32 %v4574, %v4671
      %v4704 = vmul.f32 %v4576, %v4672
      %v4705 = vmul.f32 %v4578, %v4673
      %v4706 = vmul.f32 %v4580, %v4674
      %v4707 = vmul.f32 %v4582, %v4675
      %v4708 = vmul.f32 %v4584, %v4676
      %v4709 = vmul.f32 %v4586, %v4677
      %v4710 = vmul.f32 %v4588, %v4678
      %v4711 = vmul.f32 %v4590, %v4679
      %v4712 = vmul.f32 %v4592, %v4680
      %v4713 = vmul.f32 %v4594, %v4681
      %v4714 = vmul.f32 %v4596, %v4682
      %v4715 = vmul.f32 %v4598, %v4683
      %v4716 = vmul.f32 %v4600, %v4684
      %v4717 = vmul.f32 %v4602, %v4685
      %v4718 = vmul.f32 %v4604, %v4686
      %v4719 = vmul.f32 %v4606, %v4687
      %v4720 = vmul.f32 %v4608, %v4688
      %v4721 = vmul.f32 %v4610, %v4689
      %v4722 = vmul.f32 %v4612, %v4690
      %v4723 = vmul.f32 %v4614, %v4691
      %v4724 = vmul.f32 %v4616, %v4692
      %v4725 = vmul.f32 %v4618, %v4693
      %v4726 = vmul.f32 %v4620, %v4694
      %v4727 = vmul.f32 %v4622, %v4695
      %v4728 = vmul.f32 %v4624, %v4696
      %v4729 = vmul.f32 %v4626, %v4697
      %v4730 = vmul.f32 %v4628, %v4698
      %v4731 = vmul.f32 %v4630, %v4699
      %v4732 = vmul.f32 %v4632, %v4700
      %v4733 = vmul.f32 %v4634, %v4701
      %v4734 = vmul.f32 %v4636, %v4702
      %v4735 = vadd.f32 %v4509, %v4703
      %v4736 = vadd.f32 %v4510, %v4704
      %v4737 = vadd.f32 %v4511, %v4705
      %v4738 = vadd.f32 %v4512, %v4706
      %v4739 = vadd.f32 %v4513, %v4707
      %v4740 = vadd.f32 %v4514, %v4708
      %v4741 = vadd.f32 %v4515, %v4709
      %v4742 = vadd.f32 %v4516, %v4710
      %v4743 = vadd.f32 %v4517, %v4711
      %v4744 = vadd.f32 %v4518, %v4712
      %v4745 = vadd.f32 %v4519, %v4713
      %v4746 = vadd.f32 %v4520, %v4714
      %v4747 = vadd.f32 %v4521, %v4715
      %v4748 = vadd.f32 %v4522, %v4716
      %v4749 = vadd.f32 %v4523, %v4717
      %v4750 = vadd.f32 %v4524, %v4718
      %v4751 = vadd.f32 %v4525, %v4719
      %v4752 = vadd.f32 %v4526, %v4720
      %v4753 = vadd.f32 %v4527, %v4721
      %v4754 = vadd.f32 %v4528, %v4722
      %v4755 = vadd.f32 %v4529, %v4723
      %v4756 = vadd.f32 %v4530, %v4724
      %v4757 = vadd.f32 %v4531, %v4725
      %v4758 = vadd.f32 %v4532, %v4726
      %v4759 = vadd.f32 %v4533, %v4727
      %v4760 = vadd.f32 %v4534, %v4728
      %v4761 = vadd.f32 %v4535, %v4729
      %v4762 = vadd.f32 %v4536, %v4730
      %v4763 = vadd.f32 %v4537, %v4731
      %v4764 = vadd.f32 %v4538, %v4732
      %v4765 = vadd.f32 %v4539, %v4733
      %v4766 = vadd.f32 %v4540, %v4734
      %v4767 = vrcp.pop %v4637
      %v4768 = vrcp.pop %v4638
      %v4769 = vrcp.pop %v4639
      %v4770 = vrcp.pop %v4640
      %v4771 = vrcp.pop %v4641
      %v4772 = vrcp.pop %v4642
      %v4773 = vrcp.pop %v4643
      %v4774 = vrcp.pop %v4644
      %v4775 = vrcp.pop %v4645
      %v4776 = vrcp.pop %v4646
      %v4777 = vrcp.pop %v4647
      %v4778 = vrcp.pop %v4648
      %v4779 = vrcp.pop %v4649
      %v4780 = vrcp.pop %v4650
      %v4781 = vrcp.pop %v4651
      %v4782 = vrcp.pop %v4652
      %v4783 = vrcp.pop %v4653
      %v4784 = vrcp.pop %v4654
      %v4785 = vrcp.pop %v4655
      %v4786 = vrcp.pop %v4656
      %v4787 = vrcp.pop %v4657
      %v4788 = vrcp.pop %v4658
      %v4789 = vrcp.pop %v4659
      %v4790 = vrcp.pop %v4660
      %v4791 = vrcp.pop %v4661
      %v4792 = vrcp.pop %v4662
      %v4793 = vrcp.pop %v4663
      %v4794 = vrcp.pop %v4664
      %v4795 = vrcp.pop %v4665
      %v4796 = vrcp.pop %v4666
      %v4797 = vrcp.pop %v4667
      %v4798 = vrcp.pop %v4668
      %v4799 = vmul.f32 %v4735, %v4767
      %v4800 = vmul.f32 %v4736, %v4768
      %v4801 = vmul.f32 %v4737, %v4769
      %v4802 = vmul.f32 %v4738, %v4770
      %v4803 = vmul.f32 %v4739, %v4771
      %v4804 = vmul.f32 %v4740, %v4772
      %v4805 = vmul.f32 %v4741, %v4773
      %v4806 = vmul.f32 %v4742, %v4774
      %v4807 = vmul.f32 %v4743, %v4775
      %v4808 = vmul.f32 %v4744, %v4776
      %v4809 = vmul.f32 %v4745, %v4777
      %v4810 = vmul.f32 %v4746, %v4778
      %v4811 = vmul.f32 %v4747, %v4779
      %v4812 = vmul.f32 %v4748, %v4780
      %v4813 = vmul.f32 %v4749, %v4781
      %v4814 = vmul.f32 %v4750, %v4782
      %v4815 = vmul.f32 %v4751, %v4783
      %v4816 = vmul.f32 %v4752, %v4784
      %v4817 = vmul.f32 %v4753, %v4785
      %v4818 = vmul.f32 %v4754, %v4786
      %v4819 = vmul.f32 %v4755, %v4787
      %v4820 = vmul.f32 %v4756, %v4788
      %v4821 = vmul.f32 %v4757, %v4789
      %v4822 = vmul.f32 %v4758, %v4790
      %v4823 = vmul.f32 %v4759, %v4791
      %v4824 = vmul.f32 %v4760, %v4792
      %v4825 = vmul.f32 %v4761, %v4793
      %v4826 = vmul.f32 %v4762, %v4794
      %v4827 = vmul.f32 %v4763, %v4795
      %v4828 = vmul.f32 %v4764, %v4796
      %v4829 = vmul.f32 %v4765, %v4797
      %v4830 = vmul.f32 %v4766, %v4798
      %4831 = vst.msk [vmem:[%s224] sm:$0xff] %vm883, %v4799
      %4832 = vst.msk [vmem:[%s224 + $0x8] sm:$0xff] %vm883, %v4800
      %4833 = vst.msk [vmem:[%s224 + $0x10] sm:$0xff] %vm883, %v4801
      %4834 = vst.msk [vmem:[%s224 + $0x18] sm:$0xff] %vm883, %v4802
      %4835 = vst.msk [vmem:[%s224 + $0x20] sm:$0xff] %vm883, %v4803
      %4836 = vst.msk [vmem:[%s224 + $0x28] sm:$0xff] %vm883, %v4804
      %4837 = vst.msk [vmem:[%s224 + $0x30] sm:$0xff] %vm883, %v4805
      %4838 = vst.msk [vmem:[%s224 + $0x38] sm:$0xff] %vm883, %v4806
      %4839 = vst.msk [vmem:[%s224 + $0x40] sm:$0xff] %vm883, %v4807
      %4840 = vst.msk [vmem:[%s224 + $0x48] sm:$0xff] %vm883, %v4808
      %4841 = vst.msk [vmem:[%s224 + $0x50] sm:$0xff] %vm883, %v4809
      %4842 = vst.msk [vmem:[%s224 + $0x58] sm:$0xff] %vm883, %v4810
      %4843 = vst.msk [vmem:[%s224 + $0x60] sm:$0xff] %vm883, %v4811
      %4844 = vst.msk [vmem:[%s224 + $0x68] sm:$0xff] %vm883, %v4812
      %4845 = vst.msk [vmem:[%s224 + $0x70] sm:$0xff] %vm883, %v4813
      %4846 = vst.msk [vmem:[%s224 + $0x78] sm:$0xff] %vm883, %v4814
      %4847 = vst.msk [vmem:[%s224 + $0x80] sm:$0xff] %vm883, %v4815
      %4848 = vst.msk [vmem:[%s224 + $0x88] sm:$0xff] %vm883, %v4816
      %4849 = vst.msk [vmem:[%s224 + $0x90] sm:$0xff] %vm883, %v4817
      %4850 = vst.msk [vmem:[%s224 + $0x98] sm:$0xff] %vm883, %v4818
      %4851 = vst.msk [vmem:[%s224 + $0xa0] sm:$0xff] %vm883, %v4819
      %4852 = vst.msk [vmem:[%s224 + $0xa8] sm:$0xff] %vm883, %v4820
      %4853 = vst.msk [vmem:[%s224 + $0xb0] sm:$0xff] %vm883, %v4821
      %4854 = vst.msk [vmem:[%s224 + $0xb8] sm:$0xff] %vm883, %v4822
      %4855 = vst.msk [vmem:[%s224 + $0xc0] sm:$0xff] %vm883, %v4823
      %4856 = vst.msk [vmem:[%s224 + $0xc8] sm:$0xff] %vm883, %v4824
      %4857 = vst.msk [vmem:[%s224 + $0xd0] sm:$0xff] %vm883, %v4825
      %4858 = vst.msk [vmem:[%s224 + $0xd8] sm:$0xff] %vm883, %v4826
      %4859 = vst.msk [vmem:[%s224 + $0xe0] sm:$0xff] %vm883, %v4827
      %4860 = vst.msk [vmem:[%s224 + $0xe8] sm:$0xff] %vm883, %v4828
      %4861 = vst.msk [vmem:[%s224 + $0xf0] sm:$0xff] %vm883, %v4829
      %4862 = vst.msk [vmem:[%s224 + $0xf8] sm:$0xff] %vm883, %v4830
      %p4863 = scmp.lt.s32.totalorder %s16, 1
      %s4864 = scalar_select %p4863, %s16, 1
      %s4865 = smul.addr %s4864, 32
      %s4866 = smul.addr %s4865, 8
      %s4867 = scalar_lea.vmem %s5, %s4866
      // Predicated region
      $region41: #{tpu_custom_call.1} parent=39 // pred_check
        %p4868 = pneg %p144
      $region42: #{tpu_custom_call.1} parent=39 // pred_check_branch
        %4870 = sbr.rel (%p4868) target = $region44
      $region43: #{tpu_custom_call.1} parent=39 // pred_region
        _
      $region44: #{tpu_custom_call.1} parent=39 // pred_fallthru
        _
    $region40: #{tpu_custom_call.1} parent=5 // pred_fallthru
      _
    %p4871 = scmp.le.s32.totalorder 2, %s11
    // Predicated region
    $region45: #{tpu_custom_call.1} parent=5 // pred_check
      %p4872 = pneg %p4871
    $region46: #{tpu_custom_call.1} parent=5 // pred_check_branch
      %4874 = sbr.rel (%p4872) target = $region48
    $region47: #{tpu_custom_call.1} parent=5 // pred_region
      %s4875 = ssub.s32 %s11, 2
      // Predicated region
      $region49: #{tpu_custom_call.1} parent=47 // pred_check
        %p4876 = pneg %p150
      $region50: #{tpu_custom_call.1} parent=47 // pred_check_branch
        %4878 = sbr.rel (%p4876) target = $region52
      $region51: #{tpu_custom_call.1} parent=47 // pred_region
        %p4879 = scmp.lt.s32.totalorder %s17, 1
        %s4880 = scalar_select %p4879, %s17, 1
        %s4881 = smul.addr %s4880, 32
        %s4882 = smul.addr %s4881, 8
        %s4883 = scalar_lea.vmem %s5, %s4882
      $region52: #{tpu_custom_call.1} parent=47 // pred_fallthru
        _
    $region48: #{tpu_custom_call.1} parent=5 // pred_fallthru
      _
  $region6: #{tpu_custom_call.1} parent=0 // loop_footer
    %s15 = sadd.s32 1, %s11
  $region7: #{tpu_custom_call.1} parent=0 // loop_footer_branch
    %10 = sbr.rel target = $region3
  $region8: #{tpu_custom_call.1} parent=0 // loop_exit
    _

</llo_original>
